<compile_context>
chip_gen: v7x
topology: tpu7x:2x2x1
jax: 0.10.0
libtpu: 0.0.40
codegen_flags: <defaults>
</compile_context>

<pallas_src>
import functools

import jax
import jax.numpy as jnp
from jax import lax
from jax.experimental import pallas as pl
from jax.experimental.pallas import tpu as pltpu


# ----------------------------------------------------------------------------
# Fused kernel: TCN blocks + encoder head + autoregressive LSTM decoder
# ----------------------------------------------------------------------------
def _fused_tcn_lstm_kernel(x_ref, xt0_ref, *refs, n_blocks, dilations, has_ds,
                           K, L, B, hidden, d_in, t_out):
    BL = B * L
    H = hidden

    # Memoized per-shape time-mod iota (hoisted: JAX does not CSE iota /
    # broadcast, so rebuilding it per tap would be real VPU work).
    tmod_cache = {}

    def tmod_for(shape):
        if shape not in tmod_cache:
            tmod_cache[shape] = lax.broadcasted_iota(jnp.int32, shape, 1) % L
        return tmod_cache[shape]

    def causal_shift(x, s):
        # out[:, b*L + t] = x[:, b*L + t - s] for t >= s, else 0 (per-batch causal)
        if s == 0:
            return x
        if s >= L:
            return jnp.zeros_like(x)
        c = x.shape[0]
        shifted = jnp.concatenate(
            [jnp.zeros((c, s), x.dtype), x[:, :BL - s]], axis=1)
        # mask the first s steps of every batch block (also removes the
        # cross-batch leakage introduced by shifting the flattened B*L axis)
        return jnp.where(tmod_for(x.shape) >= s, shifted, 0.0)

    def conv1d(x, w_stk, bias, d):
        # Dilated causal conv as a single stacked MXU dot.
        # w_stk: (rows, K*C) with tap-k weights in columns [k*C, (k+1)*C).
        c = x.shape[0]
        taps = [causal_shift(x, d * (K - 1 - k)) for k in range(K)]
        if K == 1:
            return jnp.dot(w_stk, taps[0],
                           preferred_element_type=jnp.float32) + bias
        if c % 8 == 0:
            # sublane-aligned -> one dot over the stacked shifted input
            stacked = jnp.concatenate(taps, axis=0)            # (K*C, B*L)
            return jnp.dot(w_stk, stacked,
                           preferred_element_type=jnp.float32) + bias
        # Fallback for sublane-unaligned channel counts: per-tap dots.
        acc = jnp.dot(w_stk[:, :c], taps[0], preferred_element_type=jnp.float32)
        for k in range(1, K):
            acc = acc + jnp.dot(w_stk[:, k * c:(k + 1) * c], taps[k],
                                preferred_element_type=jnp.float32)
        return acc + bias

    # ------------------------------ TCN --------------------------------------
    y = x_ref[...]                                             # (C_in(_pad), B*L)
    r = 0
    for i in range(n_blocks):
        wA = refs[r][...]; bA = refs[r + 1][...]
        wB = refs[r + 2][...]; bB = refs[r + 3][...]
        r += 4
        d = dilations[i]
        c_out = wB.shape[0]
        z1 = conv1d(y, wA, bA, d)            # conv1 (+ fused 1x1 downsample rows)
        if has_ds[i]:
            h1 = jnp.maximum(z1[:c_out, :], 0.0)
            res = z1[c_out:, :]
        else:
            h1 = jnp.maximum(z1, 0.0)
            res = y
        z2 = conv1d(h1, wB, bB, d)
        y = jnp.maximum(jnp.maximum(z2, 0.0) + res, 0.0)       # relu(relu(conv2)+res)

    # --------------------------- encoder head --------------------------------
    wf = refs[r][...]; bf = refs[r + 1][...]
    wt_sel = refs[r + 2][...]; bt = refs[r + 3][...]; h_sel = refs[r + 4][...]
    r += 5
    feat = jnp.dot(wf, y, preferred_element_type=jnp.float32) + bf       # (H, B*L)
    c = jnp.dot(feat, wt_sel, preferred_element_type=jnp.float32) + bt   # (H, B) fc_time
    h = jnp.dot(feat, h_sel, preferred_element_type=jnp.float32)         # (H, B) last step

    # --------------- decoder (fully unrolled, state in vregs) ----------------
    wih = refs[r][...]; whh = refs[r + 1][...]; bg = refs[r + 2][...]
    wfc = refs[r + 3][...]; bfc = refs[r + 4][...]
    out_ref = refs[r + 5]
    xt = xt0_ref[...]                                                    # (D, B)
    rows = []
    for t in range(t_out):
        gates = (jnp.dot(wih, xt, preferred_element_type=jnp.float32)
                 + jnp.dot(whh, h, preferred_element_type=jnp.float32)
                 + bg)                                                   # (4H, B)
        i_g = jax.nn.sigmoid(gates[0:H, :])
        f_g = jax.nn.sigmoid(gates[H:2 * H, :])
        g_g = jnp.tanh(gates[2 * H:3 * H, :])
        o_g = jax.nn.sigmoid(gates[3 * H:4 * H, :])
        c = f_g * c + i_g * g_g
        h = o_g * jnp.tanh(c)
        yt = jnp.dot(wfc, h, preferred_element_type=jnp.float32) + bfc   # (D, B)
        rows.append(yt[d_in - 1:d_in, :])        # target feature row (off the chain)
        xt = yt
    # single write-only store for all decoder steps
    out_ref[...] = jnp.concatenate(rows, axis=0) if t_out > 1 else rows[0]


# ----------------------------------------------------------------------------
# One-time host-side packing of PyTorch-shaped weights into kernel operands
# ----------------------------------------------------------------------------
def pack_params(params):
    K = params["tcn"][0]["w1"].shape[-1]
    tcn_ops, dilations, has_ds = [], [], []
    c_in_raw = params["tcn"][0]["w1"].shape[1]
    # Pad the first conv's input channels to a sublane multiple so the stacked
    # single-dot path stays aligned (safe: the padded channels only exist when
    # the residual goes through the 1x1 downsample, never directly).
    first_pad = params["tcn"][0]["has_downsample"] and (c_in_raw % 8 != 0)
    c_in_eff = ((c_in_raw + 7) // 8) * 8 if first_pad else c_in_raw

    for i, blk in enumerate(params["tcn"]):
        c_out, c_prev, _ = blk["w1"].shape
        c_cols = c_in_eff if i == 0 else c_prev
        w1p = jnp.zeros((c_out, c_cols, K), jnp.float32).at[:, :c_prev, :].set(blk["w1"])
        wA = jnp.transpose(w1p, (0, 2, 1)).reshape(c_out, K * c_cols)
        bA = blk["b1"][:, None]
        if blk["has_downsample"]:
            # 1x1 downsample rides in the shift-0 tap block as extra output rows
            wdp = jnp.zeros((c_out, K * c_cols), jnp.float32)
            wdp = wdp.at[:, (K - 1) * c_cols:(K - 1) * c_cols + c_prev].set(blk["wd"])
            wA = jnp.concatenate([wA, wdp], axis=0)            # (2*c_out, K*c_cols)
            bA = jnp.concatenate([bA, blk["bd"][:, None]], axis=0)
        wB = jnp.transpose(blk["w2"], (0, 2, 1)).reshape(c_out, K * c_out)
        bB = blk["b2"][:, None]
        tcn_ops += [wA, bA, wB, bB]
        dilations.append(2 ** i)
        has_ds.append(blk["has_downsample"])

    return {
        "tcn_ops": tcn_ops,
        "wf": params["wf"], "bf": params["bf"][:, None],
        "wt": params["wt"][0], "bt": params["bt"].reshape(1, 1),
        "wih": params["w_ih"], "whh": params["w_hh"],
        "bg": (params["b_ih"] + params["b_hh"])[:, None],
        "wfc": params["w_fc"], "bfc": params["b_fc"][:, None],
        "K": K, "n_blocks": len(params["tcn"]),
        "dilations": tuple(dilations), "has_ds": tuple(has_ds),
        "c_in_eff": c_in_eff,
    }


# ----------------------------------------------------------------------------
# Forward: single fused pallas_call
# ----------------------------------------------------------------------------
def tcn_lstm_forward(packed, historic_inputs, *, dec_in, hidden, output_len):
    # historic_inputs: (B, input_len, encoder_input_size) -> (B, output_len, 1)
    B, L, C_in = historic_inputs.shape
    BL = B * L

    # fold batch onto the lane (time) axis: (C, B*L)
    x2d = jnp.transpose(historic_inputs, (2, 0, 1)).reshape(C_in, BL)
    if packed["c_in_eff"] != C_in:
        x2d = jnp.pad(x2d, ((0, packed["c_in_eff"] - C_in), (0, 0)))

    # decoder seed: last time step, last dec_in features, in (D, B) layout
    xt0 = jnp.transpose(historic_inputs[:, -1, -dec_in:])
    # TODO(synk): the PyTorch dec_in == 1 branch adds an extra unsqueeze on a
    # 2-D xt (shape quirk) and is not exercised here.
    # TODO(synk): covariate=True decoder path not implemented (default False).

    # host-built selection matrices so the encoder head is pure MXU work:
    #   c[b] = feat[:, bL:(b+1)L] @ wt + bt   -> block-diagonal wt columns
    #   h[b] = feat[:, bL + L - 1]            -> one-hot last-step columns
    wt = packed["wt"]
    wt_sel = jnp.zeros((BL, B), jnp.float32)
    h_sel = jnp.zeros((BL, B), jnp.float32)
    for b in range(B):
        wt_sel = wt_sel.at[b * L:(b + 1) * L, b].set(wt)
        h_sel = h_sel.at[b * L + L - 1, b].set(1.0)

    # pre-broadcast decoder biases so no per-step broadcast sits on the
    # recurrent dependency chain
    bg_b = jnp.tile(packed["bg"], (1, B))                      # (4H, B)
    bfc_b = jnp.tile(packed["bfc"], (1, B))                    # (D, B)

    operands = ([x2d, xt0] + packed["tcn_ops"]
                + [packed["wf"], packed["bf"], wt_sel, packed["bt"], h_sel,
                   packed["wih"], packed["whh"], bg_b,
                   packed["wfc"], bfc_b])

    kernel = functools.partial(
        _fused_tcn_lstm_kernel,
        n_blocks=packed["n_blocks"], dilations=packed["dilations"],
        has_ds=packed["has_ds"], K=packed["K"], L=L, B=B,
        hidden=hidden, d_in=dec_in, t_out=output_len)

    vmem = pl.BlockSpec(memory_space=pltpu.MemorySpace.VMEM)
    out = pl.pallas_call(
        kernel,
        out_shape=jax.ShapeDtypeStruct((output_len, B), jnp.float32),
        in_specs=[vmem] * len(operands),
        out_specs=vmem,
    )(*operands)
    return jnp.transpose(out)[:, :, None]                      # (B, output_len, 1)


# ----------------------------------------------------------------------------
# Parameter init (deterministic, PyTorch-shaped)
# ----------------------------------------------------------------------------
def init_params(key, c_in, seq_len, tcn_channels, hidden, dec_in, kernel_size):
    def u(k, shape, scale=0.2):
        return jax.random.uniform(k, shape, jnp.float32, -scale, scale)

    keys = iter(jax.random.split(key, 64))
    params = {"tcn": []}
    in_ch = c_in
    for out_ch in tcn_channels:
        has_ds = in_ch != out_ch
        blk = {
            "w1": u(next(keys), (out_ch, in_ch, kernel_size)),
            "b1": u(next(keys), (out_ch,)),
            "w2": u(next(keys), (out_ch, out_ch, kernel_size)),
            "b2": u(next(keys), (out_ch,)),
            "wd": u(next(keys), (out_ch, in_ch)) if has_ds
                  else jnp.zeros((out_ch, in_ch), jnp.float32),
            "bd": u(next(keys), (out_ch,)) if has_ds
                  else jnp.zeros((out_ch,), jnp.float32),
            "has_downsample": has_ds,
        }
        params["tcn"].append(blk)
        in_ch = out_ch
    params["wf"] = u(next(keys), (hidden, tcn_channels[-1]))
    params["bf"] = u(next(keys), (hidden,))
    params["wt"] = u(next(keys), (1, seq_len))
    params["bt"] = u(next(keys), (1,))
    params["w_ih"] = u(next(keys), (4 * hidden, dec_in))
    params["w_hh"] = u(next(keys), (4 * hidden, hidden))
    params["b_ih"] = u(next(keys), (4 * hidden,))
    params["b_hh"] = u(next(keys), (4 * hidden,))
    params["w_fc"] = u(next(keys), (dec_in, hidden))
    params["b_fc"] = u(next(keys), (dec_in,))
    return params


# ----------------------------------------------------------------------------
# Pure-JAX reference (same math, plain XLA) for a correctness check
# ----------------------------------------------------------------------------
def ref_forward(params, x, *, dec_in, hidden, output_len):
    B, L, _ = x.shape
    y = jnp.transpose(x, (0, 2, 1))
    for i, blk in enumerate(params["tcn"]):
        d = 2 ** i

        def conv(inp, w, b):
            K = w.shape[-1]
            out = jnp.zeros((B, w.shape[0], L), jnp.float32) + b[None, :, None]
            for k in range(K):
                s = d * (K - 1 - k)
                if s == 0:
                    xs = inp
                elif s >= L:
                    xs = jnp.zeros_like(inp)
                else:
                    xs = jnp.concatenate(
                        [jnp.zeros((B, inp.shape[1], s), jnp.float32),
                         inp[:, :, : L - s]], axis=2)
                out = out + jnp.einsum("oc,bcl->bol", w[:, :, k], xs)
            return out

        h1 = jax.nn.relu(conv(y, blk["w1"], blk["b1"]))
        h2 = jax.nn.relu(conv(h1, blk["w2"], blk["b2"]))
        res = (jnp.einsum("oc,bcl->bol", blk["wd"], y) + blk["bd"][None, :, None]
               if blk["has_downsample"] else y)
        y = jax.nn.relu(h2 + res)
    feat = jnp.einsum("hc,bcl->bhl", params["wf"], y) + params["bf"][None, :, None]
    hh = feat[:, :, -1]
    cc = jnp.einsum("bhl,l->bh", feat, params["wt"][0]) + params["bt"][0]
    xt = x[:, -1, -dec_in:]
    outs = []
    for _ in range(output_len):
        gates = (xt @ params["w_ih"].T + hh @ params["w_hh"].T
                 + params["b_ih"] + params["b_hh"])
        i_g = jax.nn.sigmoid(gates[:, :hidden])
        f_g = jax.nn.sigmoid(gates[:, hidden:2 * hidden])
        g_g = jnp.tanh(gates[:, 2 * hidden:3 * hidden])
        o_g = jax.nn.sigmoid(gates[:, 3 * hidden:])
        cc = f_g * cc + i_g * g_g
        hh = o_g * jnp.tanh(cc)
        yo = hh @ params["w_fc"].T + params["b_fc"]
        outs.append(yo[:, -1:])
        xt = yo
    return jnp.stack(outs, axis=1)                             # (B, T, 1)


# ----------------------------------------------------------------------------
if __name__ == "__main__":
    B, L, C_IN = 2, 16, 4          # batch, input_len, encoder_input_size
    TCN_CH = [8, 8]                # tcn_num_channels
    H = 32                         # lstm_num_hidden
    D = 2                          # decoder_input_size
    T_OUT = 8                      # output_len
    K = 2                          # tcn_kernel_size

    key = jax.random.PRNGKey(0)
    k_params, k_x = jax.random.split(key)
    params = init_params(k_params, C_IN, L, TCN_CH, H, D, K)
    packed = pack_params(params)   # one-time weight packing for the fused kernel
    historic_inputs = jax.random.normal(k_x, (B, L, C_IN), jnp.float32)

    out = tcn_lstm_forward(packed, historic_inputs,
                           dec_in=D, hidden=H, output_len=T_OUT)
    out = jax.block_until_ready(out)
    assert out.shape == (B, T_OUT, 1), out.shape

    ref = ref_forward(params, historic_inputs, dec_in=D, hidden=H, output_len=T_OUT)
    assert jnp.allclose(out, ref, atol=1e-3, rtol=1e-3), (
        float(jnp.max(jnp.abs(out - ref))))

    print("KERNEL_OK")
</pallas_src>

<mosaic_0001>
module attributes {stable_mosaic.version = 11 : i64} {
  func.func @_fused_tcn_lstm_kernel(%arg0: memref<8x32xf32, #tpu.memory_space<vmem>>, %arg1: memref<2x2xf32, #tpu.memory_space<vmem>>, %arg2: memref<16x16xf32, #tpu.memory_space<vmem>>, %arg3: memref<16x1xf32, #tpu.memory_space<vmem>>, %arg4: memref<8x16xf32, #tpu.memory_space<vmem>>, %arg5: memref<8x1xf32, #tpu.memory_space<vmem>>, %arg6: memref<8x16xf32, #tpu.memory_space<vmem>>, %arg7: memref<8x1xf32, #tpu.memory_space<vmem>>, %arg8: memref<8x16xf32, #tpu.memory_space<vmem>>, %arg9: memref<8x1xf32, #tpu.memory_space<vmem>>, %arg10: memref<32x8xf32, #tpu.memory_space<vmem>>, %arg11: memref<32x1xf32, #tpu.memory_space<vmem>>, %arg12: memref<32x2xf32, #tpu.memory_space<vmem>>, %arg13: memref<1x1xf32, #tpu.memory_space<vmem>>, %arg14: memref<32x2xf32, #tpu.memory_space<vmem>>, %arg15: memref<128x2xf32, #tpu.memory_space<vmem>>, %arg16: memref<128x32xf32, #tpu.memory_space<vmem>>, %arg17: memref<128x2xf32, #tpu.memory_space<vmem>>, %arg18: memref<2x32xf32, #tpu.memory_space<vmem>>, %arg19: memref<2x2xf32, #tpu.memory_space<vmem>>, %arg20: memref<8x2xf32, #tpu.memory_space<vmem>>) attributes {dimension_semantics = [], scalar_prefetch = 0 : i64, scratch_operands = 0 : i64, tpu.core_type = #tpu.core_type<tc>} {
    %c0 = arith.constant 0 : index
    %c0_0 = arith.constant 0 : index
    %0 = vector.load %arg0[%c0, %c0_0] : memref<8x32xf32, #tpu.memory_space<vmem>>, vector<8x32xf32>
    %c0_1 = arith.constant 0 : index
    %c0_2 = arith.constant 0 : index
    %1 = vector.load %arg2[%c0_1, %c0_2] : memref<16x16xf32, #tpu.memory_space<vmem>>, vector<16x16xf32>
    %c0_3 = arith.constant 0 : index
    %c0_4 = arith.constant 0 : index
    %2 = vector.load %arg3[%c0_3, %c0_4] : memref<16x1xf32, #tpu.memory_space<vmem>>, vector<16x1xf32>
    %c0_5 = arith.constant 0 : index
    %c0_6 = arith.constant 0 : index
    %3 = vector.load %arg4[%c0_5, %c0_6] : memref<8x16xf32, #tpu.memory_space<vmem>>, vector<8x16xf32>
    %c0_7 = arith.constant 0 : index
    %c0_8 = arith.constant 0 : index
    %4 = vector.load %arg5[%c0_7, %c0_8] : memref<8x1xf32, #tpu.memory_space<vmem>>, vector<8x1xf32>
    %cst = arith.constant 0.000000e+00 : f32
    %5 = vector.broadcast %cst : f32 to vector<8x1xf32>
    %6 = vector.extract_strided_slice %0 {offsets = [0, 0], sizes = [8, 31], strides = [1, 1]} : vector<8x32xf32> to vector<8x31xf32>
    %7 = tpu.concatenate %5, %6 in 1 : vector<8x1xf32>, vector<8x31xf32> -> vector<8x32xf32>
    %8 = tpu.iota {dimensions = array<i32: 1>} : vector<8x32xi32>
    %c16_i32 = arith.constant 16 : i32
    %c0_i32 = arith.constant 0 : i32
    %9 = arith.cmpi eq, %c16_i32, %c0_i32 : i32
    %c1_i32 = arith.constant 1 : i32
    %10 = arith.select %9, %c1_i32, %c16_i32 : i32
    %11 = vector.broadcast %10 : i32 to vector<8x32xi32>
    %12 = arith.remsi %8, %11 : vector<8x32xi32>
    %c0_i32_9 = arith.constant 0 : i32
    %13 = vector.broadcast %c0_i32_9 : i32 to vector<8x32xi32>
    %14 = arith.cmpi ne, %12, %13 : vector<8x32xi32>
    %c0_i32_10 = arith.constant 0 : i32
    %15 = vector.broadcast %c0_i32_10 : i32 to vector<8x32xi32>
    %16 = arith.cmpi slt, %12, %15 : vector<8x32xi32>
    %c0_i32_11 = arith.constant 0 : i32
    %17 = arith.cmpi slt, %10, %c0_i32_11 : i32
    %18 = vector.broadcast %17 : i1 to vector<8x32xi1>
    %19 = vector.broadcast %18 : vector<8x32xi1> to vector<8x32xi1>
    %20 = arith.xori %16, %19 : vector<8x32xi1>
    %21 = arith.andi %20, %14 : vector<8x32xi1>
    %22 = vector.broadcast %10 : i32 to vector<8x32xi32>
    %23 = arith.addi %12, %22 : vector<8x32xi32>
    %24 = arith.select %21, %23, %12 : vector<8x32xi1>, vector<8x32xi32>
    %c1_i32_12 = arith.constant 1 : i32
    %25 = vector.broadcast %c1_i32_12 : i32 to vector<8x32xi32>
    %26 = arith.cmpi sge, %24, %25 : vector<8x32xi32>
    %cst_13 = arith.constant 0.000000e+00 : f32
    %27 = vector.broadcast %cst_13 : f32 to vector<8x32xf32>
    %28 = arith.select %26, %7, %27 : vector<8x32xi1>, vector<8x32xf32>
    %29 = tpu.concatenate %28, %0 in 0 : vector<8x32xf32>, vector<8x32xf32> -> vector<16x32xf32>
    %cst_14 = arith.constant dense<0.000000e+00> : vector<16x32xf32>
    %30 = tpu.matmul %1, %29, %cst_14 {dimension_numbers = #tpu.dot_dimension_numbers<[1], [0], [0], [1], [0, 0, 1, 1], [], []>} : vector<16x16xf32>, vector<16x32xf32>, vector<16x32xf32> -> vector<16x32xf32>
    %31 = vector.broadcast %2 : vector<16x1xf32> to vector<16x32xf32>
    %32 = arith.addf %30, %31 : vector<16x32xf32>
    %33 = vector.extract_strided_slice %32 {offsets = [0, 0], sizes = [8, 32], strides = [1, 1]} : vector<16x32xf32> to vector<8x32xf32>
    %cst_15 = arith.constant 0.000000e+00 : f32
    %34 = vector.broadcast %cst_15 : f32 to vector<8x32xf32>
    %35 = arith.maximumf %33, %34 : vector<8x32xf32>
    %36 = vector.extract_strided_slice %32 {offsets = [8, 0], sizes = [8, 32], strides = [1, 1]} : vector<16x32xf32> to vector<8x32xf32>
    %cst_16 = arith.constant 0.000000e+00 : f32
    %37 = vector.broadcast %cst_16 : f32 to vector<8x1xf32>
    %38 = vector.extract_strided_slice %35 {offsets = [0, 0], sizes = [8, 31], strides = [1, 1]} : vector<8x32xf32> to vector<8x31xf32>
    %39 = tpu.concatenate %37, %38 in 1 : vector<8x1xf32>, vector<8x31xf32> -> vector<8x32xf32>
    %c1_i32_17 = arith.constant 1 : i32
    %40 = vector.broadcast %c1_i32_17 : i32 to vector<8x32xi32>
    %41 = arith.cmpi sge, %24, %40 : vector<8x32xi32>
    %cst_18 = arith.constant 0.000000e+00 : f32
    %42 = vector.broadcast %cst_18 : f32 to vector<8x32xf32>
    %43 = arith.select %41, %39, %42 : vector<8x32xi1>, vector<8x32xf32>
    %44 = tpu.concatenate %43, %35 in 0 : vector<8x32xf32>, vector<8x32xf32> -> vector<16x32xf32>
    %cst_19 = arith.constant dense<0.000000e+00> : vector<8x32xf32>
    %45 = tpu.matmul %3, %44, %cst_19 {dimension_numbers = #tpu.dot_dimension_numbers<[1], [0], [0], [1], [0, 0, 1, 1], [], []>} : vector<8x16xf32>, vector<16x32xf32>, vector<8x32xf32> -> vector<8x32xf32>
    %46 = vector.broadcast %4 : vector<8x1xf32> to vector<8x32xf32>
    %47 = arith.addf %45, %46 : vector<8x32xf32>
    %cst_20 = arith.constant 0.000000e+00 : f32
    %48 = vector.broadcast %cst_20 : f32 to vector<8x32xf32>
    %49 = arith.maximumf %47, %48 : vector<8x32xf32>
    %50 = arith.addf %49, %36 : vector<8x32xf32>
    %cst_21 = arith.constant 0.000000e+00 : f32
    %51 = vector.broadcast %cst_21 : f32 to vector<8x32xf32>
    %52 = arith.maximumf %50, %51 : vector<8x32xf32>
    %c0_22 = arith.constant 0 : index
    %c0_23 = arith.constant 0 : index
    %53 = vector.load %arg6[%c0_22, %c0_23] : memref<8x16xf32, #tpu.memory_space<vmem>>, vector<8x16xf32>
    %c0_24 = arith.constant 0 : index
    %c0_25 = arith.constant 0 : index
    %54 = vector.load %arg7[%c0_24, %c0_25] : memref<8x1xf32, #tpu.memory_space<vmem>>, vector<8x1xf32>
    %c0_26 = arith.constant 0 : index
    %c0_27 = arith.constant 0 : index
    %55 = vector.load %arg8[%c0_26, %c0_27] : memref<8x16xf32, #tpu.memory_space<vmem>>, vector<8x16xf32>
    %c0_28 = arith.constant 0 : index
    %c0_29 = arith.constant 0 : index
    %56 = vector.load %arg9[%c0_28, %c0_29] : memref<8x1xf32, #tpu.memory_space<vmem>>, vector<8x1xf32>
    %cst_30 = arith.constant 0.000000e+00 : f32
    %57 = vector.broadcast %cst_30 : f32 to vector<8x2xf32>
    %58 = vector.extract_strided_slice %52 {offsets = [0, 0], sizes = [8, 30], strides = [1, 1]} : vector<8x32xf32> to vector<8x30xf32>
    %59 = tpu.concatenate %57, %58 in 1 : vector<8x2xf32>, vector<8x30xf32> -> vector<8x32xf32>
    %c2_i32 = arith.constant 2 : i32
    %60 = vector.broadcast %c2_i32 : i32 to vector<8x32xi32>
    %61 = arith.cmpi sge, %24, %60 : vector<8x32xi32>
    %cst_31 = arith.constant 0.000000e+00 : f32
    %62 = vector.broadcast %cst_31 : f32 to vector<8x32xf32>
    %63 = arith.select %61, %59, %62 : vector<8x32xi1>, vector<8x32xf32>
    %64 = tpu.concatenate %63, %52 in 0 : vector<8x32xf32>, vector<8x32xf32> -> vector<16x32xf32>
    %cst_32 = arith.constant dense<0.000000e+00> : vector<8x32xf32>
    %65 = tpu.matmul %53, %64, %cst_32 {dimension_numbers = #tpu.dot_dimension_numbers<[1], [0], [0], [1], [0, 0, 1, 1], [], []>} : vector<8x16xf32>, vector<16x32xf32>, vector<8x32xf32> -> vector<8x32xf32>
    %66 = vector.broadcast %54 : vector<8x1xf32> to vector<8x32xf32>
    %67 = arith.addf %65, %66 : vector<8x32xf32>
    %cst_33 = arith.constant 0.000000e+00 : f32
    %68 = vector.broadcast %cst_33 : f32 to vector<8x32xf32>
    %69 = arith.maximumf %67, %68 : vector<8x32xf32>
    %cst_34 = arith.constant 0.000000e+00 : f32
    %70 = vector.broadcast %cst_34 : f32 to vector<8x2xf32>
    %71 = vector.extract_strided_slice %69 {offsets = [0, 0], sizes = [8, 30], strides = [1, 1]} : vector<8x32xf32> to vector<8x30xf32>
    %72 = tpu.concatenate %70, %71 in 1 : vector<8x2xf32>, vector<8x30xf32> -> vector<8x32xf32>
    %c2_i32_35 = arith.constant 2 : i32
    %73 = vector.broadcast %c2_i32_35 : i32 to vector<8x32xi32>
    %74 = arith.cmpi sge, %24, %73 : vector<8x32xi32>
    %cst_36 = arith.constant 0.000000e+00 : f32
    %75 = vector.broadcast %cst_36 : f32 to vector<8x32xf32>
    %76 = arith.select %74, %72, %75 : vector<8x32xi1>, vector<8x32xf32>
    %77 = tpu.concatenate %76, %69 in 0 : vector<8x32xf32>, vector<8x32xf32> -> vector<16x32xf32>
    %cst_37 = arith.constant dense<0.000000e+00> : vector<8x32xf32>
    %78 = tpu.matmul %55, %77, %cst_37 {dimension_numbers = #tpu.dot_dimension_numbers<[1], [0], [0], [1], [0, 0, 1, 1], [], []>} : vector<8x16xf32>, vector<16x32xf32>, vector<8x32xf32> -> vector<8x32xf32>
    %79 = vector.broadcast %56 : vector<8x1xf32> to vector<8x32xf32>
    %80 = arith.addf %78, %79 : vector<8x32xf32>
    %cst_38 = arith.constant 0.000000e+00 : f32
    %81 = vector.broadcast %cst_38 : f32 to vector<8x32xf32>
    %82 = arith.maximumf %80, %81 : vector<8x32xf32>
    %83 = arith.addf %82, %52 : vector<8x32xf32>
    %cst_39 = arith.constant 0.000000e+00 : f32
    %84 = vector.broadcast %cst_39 : f32 to vector<8x32xf32>
    %85 = arith.maximumf %83, %84 : vector<8x32xf32>
    %c0_40 = arith.constant 0 : index
    %c0_41 = arith.constant 0 : index
    %86 = vector.load %arg10[%c0_40, %c0_41] : memref<32x8xf32, #tpu.memory_space<vmem>>, vector<32x8xf32>
    %c0_42 = arith.constant 0 : index
    %c0_43 = arith.constant 0 : index
    %87 = vector.load %arg11[%c0_42, %c0_43] : memref<32x1xf32, #tpu.memory_space<vmem>>, vector<32x1xf32>
    %c0_44 = arith.constant 0 : index
    %c0_45 = arith.constant 0 : index
    %88 = vector.load %arg12[%c0_44, %c0_45] : memref<32x2xf32, #tpu.memory_space<vmem>>, vector<32x2xf32>
    %c0_46 = arith.constant 0 : index
    %c0_47 = arith.constant 0 : index
    %89 = vector.load %arg13[%c0_46, %c0_47] : memref<1x1xf32, #tpu.memory_space<vmem>>, vector<1x1xf32>
    %c0_48 = arith.constant 0 : index
    %c0_49 = arith.constant 0 : index
    %90 = vector.load %arg14[%c0_48, %c0_49] : memref<32x2xf32, #tpu.memory_space<vmem>>, vector<32x2xf32>
    %cst_50 = arith.constant dense<0.000000e+00> : vector<32x32xf32>
    %91 = tpu.matmul %86, %85, %cst_50 {dimension_numbers = #tpu.dot_dimension_numbers<[1], [0], [0], [1], [0, 0, 1, 1], [], []>} : vector<32x8xf32>, vector<8x32xf32>, vector<32x32xf32> -> vector<32x32xf32>
    %92 = vector.broadcast %87 : vector<32x1xf32> to vector<32x32xf32>
    %93 = arith.addf %91, %92 : vector<32x32xf32>
    %cst_51 = arith.constant dense<0.000000e+00> : vector<32x2xf32>
    %94 = tpu.matmul %93, %88, %cst_51 {dimension_numbers = #tpu.dot_dimension_numbers<[1], [0], [0], [1], [0, 0, 1, 1], [], []>} : vector<32x32xf32>, vector<32x2xf32>, vector<32x2xf32> -> vector<32x2xf32>
    %95 = vector.broadcast %89 : vector<1x1xf32> to vector<32x2xf32>
    %96 = arith.addf %94, %95 : vector<32x2xf32>
    %cst_52 = arith.constant dense<0.000000e+00> : vector<32x2xf32>
    %97 = tpu.matmul %93, %90, %cst_52 {dimension_numbers = #tpu.dot_dimension_numbers<[1], [0], [0], [1], [0, 0, 1, 1], [], []>} : vector<32x32xf32>, vector<32x2xf32>, vector<32x2xf32> -> vector<32x2xf32>
    %c0_53 = arith.constant 0 : index
    %c0_54 = arith.constant 0 : index
    %98 = vector.load %arg15[%c0_53, %c0_54] : memref<128x2xf32, #tpu.memory_space<vmem>>, vector<128x2xf32>
    %c0_55 = arith.constant 0 : index
    %c0_56 = arith.constant 0 : index
    %99 = vector.load %arg16[%c0_55, %c0_56] : memref<128x32xf32, #tpu.memory_space<vmem>>, vector<128x32xf32>
    %c0_57 = arith.constant 0 : index
    %c0_58 = arith.constant 0 : index
    %100 = vector.load %arg17[%c0_57, %c0_58] : memref<128x2xf32, #tpu.memory_space<vmem>>, vector<128x2xf32>
    %c0_59 = arith.constant 0 : index
    %c0_60 = arith.constant 0 : index
    %101 = vector.load %arg18[%c0_59, %c0_60] : memref<2x32xf32, #tpu.memory_space<vmem>>, vector<2x32xf32>
    %c0_61 = arith.constant 0 : index
    %c0_62 = arith.constant 0 : index
    %102 = vector.load %arg19[%c0_61, %c0_62] : memref<2x2xf32, #tpu.memory_space<vmem>>, vector<2x2xf32>
    %c0_63 = arith.constant 0 : index
    %c0_64 = arith.constant 0 : index
    %103 = vector.load %arg1[%c0_63, %c0_64] : memref<2x2xf32, #tpu.memory_space<vmem>>, vector<2x2xf32>
    %cst_65 = arith.constant dense<0.000000e+00> : vector<128x2xf32>
    %104 = tpu.matmul %98, %103, %cst_65 {dimension_numbers = #tpu.dot_dimension_numbers<[1], [0], [0], [1], [0, 0, 1, 1], [], []>} : vector<128x2xf32>, vector<2x2xf32>, vector<128x2xf32> -> vector<128x2xf32>
    %cst_66 = arith.constant dense<0.000000e+00> : vector<128x2xf32>
    %105 = tpu.matmul %99, %97, %cst_66 {dimension_numbers = #tpu.dot_dimension_numbers<[1], [0], [0], [1], [0, 0, 1, 1], [], []>} : vector<128x32xf32>, vector<32x2xf32>, vector<128x2xf32> -> vector<128x2xf32>
    %106 = arith.addf %104, %105 : vector<128x2xf32>
    %107 = arith.addf %106, %100 : vector<128x2xf32>
    %108 = vector.extract_strided_slice %107 {offsets = [0, 0], sizes = [32, 2], strides = [1, 1]} : vector<128x2xf32> to vector<32x2xf32>
    %109 = arith.negf %108 : vector<32x2xf32>
    %110 = math.exp %109 : vector<32x2xf32>
    %cst_67 = arith.constant 1.000000e+00 : f32
    %111 = vector.broadcast %cst_67 : f32 to vector<32x2xf32>
    %112 = arith.addf %111, %110 : vector<32x2xf32>
    %113 = arith.divf %111, %112 : vector<32x2xf32>
    %114 = vector.extract_strided_slice %107 {offsets = [32, 0], sizes = [32, 2], strides = [1, 1]} : vector<128x2xf32> to vector<32x2xf32>
    %115 = arith.negf %114 : vector<32x2xf32>
    %116 = math.exp %115 : vector<32x2xf32>
    %cst_68 = arith.constant 1.000000e+00 : f32
    %117 = vector.broadcast %cst_68 : f32 to vector<32x2xf32>
    %118 = arith.addf %117, %116 : vector<32x2xf32>
    %119 = arith.divf %117, %118 : vector<32x2xf32>
    %120 = vector.extract_strided_slice %107 {offsets = [64, 0], sizes = [32, 2], strides = [1, 1]} : vector<128x2xf32> to vector<32x2xf32>
    %121 = math.tanh %120 : vector<32x2xf32>
    %122 = vector.extract_strided_slice %107 {offsets = [96, 0], sizes = [32, 2], strides = [1, 1]} : vector<128x2xf32> to vector<32x2xf32>
    %123 = arith.negf %122 : vector<32x2xf32>
    %124 = math.exp %123 : vector<32x2xf32>
    %cst_69 = arith.constant 1.000000e+00 : f32
    %125 = vector.broadcast %cst_69 : f32 to vector<32x2xf32>
    %126 = arith.addf %125, %124 : vector<32x2xf32>
    %127 = arith.divf %125, %126 : vector<32x2xf32>
    %128 = arith.mulf %119, %96 : vector<32x2xf32>
    %129 = arith.mulf %113, %121 : vector<32x2xf32>
    %130 = arith.addf %128, %129 : vector<32x2xf32>
    %131 = math.tanh %130 : vector<32x2xf32>
    %132 = arith.mulf %127, %131 : vector<32x2xf32>
    %cst_70 = arith.constant dense<0.000000e+00> : vector<2x2xf32>
    %133 = tpu.matmul %101, %132, %cst_70 {dimension_numbers = #tpu.dot_dimension_numbers<[1], [0], [0], [1], [0, 0, 1, 1], [], []>} : vector<2x32xf32>, vector<32x2xf32>, vector<2x2xf32> -> vector<2x2xf32>
    %134 = arith.addf %133, %102 : vector<2x2xf32>
    %135 = vector.extract_strided_slice %134 {offsets = [1, 0], sizes = [1, 2], strides = [1, 1]} : vector<2x2xf32> to vector<1x2xf32>
    %cst_71 = arith.constant dense<0.000000e+00> : vector<128x2xf32>
    %136 = tpu.matmul %98, %134, %cst_71 {dimension_numbers = #tpu.dot_dimension_numbers<[1], [0], [0], [1], [0, 0, 1, 1], [], []>} : vector<128x2xf32>, vector<2x2xf32>, vector<128x2xf32> -> vector<128x2xf32>
    %cst_72 = arith.constant dense<0.000000e+00> : vector<128x2xf32>
    %137 = tpu.matmul %99, %132, %cst_72 {dimension_numbers = #tpu.dot_dimension_numbers<[1], [0], [0], [1], [0, 0, 1, 1], [], []>} : vector<128x32xf32>, vector<32x2xf32>, vector<128x2xf32> -> vector<128x2xf32>
    %138 = arith.addf %136, %137 : vector<128x2xf32>
    %139 = arith.addf %138, %100 : vector<128x2xf32>
    %140 = vector.extract_strided_slice %139 {offsets = [0, 0], sizes = [32, 2], strides = [1, 1]} : vector<128x2xf32> to vector<32x2xf32>
    %141 = arith.negf %140 : vector<32x2xf32>
    %142 = math.exp %141 : vector<32x2xf32>
    %cst_73 = arith.constant 1.000000e+00 : f32
    %143 = vector.broadcast %cst_73 : f32 to vector<32x2xf32>
    %144 = arith.addf %143, %142 : vector<32x2xf32>
    %145 = arith.divf %143, %144 : vector<32x2xf32>
    %146 = vector.extract_strided_slice %139 {offsets = [32, 0], sizes = [32, 2], strides = [1, 1]} : vector<128x2xf32> to vector<32x2xf32>
    %147 = arith.negf %146 : vector<32x2xf32>
    %148 = math.exp %147 : vector<32x2xf32>
    %cst_74 = arith.constant 1.000000e+00 : f32
    %149 = vector.broadcast %cst_74 : f32 to vector<32x2xf32>
    %150 = arith.addf %149, %148 : vector<32x2xf32>
    %151 = arith.divf %149, %150 : vector<32x2xf32>
    %152 = vector.extract_strided_slice %139 {offsets = [64, 0], sizes = [32, 2], strides = [1, 1]} : vector<128x2xf32> to vector<32x2xf32>
    %153 = math.tanh %152 : vector<32x2xf32>
    %154 = vector.extract_strided_slice %139 {offsets = [96, 0], sizes = [32, 2], strides = [1, 1]} : vector<128x2xf32> to vector<32x2xf32>
    %155 = arith.negf %154 : vector<32x2xf32>
    %156 = math.exp %155 : vector<32x2xf32>
    %cst_75 = arith.constant 1.000000e+00 : f32
    %157 = vector.broadcast %cst_75 : f32 to vector<32x2xf32>
    %158 = arith.addf %157, %156 : vector<32x2xf32>
    %159 = arith.divf %157, %158 : vector<32x2xf32>
    %160 = arith.mulf %151, %130 : vector<32x2xf32>
    %161 = arith.mulf %145, %153 : vector<32x2xf32>
    %162 = arith.addf %160, %161 : vector<32x2xf32>
    %163 = math.tanh %162 : vector<32x2xf32>
    %164 = arith.mulf %159, %163 : vector<32x2xf32>
    %cst_76 = arith.constant dense<0.000000e+00> : vector<2x2xf32>
    %165 = tpu.matmul %101, %164, %cst_76 {dimension_numbers = #tpu.dot_dimension_numbers<[1], [0], [0], [1], [0, 0, 1, 1], [], []>} : vector<2x32xf32>, vector<32x2xf32>, vector<2x2xf32> -> vector<2x2xf32>
    %166 = arith.addf %165, %102 : vector<2x2xf32>
    %167 = vector.extract_strided_slice %166 {offsets = [1, 0], sizes = [1, 2], strides = [1, 1]} : vector<2x2xf32> to vector<1x2xf32>
    %cst_77 = arith.constant dense<0.000000e+00> : vector<128x2xf32>
    %168 = tpu.matmul %98, %166, %cst_77 {dimension_numbers = #tpu.dot_dimension_numbers<[1], [0], [0], [1], [0, 0, 1, 1], [], []>} : vector<128x2xf32>, vector<2x2xf32>, vector<128x2xf32> -> vector<128x2xf32>
    %cst_78 = arith.constant dense<0.000000e+00> : vector<128x2xf32>
    %169 = tpu.matmul %99, %164, %cst_78 {dimension_numbers = #tpu.dot_dimension_numbers<[1], [0], [0], [1], [0, 0, 1, 1], [], []>} : vector<128x32xf32>, vector<32x2xf32>, vector<128x2xf32> -> vector<128x2xf32>
    %170 = arith.addf %168, %169 : vector<128x2xf32>
    %171 = arith.addf %170, %100 : vector<128x2xf32>
    %172 = vector.extract_strided_slice %171 {offsets = [0, 0], sizes = [32, 2], strides = [1, 1]} : vector<128x2xf32> to vector<32x2xf32>
    %173 = arith.negf %172 : vector<32x2xf32>
    %174 = math.exp %173 : vector<32x2xf32>
    %cst_79 = arith.constant 1.000000e+00 : f32
    %175 = vector.broadcast %cst_79 : f32 to vector<32x2xf32>
    %176 = arith.addf %175, %174 : vector<32x2xf32>
    %177 = arith.divf %175, %176 : vector<32x2xf32>
    %178 = vector.extract_strided_slice %171 {offsets = [32, 0], sizes = [32, 2], strides = [1, 1]} : vector<128x2xf32> to vector<32x2xf32>
    %179 = arith.negf %178 : vector<32x2xf32>
    %180 = math.exp %179 : vector<32x2xf32>
    %cst_80 = arith.constant 1.000000e+00 : f32
    %181 = vector.broadcast %cst_80 : f32 to vector<32x2xf32>
    %182 = arith.addf %181, %180 : vector<32x2xf32>
    %183 = arith.divf %181, %182 : vector<32x2xf32>
    %184 = vector.extract_strided_slice %171 {offsets = [64, 0], sizes = [32, 2], strides = [1, 1]} : vector<128x2xf32> to vector<32x2xf32>
    %185 = math.tanh %184 : vector<32x2xf32>
    %186 = vector.extract_strided_slice %171 {offsets = [96, 0], sizes = [32, 2], strides = [1, 1]} : vector<128x2xf32> to vector<32x2xf32>
    %187 = arith.negf %186 : vector<32x2xf32>
    %188 = math.exp %187 : vector<32x2xf32>
    %cst_81 = arith.constant 1.000000e+00 : f32
    %189 = vector.broadcast %cst_81 : f32 to vector<32x2xf32>
    %190 = arith.addf %189, %188 : vector<32x2xf32>
    %191 = arith.divf %189, %190 : vector<32x2xf32>
    %192 = arith.mulf %183, %162 : vector<32x2xf32>
    %193 = arith.mulf %177, %185 : vector<32x2xf32>
    %194 = arith.addf %192, %193 : vector<32x2xf32>
    %195 = math.tanh %194 : vector<32x2xf32>
    %196 = arith.mulf %191, %195 : vector<32x2xf32>
    %cst_82 = arith.constant dense<0.000000e+00> : vector<2x2xf32>
    %197 = tpu.matmul %101, %196, %cst_82 {dimension_numbers = #tpu.dot_dimension_numbers<[1], [0], [0], [1], [0, 0, 1, 1], [], []>} : vector<2x32xf32>, vector<32x2xf32>, vector<2x2xf32> -> vector<2x2xf32>
    %198 = arith.addf %197, %102 : vector<2x2xf32>
    %199 = vector.extract_strided_slice %198 {offsets = [1, 0], sizes = [1, 2], strides = [1, 1]} : vector<2x2xf32> to vector<1x2xf32>
    %cst_83 = arith.constant dense<0.000000e+00> : vector<128x2xf32>
    %200 = tpu.matmul %98, %198, %cst_83 {dimension_numbers = #tpu.dot_dimension_numbers<[1], [0], [0], [1], [0, 0, 1, 1], [], []>} : vector<128x2xf32>, vector<2x2xf32>, vector<128x2xf32> -> vector<128x2xf32>
    %cst_84 = arith.constant dense<0.000000e+00> : vector<128x2xf32>
    %201 = tpu.matmul %99, %196, %cst_84 {dimension_numbers = #tpu.dot_dimension_numbers<[1], [0], [0], [1], [0, 0, 1, 1], [], []>} : vector<128x32xf32>, vector<32x2xf32>, vector<128x2xf32> -> vector<128x2xf32>
    %202 = arith.addf %200, %201 : vector<128x2xf32>
    %203 = arith.addf %202, %100 : vector<128x2xf32>
    %204 = vector.extract_strided_slice %203 {offsets = [0, 0], sizes = [32, 2], strides = [1, 1]} : vector<128x2xf32> to vector<32x2xf32>
    %205 = arith.negf %204 : vector<32x2xf32>
    %206 = math.exp %205 : vector<32x2xf32>
    %cst_85 = arith.constant 1.000000e+00 : f32
    %207 = vector.broadcast %cst_85 : f32 to vector<32x2xf32>
    %208 = arith.addf %207, %206 : vector<32x2xf32>
    %209 = arith.divf %207, %208 : vector<32x2xf32>
    %210 = vector.extract_strided_slice %203 {offsets = [32, 0], sizes = [32, 2], strides = [1, 1]} : vector<128x2xf32> to vector<32x2xf32>
    %211 = arith.negf %210 : vector<32x2xf32>
    %212 = math.exp %211 : vector<32x2xf32>
    %cst_86 = arith.constant 1.000000e+00 : f32
    %213 = vector.broadcast %cst_86 : f32 to vector<32x2xf32>
    %214 = arith.addf %213, %212 : vector<32x2xf32>
    %215 = arith.divf %213, %214 : vector<32x2xf32>
    %216 = vector.extract_strided_slice %203 {offsets = [64, 0], sizes = [32, 2], strides = [1, 1]} : vector<128x2xf32> to vector<32x2xf32>
    %217 = math.tanh %216 : vector<32x2xf32>
    %218 = vector.extract_strided_slice %203 {offsets = [96, 0], sizes = [32, 2], strides = [1, 1]} : vector<128x2xf32> to vector<32x2xf32>
    %219 = arith.negf %218 : vector<32x2xf32>
    %220 = math.exp %219 : vector<32x2xf32>
    %cst_87 = arith.constant 1.000000e+00 : f32
    %221 = vector.broadcast %cst_87 : f32 to vector<32x2xf32>
    %222 = arith.addf %221, %220 : vector<32x2xf32>
    %223 = arith.divf %221, %222 : vector<32x2xf32>
    %224 = arith.mulf %215, %194 : vector<32x2xf32>
    %225 = arith.mulf %209, %217 : vector<32x2xf32>
    %226 = arith.addf %224, %225 : vector<32x2xf32>
    %227 = math.tanh %226 : vector<32x2xf32>
    %228 = arith.mulf %223, %227 : vector<32x2xf32>
    %cst_88 = arith.constant dense<0.000000e+00> : vector<2x2xf32>
    %229 = tpu.matmul %101, %228, %cst_88 {dimension_numbers = #tpu.dot_dimension_numbers<[1], [0], [0], [1], [0, 0, 1, 1], [], []>} : vector<2x32xf32>, vector<32x2xf32>, vector<2x2xf32> -> vector<2x2xf32>
    %230 = arith.addf %229, %102 : vector<2x2xf32>
    %231 = vector.extract_strided_slice %230 {offsets = [1, 0], sizes = [1, 2], strides = [1, 1]} : vector<2x2xf32> to vector<1x2xf32>
    %cst_89 = arith.constant dense<0.000000e+00> : vector<128x2xf32>
    %232 = tpu.matmul %98, %230, %cst_89 {dimension_numbers = #tpu.dot_dimension_numbers<[1], [0], [0], [1], [0, 0, 1, 1], [], []>} : vector<128x2xf32>, vector<2x2xf32>, vector<128x2xf32> -> vector<128x2xf32>
    %cst_90 = arith.constant dense<0.000000e+00> : vector<128x2xf32>
    %233 = tpu.matmul %99, %228, %cst_90 {dimension_numbers = #tpu.dot_dimension_numbers<[1], [0], [0], [1], [0, 0, 1, 1], [], []>} : vector<128x32xf32>, vector<32x2xf32>, vector<128x2xf32> -> vector<128x2xf32>
    %234 = arith.addf %232, %233 : vector<128x2xf32>
    %235 = arith.addf %234, %100 : vector<128x2xf32>
    %236 = vector.extract_strided_slice %235 {offsets = [0, 0], sizes = [32, 2], strides = [1, 1]} : vector<128x2xf32> to vector<32x2xf32>
    %237 = arith.negf %236 : vector<32x2xf32>
    %238 = math.exp %237 : vector<32x2xf32>
    %cst_91 = arith.constant 1.000000e+00 : f32
    %239 = vector.broadcast %cst_91 : f32 to vector<32x2xf32>
    %240 = arith.addf %239, %238 : vector<32x2xf32>
    %241 = arith.divf %239, %240 : vector<32x2xf32>
    %242 = vector.extract_strided_slice %235 {offsets = [32, 0], sizes = [32, 2], strides = [1, 1]} : vector<128x2xf32> to vector<32x2xf32>
    %243 = arith.negf %242 : vector<32x2xf32>
    %244 = math.exp %243 : vector<32x2xf32>
    %cst_92 = arith.constant 1.000000e+00 : f32
    %245 = vector.broadcast %cst_92 : f32 to vector<32x2xf32>
    %246 = arith.addf %245, %244 : vector<32x2xf32>
    %247 = arith.divf %245, %246 : vector<32x2xf32>
    %248 = vector.extract_strided_slice %235 {offsets = [64, 0], sizes = [32, 2], strides = [1, 1]} : vector<128x2xf32> to vector<32x2xf32>
    %249 = math.tanh %248 : vector<32x2xf32>
    %250 = vector.extract_strided_slice %235 {offsets = [96, 0], sizes = [32, 2], strides = [1, 1]} : vector<128x2xf32> to vector<32x2xf32>
    %251 = arith.negf %250 : vector<32x2xf32>
    %252 = math.exp %251 : vector<32x2xf32>
    %cst_93 = arith.constant 1.000000e+00 : f32
    %253 = vector.broadcast %cst_93 : f32 to vector<32x2xf32>
    %254 = arith.addf %253, %252 : vector<32x2xf32>
    %255 = arith.divf %253, %254 : vector<32x2xf32>
    %256 = arith.mulf %247, %226 : vector<32x2xf32>
    %257 = arith.mulf %241, %249 : vector<32x2xf32>
    %258 = arith.addf %256, %257 : vector<32x2xf32>
    %259 = math.tanh %258 : vector<32x2xf32>
    %260 = arith.mulf %255, %259 : vector<32x2xf32>
    %cst_94 = arith.constant dense<0.000000e+00> : vector<2x2xf32>
    %261 = tpu.matmul %101, %260, %cst_94 {dimension_numbers = #tpu.dot_dimension_numbers<[1], [0], [0], [1], [0, 0, 1, 1], [], []>} : vector<2x32xf32>, vector<32x2xf32>, vector<2x2xf32> -> vector<2x2xf32>
    %262 = arith.addf %261, %102 : vector<2x2xf32>
    %263 = vector.extract_strided_slice %262 {offsets = [1, 0], sizes = [1, 2], strides = [1, 1]} : vector<2x2xf32> to vector<1x2xf32>
    %cst_95 = arith.constant dense<0.000000e+00> : vector<128x2xf32>
    %264 = tpu.matmul %98, %262, %cst_95 {dimension_numbers = #tpu.dot_dimension_numbers<[1], [0], [0], [1], [0, 0, 1, 1], [], []>} : vector<128x2xf32>, vector<2x2xf32>, vector<128x2xf32> -> vector<128x2xf32>
    %cst_96 = arith.constant dense<0.000000e+00> : vector<128x2xf32>
    %265 = tpu.matmul %99, %260, %cst_96 {dimension_numbers = #tpu.dot_dimension_numbers<[1], [0], [0], [1], [0, 0, 1, 1], [], []>} : vector<128x32xf32>, vector<32x2xf32>, vector<128x2xf32> -> vector<128x2xf32>
    %266 = arith.addf %264, %265 : vector<128x2xf32>
    %267 = arith.addf %266, %100 : vector<128x2xf32>
    %268 = vector.extract_strided_slice %267 {offsets = [0, 0], sizes = [32, 2], strides = [1, 1]} : vector<128x2xf32> to vector<32x2xf32>
    %269 = arith.negf %268 : vector<32x2xf32>
    %270 = math.exp %269 : vector<32x2xf32>
    %cst_97 = arith.constant 1.000000e+00 : f32
    %271 = vector.broadcast %cst_97 : f32 to vector<32x2xf32>
    %272 = arith.addf %271, %270 : vector<32x2xf32>
    %273 = arith.divf %271, %272 : vector<32x2xf32>
    %274 = vector.extract_strided_slice %267 {offsets = [32, 0], sizes = [32, 2], strides = [1, 1]} : vector<128x2xf32> to vector<32x2xf32>
    %275 = arith.negf %274 : vector<32x2xf32>
    %276 = math.exp %275 : vector<32x2xf32>
    %cst_98 = arith.constant 1.000000e+00 : f32
    %277 = vector.broadcast %cst_98 : f32 to vector<32x2xf32>
    %278 = arith.addf %277, %276 : vector<32x2xf32>
    %279 = arith.divf %277, %278 : vector<32x2xf32>
    %280 = vector.extract_strided_slice %267 {offsets = [64, 0], sizes = [32, 2], strides = [1, 1]} : vector<128x2xf32> to vector<32x2xf32>
    %281 = math.tanh %280 : vector<32x2xf32>
    %282 = vector.extract_strided_slice %267 {offsets = [96, 0], sizes = [32, 2], strides = [1, 1]} : vector<128x2xf32> to vector<32x2xf32>
    %283 = arith.negf %282 : vector<32x2xf32>
    %284 = math.exp %283 : vector<32x2xf32>
    %cst_99 = arith.constant 1.000000e+00 : f32
    %285 = vector.broadcast %cst_99 : f32 to vector<32x2xf32>
    %286 = arith.addf %285, %284 : vector<32x2xf32>
    %287 = arith.divf %285, %286 : vector<32x2xf32>
    %288 = arith.mulf %279, %258 : vector<32x2xf32>
    %289 = arith.mulf %273, %281 : vector<32x2xf32>
    %290 = arith.addf %288, %289 : vector<32x2xf32>
    %291 = math.tanh %290 : vector<32x2xf32>
    %292 = arith.mulf %287, %291 : vector<32x2xf32>
    %cst_100 = arith.constant dense<0.000000e+00> : vector<2x2xf32>
    %293 = tpu.matmul %101, %292, %cst_100 {dimension_numbers = #tpu.dot_dimension_numbers<[1], [0], [0], [1], [0, 0, 1, 1], [], []>} : vector<2x32xf32>, vector<32x2xf32>, vector<2x2xf32> -> vector<2x2xf32>
    %294 = arith.addf %293, %102 : vector<2x2xf32>
    %295 = vector.extract_strided_slice %294 {offsets = [1, 0], sizes = [1, 2], strides = [1, 1]} : vector<2x2xf32> to vector<1x2xf32>
    %cst_101 = arith.constant dense<0.000000e+00> : vector<128x2xf32>
    %296 = tpu.matmul %98, %294, %cst_101 {dimension_numbers = #tpu.dot_dimension_numbers<[1], [0], [0], [1], [0, 0, 1, 1], [], []>} : vector<128x2xf32>, vector<2x2xf32>, vector<128x2xf32> -> vector<128x2xf32>
    %cst_102 = arith.constant dense<0.000000e+00> : vector<128x2xf32>
    %297 = tpu.matmul %99, %292, %cst_102 {dimension_numbers = #tpu.dot_dimension_numbers<[1], [0], [0], [1], [0, 0, 1, 1], [], []>} : vector<128x32xf32>, vector<32x2xf32>, vector<128x2xf32> -> vector<128x2xf32>
    %298 = arith.addf %296, %297 : vector<128x2xf32>
    %299 = arith.addf %298, %100 : vector<128x2xf32>
    %300 = vector.extract_strided_slice %299 {offsets = [0, 0], sizes = [32, 2], strides = [1, 1]} : vector<128x2xf32> to vector<32x2xf32>
    %301 = arith.negf %300 : vector<32x2xf32>
    %302 = math.exp %301 : vector<32x2xf32>
    %cst_103 = arith.constant 1.000000e+00 : f32
    %303 = vector.broadcast %cst_103 : f32 to vector<32x2xf32>
    %304 = arith.addf %303, %302 : vector<32x2xf32>
    %305 = arith.divf %303, %304 : vector<32x2xf32>
    %306 = vector.extract_strided_slice %299 {offsets = [32, 0], sizes = [32, 2], strides = [1, 1]} : vector<128x2xf32> to vector<32x2xf32>
    %307 = arith.negf %306 : vector<32x2xf32>
    %308 = math.exp %307 : vector<32x2xf32>
    %cst_104 = arith.constant 1.000000e+00 : f32
    %309 = vector.broadcast %cst_104 : f32 to vector<32x2xf32>
    %310 = arith.addf %309, %308 : vector<32x2xf32>
    %311 = arith.divf %309, %310 : vector<32x2xf32>
    %312 = vector.extract_strided_slice %299 {offsets = [64, 0], sizes = [32, 2], strides = [1, 1]} : vector<128x2xf32> to vector<32x2xf32>
    %313 = math.tanh %312 : vector<32x2xf32>
    %314 = vector.extract_strided_slice %299 {offsets = [96, 0], sizes = [32, 2], strides = [1, 1]} : vector<128x2xf32> to vector<32x2xf32>
    %315 = arith.negf %314 : vector<32x2xf32>
    %316 = math.exp %315 : vector<32x2xf32>
    %cst_105 = arith.constant 1.000000e+00 : f32
    %317 = vector.broadcast %cst_105 : f32 to vector<32x2xf32>
    %318 = arith.addf %317, %316 : vector<32x2xf32>
    %319 = arith.divf %317, %318 : vector<32x2xf32>
    %320 = arith.mulf %311, %290 : vector<32x2xf32>
    %321 = arith.mulf %305, %313 : vector<32x2xf32>
    %322 = arith.addf %320, %321 : vector<32x2xf32>
    %323 = math.tanh %322 : vector<32x2xf32>
    %324 = arith.mulf %319, %323 : vector<32x2xf32>
    %cst_106 = arith.constant dense<0.000000e+00> : vector<2x2xf32>
    %325 = tpu.matmul %101, %324, %cst_106 {dimension_numbers = #tpu.dot_dimension_numbers<[1], [0], [0], [1], [0, 0, 1, 1], [], []>} : vector<2x32xf32>, vector<32x2xf32>, vector<2x2xf32> -> vector<2x2xf32>
    %326 = arith.addf %325, %102 : vector<2x2xf32>
    %327 = vector.extract_strided_slice %326 {offsets = [1, 0], sizes = [1, 2], strides = [1, 1]} : vector<2x2xf32> to vector<1x2xf32>
    %cst_107 = arith.constant dense<0.000000e+00> : vector<128x2xf32>
    %328 = tpu.matmul %98, %326, %cst_107 {dimension_numbers = #tpu.dot_dimension_numbers<[1], [0], [0], [1], [0, 0, 1, 1], [], []>} : vector<128x2xf32>, vector<2x2xf32>, vector<128x2xf32> -> vector<128x2xf32>
    %cst_108 = arith.constant dense<0.000000e+00> : vector<128x2xf32>
    %329 = tpu.matmul %99, %324, %cst_108 {dimension_numbers = #tpu.dot_dimension_numbers<[1], [0], [0], [1], [0, 0, 1, 1], [], []>} : vector<128x32xf32>, vector<32x2xf32>, vector<128x2xf32> -> vector<128x2xf32>
    %330 = arith.addf %328, %329 : vector<128x2xf32>
    %331 = arith.addf %330, %100 : vector<128x2xf32>
    %332 = vector.extract_strided_slice %331 {offsets = [0, 0], sizes = [32, 2], strides = [1, 1]} : vector<128x2xf32> to vector<32x2xf32>
    %333 = arith.negf %332 : vector<32x2xf32>
    %334 = math.exp %333 : vector<32x2xf32>
    %cst_109 = arith.constant 1.000000e+00 : f32
    %335 = vector.broadcast %cst_109 : f32 to vector<32x2xf32>
    %336 = arith.addf %335, %334 : vector<32x2xf32>
    %337 = arith.divf %335, %336 : vector<32x2xf32>
    %338 = vector.extract_strided_slice %331 {offsets = [32, 0], sizes = [32, 2], strides = [1, 1]} : vector<128x2xf32> to vector<32x2xf32>
    %339 = arith.negf %338 : vector<32x2xf32>
    %340 = math.exp %339 : vector<32x2xf32>
    %cst_110 = arith.constant 1.000000e+00 : f32
    %341 = vector.broadcast %cst_110 : f32 to vector<32x2xf32>
    %342 = arith.addf %341, %340 : vector<32x2xf32>
    %343 = arith.divf %341, %342 : vector<32x2xf32>
    %344 = vector.extract_strided_slice %331 {offsets = [64, 0], sizes = [32, 2], strides = [1, 1]} : vector<128x2xf32> to vector<32x2xf32>
    %345 = math.tanh %344 : vector<32x2xf32>
    %346 = vector.extract_strided_slice %331 {offsets = [96, 0], sizes = [32, 2], strides = [1, 1]} : vector<128x2xf32> to vector<32x2xf32>
    %347 = arith.negf %346 : vector<32x2xf32>
    %348 = math.exp %347 : vector<32x2xf32>
    %cst_111 = arith.constant 1.000000e+00 : f32
    %349 = vector.broadcast %cst_111 : f32 to vector<32x2xf32>
    %350 = arith.addf %349, %348 : vector<32x2xf32>
    %351 = arith.divf %349, %350 : vector<32x2xf32>
    %352 = arith.mulf %343, %322 : vector<32x2xf32>
    %353 = arith.mulf %337, %345 : vector<32x2xf32>
    %354 = arith.addf %352, %353 : vector<32x2xf32>
    %355 = math.tanh %354 : vector<32x2xf32>
    %356 = arith.mulf %351, %355 : vector<32x2xf32>
    %cst_112 = arith.constant dense<0.000000e+00> : vector<2x2xf32>
    %357 = tpu.matmul %101, %356, %cst_112 {dimension_numbers = #tpu.dot_dimension_numbers<[1], [0], [0], [1], [0, 0, 1, 1], [], []>} : vector<2x32xf32>, vector<32x2xf32>, vector<2x2xf32> -> vector<2x2xf32>
    %358 = arith.addf %357, %102 : vector<2x2xf32>
    %359 = vector.extract_strided_slice %358 {offsets = [1, 0], sizes = [1, 2], strides = [1, 1]} : vector<2x2xf32> to vector<1x2xf32>
    %360 = tpu.concatenate %135, %167, %199, %231, %263, %295, %327, %359 in 0 : vector<1x2xf32>, vector<1x2xf32>, vector<1x2xf32>, vector<1x2xf32>, vector<1x2xf32>, vector<1x2xf32>, vector<1x2xf32>, vector<1x2xf32> -> vector<8x2xf32>
    %c0_113 = arith.constant 0 : index
    %c0_114 = arith.constant 0 : index
    %361 = vector.load %arg20[%c0_113, %c0_114] : memref<8x2xf32, #tpu.memory_space<vmem>>, vector<8x2xf32>
    tpu.vector_store %arg20[%c0_113, %c0_114], %360 {strides = array<i32>} : memref<8x2xf32, #tpu.memory_space<vmem>>, vector<8x2xf32>,
    return
  }
}

</mosaic_0001>

<llo_original>
// kernel: tpu_custom_call.1
$region0: #{tpu_custom_call.1}
  #allocation0 [shape = 'u32[]', space=smem, size = 0x4, offset = 0x4, fixed_abs, tag = 'smem constant byte address 0x4 - core index']
  #allocation1 [shape = 'u32[144,128]{1,0:T(1,128)}', space=vmem, size = 0x12000, scoped, tag = 'internal scratch']
  #allocation2 [shape = 'f32[1,1]{1,0:T(1,128)S(1)}', space=vmem, size = 0x200, scoped, tag = 'scoped memory for tpu_custom_call.1']
  %s0 = inlined_call_operand.vmem [shape: f32[8,32], index: 0, kind: input, shape index: {}]
  %s1 = inlined_call_operand.vmem [shape: f32[2,2], index: 1, kind: input, shape index: {}]
  %s2 = inlined_call_operand.vmem [shape: f32[16,16], index: 2, kind: input, shape index: {}]
  %s3 = inlined_call_operand.vmem [shape: f32[16,1], index: 3, kind: input, shape index: {}]
  %s4 = inlined_call_operand.vmem [shape: f32[8,16], index: 4, kind: input, shape index: {}]
  %s5 = inlined_call_operand.vmem [shape: f32[8,1], index: 5, kind: input, shape index: {}]
  %s6 = inlined_call_operand.vmem [shape: f32[8,16], index: 6, kind: input, shape index: {}]
  %s7 = inlined_call_operand.vmem [shape: f32[8,1], index: 7, kind: input, shape index: {}]
  %s8 = inlined_call_operand.vmem [shape: f32[8,16], index: 8, kind: input, shape index: {}]
  %s9 = inlined_call_operand.vmem [shape: f32[8,1], index: 9, kind: input, shape index: {}]
  %s10 = inlined_call_operand.vmem [shape: f32[32,8], index: 10, kind: input, shape index: {}]
  %s11 = inlined_call_operand.vmem [shape: f32[32,1], index: 11, kind: input, shape index: {}]
  %s12 = inlined_call_operand.vmem [shape: f32[32,2], index: 12, kind: input, shape index: {}]
  %s13 = inlined_call_operand.<no memory space> [shape: f32[1,1], index: 13, kind: input, shape index: {}]
  %s14 = inlined_call_operand.vmem [shape: f32[32,2], index: 14, kind: input, shape index: {}]
  %s15 = inlined_call_operand.vmem [shape: f32[128,2], index: 15, kind: input, shape index: {}]
  %s16 = inlined_call_operand.vmem [shape: f32[128,32], index: 16, kind: input, shape index: {}]
  %s17 = inlined_call_operand.vmem [shape: f32[128,2], index: 17, kind: input, shape index: {}]
  %s18 = inlined_call_operand.vmem [shape: f32[2,32], index: 18, kind: input, shape index: {}]
  %s19 = inlined_call_operand.vmem [shape: f32[2,2], index: 19, kind: input, shape index: {}]
  %s20 = inlined_call_operand.vmem [shape: f32[8,2], index: 20, kind: output, shape index: {}]
  %s21 = sld [smem:[#allocation0]]
  $region90: #{tpu_custom_call.1} parent=0
    _
  %s23 = ssub.s32 1, %s21
  %s24 = scalar_select 0, %s23, %s21
  %v25 = vstv %s13
  %26 = vst [vmem:[#allocation2] sm:$0x1] %v25
  // Predicated region
  $region2: #{tpu_custom_call.1} parent=0 // pred_check
    _
  $region3: #{tpu_custom_call.1} parent=0 // pred_check_branch
    %28 = sbr.rel (0) target = $region5
  $region4: #{tpu_custom_call.1} parent=0 // pred_region
    _
  $region5: #{tpu_custom_call.1} parent=0 // pred_fallthru
    _
  // Predicated region
  $region6: #{tpu_custom_call.1} parent=0 // pred_check
    _
  $region7: #{tpu_custom_call.1} parent=0 // pred_check_branch
    %30 = sbr.rel (0) target = $region9
  $region8: #{tpu_custom_call.1} parent=0 // pred_region
    _
  $region9: #{tpu_custom_call.1} parent=0 // pred_fallthru
    _
  // Predicated region
  $region10: #{tpu_custom_call.1} parent=0 // pred_check
    _
  $region11: #{tpu_custom_call.1} parent=0 // pred_check_branch
    %32 = sbr.rel (0) target = $region13
  $region12: #{tpu_custom_call.1} parent=0 // pred_region
    _
  $region13: #{tpu_custom_call.1} parent=0 // pred_fallthru
    _
  // Predicated region
  $region14: #{tpu_custom_call.1} parent=0 // pred_check
    _
  $region15: #{tpu_custom_call.1} parent=0 // pred_check_branch
    %34 = sbr.rel (0) target = $region17
  $region16: #{tpu_custom_call.1} parent=0 // pred_region
    _
  $region17: #{tpu_custom_call.1} parent=0 // pred_fallthru
    _
  // Predicated region
  $region18: #{tpu_custom_call.1} parent=0 // pred_check
    _
  $region19: #{tpu_custom_call.1} parent=0 // pred_check_branch
    %36 = sbr.rel (0) target = $region21
  $region20: #{tpu_custom_call.1} parent=0 // pred_region
    _
  $region21: #{tpu_custom_call.1} parent=0 // pred_fallthru
    _
  // Predicated region
  $region22: #{tpu_custom_call.1} parent=0 // pred_check
    _
  $region23: #{tpu_custom_call.1} parent=0 // pred_check_branch
    %38 = sbr.rel (0) target = $region25
  $region24: #{tpu_custom_call.1} parent=0 // pred_region
    _
  $region25: #{tpu_custom_call.1} parent=0 // pred_fallthru
    _
  // Predicated region
  $region26: #{tpu_custom_call.1} parent=0 // pred_check
    _
  $region27: #{tpu_custom_call.1} parent=0 // pred_check_branch
    %40 = sbr.rel (0) target = $region29
  $region28: #{tpu_custom_call.1} parent=0 // pred_region
    _
  $region29: #{tpu_custom_call.1} parent=0 // pred_fallthru
    _
  // Predicated region
  $region30: #{tpu_custom_call.1} parent=0 // pred_check
    _
  $region31: #{tpu_custom_call.1} parent=0 // pred_check_branch
    %42 = sbr.rel (0) target = $region33
  $region32: #{tpu_custom_call.1} parent=0 // pred_region
    _
  $region33: #{tpu_custom_call.1} parent=0 // pred_fallthru
    _
  // Predicated region
  $region34: #{tpu_custom_call.1} parent=0 // pred_check
    _
  $region35: #{tpu_custom_call.1} parent=0 // pred_check_branch
    %44 = sbr.rel (0) target = $region37
  $region36: #{tpu_custom_call.1} parent=0 // pred_region
    _
  $region37: #{tpu_custom_call.1} parent=0 // pred_fallthru
    _
  // Predicated region
  $region38: #{tpu_custom_call.1} parent=0 // pred_check
    _
  $region39: #{tpu_custom_call.1} parent=0 // pred_check_branch
    %46 = sbr.rel (0) target = $region41
  $region40: #{tpu_custom_call.1} parent=0 // pred_region
    _
  $region41: #{tpu_custom_call.1} parent=0 // pred_fallthru
    _
  // Predicated region
  $region42: #{tpu_custom_call.1} parent=0 // pred_check
    _
  $region43: #{tpu_custom_call.1} parent=0 // pred_check_branch
    %48 = sbr.rel (0) target = $region45
  $region44: #{tpu_custom_call.1} parent=0 // pred_region
    _
  $region45: #{tpu_custom_call.1} parent=0 // pred_fallthru
    _
  // Predicated region
  $region46: #{tpu_custom_call.1} parent=0 // pred_check
    _
  $region47: #{tpu_custom_call.1} parent=0 // pred_check_branch
    %50 = sbr.rel (0) target = $region49
  $region48: #{tpu_custom_call.1} parent=0 // pred_region
    _
  $region49: #{tpu_custom_call.1} parent=0 // pred_fallthru
    _
  // Predicated region
  $region50: #{tpu_custom_call.1} parent=0 // pred_check
    _
  $region51: #{tpu_custom_call.1} parent=0 // pred_check_branch
    %52 = sbr.rel (0) target = $region53
  $region52: #{tpu_custom_call.1} parent=0 // pred_region
    _
  $region53: #{tpu_custom_call.1} parent=0 // pred_fallthru
    _
  // Predicated region
  $region54: #{tpu_custom_call.1} parent=0 // pred_check
    _
  $region55: #{tpu_custom_call.1} parent=0 // pred_check_branch
    %54 = sbr.rel (0) target = $region57
  $region56: #{tpu_custom_call.1} parent=0 // pred_region
    _
  $region57: #{tpu_custom_call.1} parent=0 // pred_fallthru
    _
  // Predicated region
  $region58: #{tpu_custom_call.1} parent=0 // pred_check
    _
  $region59: #{tpu_custom_call.1} parent=0 // pred_check_branch
    %56 = sbr.rel (0) target = $region61
  $region60: #{tpu_custom_call.1} parent=0 // pred_region
    _
  $region61: #{tpu_custom_call.1} parent=0 // pred_fallthru
    _
  // Predicated region
  $region62: #{tpu_custom_call.1} parent=0 // pred_check
    _
  $region63: #{tpu_custom_call.1} parent=0 // pred_check_branch
    %58 = sbr.rel (0) target = $region65
  $region64: #{tpu_custom_call.1} parent=0 // pred_region
    _
  $region65: #{tpu_custom_call.1} parent=0 // pred_fallthru
    _
  // Predicated region
  $region66: #{tpu_custom_call.1} parent=0 // pred_check
    _
  $region67: #{tpu_custom_call.1} parent=0 // pred_check_branch
    %60 = sbr.rel (0) target = $region69
  $region68: #{tpu_custom_call.1} parent=0 // pred_region
    _
  $region69: #{tpu_custom_call.1} parent=0 // pred_fallthru
    _
  // Predicated region
  $region70: #{tpu_custom_call.1} parent=0 // pred_check
    _
  $region71: #{tpu_custom_call.1} parent=0 // pred_check_branch
    %62 = sbr.rel (0) target = $region73
  $region72: #{tpu_custom_call.1} parent=0 // pred_region
    _
  $region73: #{tpu_custom_call.1} parent=0 // pred_fallthru
    _
  // Predicated region
  $region74: #{tpu_custom_call.1} parent=0 // pred_check
    _
  $region75: #{tpu_custom_call.1} parent=0 // pred_check_branch
    %64 = sbr.rel (0) target = $region77
  $region76: #{tpu_custom_call.1} parent=0 // pred_region
    _
  $region77: #{tpu_custom_call.1} parent=0 // pred_fallthru
    _
  // Predicated region
  $region78: #{tpu_custom_call.1} parent=0 // pred_check
    _
  $region79: #{tpu_custom_call.1} parent=0 // pred_check_branch
    %66 = sbr.rel (0) target = $region81
  $region80: #{tpu_custom_call.1} parent=0 // pred_region
    _
  $region81: #{tpu_custom_call.1} parent=0 // pred_fallthru
    _
  %v67 = vld [vmem:[%s0] sm:$0xff]
  %v68 = vld [vmem:[%s2] sm:$0xff]
  %v69 = vld [vmem:[%s2 + $0x8] sm:$0xff]
  %v70 = vld [vmem:[%s3] sm:$0xff]
  %v71 = vld [vmem:[%s3 + $0x8] sm:$0xff]
  %v72 = vld [vmem:[%s4] sm:$0xff]
  %v73 = vld [vmem:[%s5] sm:$0xff]
  %75 = vrot.lane.b32.xlu0 %v67, 1
  %v76 = vpop.permute.xlu0 %75
  %vm78 = vcmask 7168
  %v79 = vsel %vm78, 0.0, %v76
  %v80 = vlaneseq
  %v81 = vand.u32 %v80, 127
  %vm82 = vcmp.lt.s32.totalorder %v81, 0
  %v83 = vsub.s32 0, %v81
  %v84 = vsel %vm82, %v83, %v81
  %v85 = vshrl.u32 %v84, 4
  %v86 = vand.u32 %v84, 15
  %v87 = vsub.s32 0, %v86
  %v88 = vsel %vm82, %v87, %v86
  %vm89 = vcmp.ne.s32.totalorder %v88, 0
  %vm90 = vcmp.lt.s32.totalorder %v88, 0
  %vm91 = vmand %vm90, %vm89
  %v92 = vadd.s32 %v88, 16
  %v93 = vsel %vm91, %v92, %v88
  %vm94 = vcmp.ge.s32.totalorder %v93, 1
  %v95 = vsel %vm94, %v79, 0.0
  %97 = vset.pattern.permute.xlu0 0
  %98 = vperm.xlu0 %97, %v70
  %v99 = vpop.permute.xlu0 %98
  %102 = vset.pattern.permute.xlu0 0
  %103 = vperm.xlu0 %102, %v71
  %v104 = vpop.permute.xlu0 %103
  %vm106 = vcmask 130048
  %v108 = vsel %vm106, %v68, 0
  %v111 = vsel %vm106, %v69, 0
  %113 = vmatprep.subr.mxu0 0.0
  %114 = vmatpush1.msra.mxu0 %v95
  %115 = vmatprep.subr.mxu0 0.0
  %116 = vmatpush1.msra.mxu0 %v67
  %117 = vmatprep.subr.mxu0 0.0
  %118 = vmatpush1.msra.mxu0 0.0
  %119 = vmatprep.subr.mxu0 0.0
  %120 = vmatpush1.msra.mxu0 0.0
  %121 = vmatprep.subr.mxu0 0.0
  %122 = vmatpush1.msra.mxu0 0.0
  %123 = vmatprep.subr.mxu0 0.0
  %124 = vmatpush1.msra.mxu0 0.0
  %125 = vmatprep.subr.mxu0 0.0
  %126 = vmatpush1.msra.mxu0 0.0
  %127 = vmatprep.subr.mxu0 0.0
  %128 = vmatpush1.msra.mxu0 0.0
  %129 = vmatprep.subr.mxu0 0.0
  %130 = vmatpush1.msra.mxu0 0.0
  %131 = vmatprep.subr.mxu0 0.0
  %132 = vmatpush1.msra.mxu0 0.0
  %133 = vmatprep.subr.mxu0 0.0
  %134 = vmatpush1.msra.mxu0 0.0
  %135 = vmatprep.subr.mxu0 0.0
  %136 = vmatpush1.msra.mxu0 0.0
  %137 = vmatprep.subr.mxu0 0.0
  %138 = vmatpush1.msra.mxu0 0.0
  %139 = vmatprep.subr.mxu0 0.0
  %140 = vmatpush1.msra.mxu0 0.0
  %141 = vmatprep.subr.mxu0 0.0
  %142 = vmatpush1.msra.mxu0 0.0
  %143 = vmatprep.subr.mxu0 0.0
  %144 = vmatpush1.msra.mxu0 0.0
  %145 = vmatprep.subr.mxu0 0.0
  %146 = vmatpush1.msra.mxu0 0.0
  %147 = vmatprep.subr.mxu0 0.0
  %148 = vmatpush1.msra.mxu0 0.0
  %149 = vmatprep.subr.mxu0 0.0
  %150 = vmatpush1.msra.mxu0 0.0
  %151 = vmatprep.subr.mxu0 0.0
  %152 = vmatpush1.msra.mxu0 0.0
  %153 = vmatprep.subr.mxu0 0.0
  %154 = vmatpush1.msra.mxu0 0.0
  %155 = vmatprep.subr.mxu0 0.0
  %156 = vmatpush1.msra.mxu0 0.0
  %157 = vmatprep.subr.mxu0 0.0
  %158 = vmatpush1.msra.mxu0 0.0
  %159 = vmatprep.subr.mxu0 0.0
  %160 = vmatpush1.msra.mxu0 0.0
  %161 = vmatprep.subr.mxu0 0.0
  %162 = vmatpush1.msra.mxu0 0.0
  %163 = vmatprep.subr.mxu0 0.0
  %164 = vmatpush1.msra.mxu0 0.0
  %165 = vmatprep.subr.mxu0 0.0
  %166 = vmatpush1.msra.mxu0 0.0
  %167 = vmatprep.subr.mxu0 0.0
  %168 = vmatpush1.msra.mxu0 0.0
  %169 = vmatprep.subr.mxu0 0.0
  %170 = vmatpush1.msra.mxu0 0.0
  %171 = vmatprep.subr.mxu0 0.0
  %172 = vmatpush1.msra.mxu0 0.0
  %173 = vmatprep.subr.mxu0 0.0
  %174 = vmatpush1.msra.mxu0 0.0
  %175 = vmatprep.subr.mxu0 0.0
  %176 = vmatpush1.msra.mxu0 0.0
  %177 = vmatprep.mubr.f32.mxu0 0.0
  %178 = vmatmul.mubr.f32.gmra.mrb[0].mxu0 %v108
  %v179 = vpop.f32.mrb[0].mxu0
  %v180 = vadd.f32 %v99, %v179
  %v181 = vpop.f32.mrb[0].mxu0
  %182 = vmatprep.mubr.f32.mxu0 0.0
  %183 = vmatmul.mubr.f32.gmra.mrb[0].mxu0 %v111
  %v184 = vpop.f32.mrb[0].mxu0
  %v185 = vadd.f32 %v104, %v184
  %v186 = vpop.f32.mrb[0].mxu0
  %187 = vdwg.mxu0
  %v188 = vmax.f32 %v180, 0.0
  %190 = vrot.lane.b32.xlu0 %v188, 1
  %v191 = vpop.permute.xlu0 %190
  %v193 = vsel %vm78, 0.0, %v191
  %v194 = vsel %vm94, %v193, 0.0
  %196 = vset.pattern.permute.xlu0 0
  %197 = vperm.xlu0 %196, %v73
  %v198 = vpop.permute.xlu0 %197
  %v201 = vsel %vm106, %v72, 0
  %203 = vmatprep.subr.mxu0 0.0
  %204 = vmatpush1.msra.mxu0 %v194
  %205 = vmatprep.subr.mxu0 0.0
  %206 = vmatpush1.msra.mxu0 %v188
  %207 = vmatprep.subr.mxu0 0.0
  %208 = vmatpush1.msra.mxu0 0.0
  %209 = vmatprep.subr.mxu0 0.0
  %210 = vmatpush1.msra.mxu0 0.0
  %211 = vmatprep.subr.mxu0 0.0
  %212 = vmatpush1.msra.mxu0 0.0
  %213 = vmatprep.subr.mxu0 0.0
  %214 = vmatpush1.msra.mxu0 0.0
  %215 = vmatprep.subr.mxu0 0.0
  %216 = vmatpush1.msra.mxu0 0.0
  %217 = vmatprep.subr.mxu0 0.0
  %218 = vmatpush1.msra.mxu0 0.0
  %219 = vmatprep.subr.mxu0 0.0
  %220 = vmatpush1.msra.mxu0 0.0
  %221 = vmatprep.subr.mxu0 0.0
  %222 = vmatpush1.msra.mxu0 0.0
  %223 = vmatprep.subr.mxu0 0.0
  %224 = vmatpush1.msra.mxu0 0.0
  %225 = vmatprep.subr.mxu0 0.0
  %226 = vmatpush1.msra.mxu0 0.0
  %227 = vmatprep.subr.mxu0 0.0
  %228 = vmatpush1.msra.mxu0 0.0
  %229 = vmatprep.subr.mxu0 0.0
  %230 = vmatpush1.msra.mxu0 0.0
  %231 = vmatprep.subr.mxu0 0.0
  %232 = vmatpush1.msra.mxu0 0.0
  %233 = vmatprep.subr.mxu0 0.0
  %234 = vmatpush1.msra.mxu0 0.0
  %235 = vmatprep.subr.mxu0 0.0
  %236 = vmatpush1.msra.mxu0 0.0
  %237 = vmatprep.subr.mxu0 0.0
  %238 = vmatpush1.msra.mxu0 0.0
  %239 = vmatprep.subr.mxu0 0.0
  %240 = vmatpush1.msra.mxu0 0.0
  %241 = vmatprep.subr.mxu0 0.0
  %242 = vmatpush1.msra.mxu0 0.0
  %243 = vmatprep.subr.mxu0 0.0
  %244 = vmatpush1.msra.mxu0 0.0
  %245 = vmatprep.subr.mxu0 0.0
  %246 = vmatpush1.msra.mxu0 0.0
  %247 = vmatprep.subr.mxu0 0.0
  %248 = vmatpush1.msra.mxu0 0.0
  %249 = vmatprep.subr.mxu0 0.0
  %250 = vmatpush1.msra.mxu0 0.0
  %251 = vmatprep.subr.mxu0 0.0
  %252 = vmatpush1.msra.mxu0 0.0
  %253 = vmatprep.subr.mxu0 0.0
  %254 = vmatpush1.msra.mxu0 0.0
  %255 = vmatprep.subr.mxu0 0.0
  %256 = vmatpush1.msra.mxu0 0.0
  %257 = vmatprep.subr.mxu0 0.0
  %258 = vmatpush1.msra.mxu0 0.0
  %259 = vmatprep.subr.mxu0 0.0
  %260 = vmatpush1.msra.mxu0 0.0
  %261 = vmatprep.subr.mxu0 0.0
  %262 = vmatpush1.msra.mxu0 0.0
  %263 = vmatprep.subr.mxu0 0.0
  %264 = vmatpush1.msra.mxu0 0.0
  %265 = vmatprep.subr.mxu0 0.0
  %266 = vmatpush1.msra.mxu0 0.0
  %267 = vmatprep.mubr.f32.mxu0 0.0
  %268 = vmatmul.mubr.f32.gmra.mrb[0].mxu0 %v201
  %v269 = vpop.f32.mrb[0].mxu0
  %v270 = vadd.f32 %v198, %v269
  %v271 = vpop.f32.mrb[0].mxu0
  %272 = vdwg.mxu0
  %v273 = vmax.f32 %v270, 0.0
  %v274 = vadd.f32 %v273, %v185
  %v275 = vmax.f32 %v274, 0.0
  %v276 = vld [vmem:[%s6] sm:$0xff]
  %v277 = vld [vmem:[%s7] sm:$0xff]
  %v278 = vld [vmem:[%s8] sm:$0xff]
  %v279 = vld [vmem:[%s9] sm:$0xff]
  %281 = vrot.lane.b32.xlu0 %v275, 2
  %v282 = vpop.permute.xlu0 %281
  %vm284 = vcmask 15360
  %v285 = vsel %vm284, 0.0, %v282
  %vm286 = vcmp.ge.s32.totalorder %v93, 2
  %v287 = vsel %vm286, %v285, 0.0
  %289 = vset.pattern.permute.xlu0 0
  %290 = vperm.xlu0 %289, %v277
  %v291 = vpop.permute.xlu0 %290
  %v294 = vsel %vm106, %v276, 0
  %296 = vmatprep.subr.mxu0 0.0
  %297 = vmatpush1.msra.mxu0 %v287
  %298 = vmatprep.subr.mxu0 0.0
  %299 = vmatpush1.msra.mxu0 %v275
  %300 = vmatprep.subr.mxu0 0.0
  %301 = vmatpush1.msra.mxu0 0.0
  %302 = vmatprep.subr.mxu0 0.0
  %303 = vmatpush1.msra.mxu0 0.0
  %304 = vmatprep.subr.mxu0 0.0
  %305 = vmatpush1.msra.mxu0 0.0
  %306 = vmatprep.subr.mxu0 0.0
  %307 = vmatpush1.msra.mxu0 0.0
  %308 = vmatprep.subr.mxu0 0.0
  %309 = vmatpush1.msra.mxu0 0.0
  %310 = vmatprep.subr.mxu0 0.0
  %311 = vmatpush1.msra.mxu0 0.0
  %312 = vmatprep.subr.mxu0 0.0
  %313 = vmatpush1.msra.mxu0 0.0
  %314 = vmatprep.subr.mxu0 0.0
  %315 = vmatpush1.msra.mxu0 0.0
  %316 = vmatprep.subr.mxu0 0.0
  %317 = vmatpush1.msra.mxu0 0.0
  %318 = vmatprep.subr.mxu0 0.0
  %319 = vmatpush1.msra.mxu0 0.0
  %320 = vmatprep.subr.mxu0 0.0
  %321 = vmatpush1.msra.mxu0 0.0
  %322 = vmatprep.subr.mxu0 0.0
  %323 = vmatpush1.msra.mxu0 0.0
  %324 = vmatprep.subr.mxu0 0.0
  %325 = vmatpush1.msra.mxu0 0.0
  %326 = vmatprep.subr.mxu0 0.0
  %327 = vmatpush1.msra.mxu0 0.0
  %328 = vmatprep.subr.mxu0 0.0
  %329 = vmatpush1.msra.mxu0 0.0
  %330 = vmatprep.subr.mxu0 0.0
  %331 = vmatpush1.msra.mxu0 0.0
  %332 = vmatprep.subr.mxu0 0.0
  %333 = vmatpush1.msra.mxu0 0.0
  %334 = vmatprep.subr.mxu0 0.0
  %335 = vmatpush1.msra.mxu0 0.0
  %336 = vmatprep.subr.mxu0 0.0
  %337 = vmatpush1.msra.mxu0 0.0
  %338 = vmatprep.subr.mxu0 0.0
  %339 = vmatpush1.msra.mxu0 0.0
  %340 = vmatprep.subr.mxu0 0.0
  %341 = vmatpush1.msra.mxu0 0.0
  %342 = vmatprep.subr.mxu0 0.0
  %343 = vmatpush1.msra.mxu0 0.0
  %344 = vmatprep.subr.mxu0 0.0
  %345 = vmatpush1.msra.mxu0 0.0
  %346 = vmatprep.subr.mxu0 0.0
  %347 = vmatpush1.msra.mxu0 0.0
  %348 = vmatprep.subr.mxu0 0.0
  %349 = vmatpush1.msra.mxu0 0.0
  %350 = vmatprep.subr.mxu0 0.0
  %351 = vmatpush1.msra.mxu0 0.0
  %352 = vmatprep.subr.mxu0 0.0
  %353 = vmatpush1.msra.mxu0 0.0
  %354 = vmatprep.subr.mxu0 0.0
  %355 = vmatpush1.msra.mxu0 0.0
  %356 = vmatprep.subr.mxu0 0.0
  %357 = vmatpush1.msra.mxu0 0.0
  %358 = vmatprep.subr.mxu0 0.0
  %359 = vmatpush1.msra.mxu0 0.0
  %360 = vmatprep.mubr.f32.mxu0 0.0
  %361 = vmatmul.mubr.f32.gmra.mrb[0].mxu0 %v294
  %v362 = vpop.f32.mrb[0].mxu0
  %v363 = vadd.f32 %v291, %v362
  %v364 = vpop.f32.mrb[0].mxu0
  %365 = vdwg.mxu0
  %v366 = vmax.f32 %v363, 0.0
  %368 = vrot.lane.b32.xlu0 %v366, 2
  %v369 = vpop.permute.xlu0 %368
  %v371 = vsel %vm284, 0.0, %v369
  %v372 = vsel %vm286, %v371, 0.0
  %374 = vset.pattern.permute.xlu0 0
  %375 = vperm.xlu0 %374, %v279
  %v376 = vpop.permute.xlu0 %375
  %v379 = vsel %vm106, %v278, 0
  %381 = vmatprep.subr.mxu0 0.0
  %382 = vmatpush1.msra.mxu0 %v372
  %383 = vmatprep.subr.mxu0 0.0
  %384 = vmatpush1.msra.mxu0 %v366
  %385 = vmatprep.subr.mxu0 0.0
  %386 = vmatpush1.msra.mxu0 0.0
  %387 = vmatprep.subr.mxu0 0.0
  %388 = vmatpush1.msra.mxu0 0.0
  %389 = vmatprep.subr.mxu0 0.0
  %390 = vmatpush1.msra.mxu0 0.0
  %391 = vmatprep.subr.mxu0 0.0
  %392 = vmatpush1.msra.mxu0 0.0
  %393 = vmatprep.subr.mxu0 0.0
  %394 = vmatpush1.msra.mxu0 0.0
  %395 = vmatprep.subr.mxu0 0.0
  %396 = vmatpush1.msra.mxu0 0.0
  %397 = vmatprep.subr.mxu0 0.0
  %398 = vmatpush1.msra.mxu0 0.0
  %399 = vmatprep.subr.mxu0 0.0
  %400 = vmatpush1.msra.mxu0 0.0
  %401 = vmatprep.subr.mxu0 0.0
  %402 = vmatpush1.msra.mxu0 0.0
  %403 = vmatprep.subr.mxu0 0.0
  %404 = vmatpush1.msra.mxu0 0.0
  %405 = vmatprep.subr.mxu0 0.0
  %406 = vmatpush1.msra.mxu0 0.0
  %407 = vmatprep.subr.mxu0 0.0
  %408 = vmatpush1.msra.mxu0 0.0
  %409 = vmatprep.subr.mxu0 0.0
  %410 = vmatpush1.msra.mxu0 0.0
  %411 = vmatprep.subr.mxu0 0.0
  %412 = vmatpush1.msra.mxu0 0.0
  %413 = vmatprep.subr.mxu0 0.0
  %414 = vmatpush1.msra.mxu0 0.0
  %415 = vmatprep.subr.mxu0 0.0
  %416 = vmatpush1.msra.mxu0 0.0
  %417 = vmatprep.subr.mxu0 0.0
  %418 = vmatpush1.msra.mxu0 0.0
  %419 = vmatprep.subr.mxu0 0.0
  %420 = vmatpush1.msra.mxu0 0.0
  %421 = vmatprep.subr.mxu0 0.0
  %422 = vmatpush1.msra.mxu0 0.0
  %423 = vmatprep.subr.mxu0 0.0
  %424 = vmatpush1.msra.mxu0 0.0
  %425 = vmatprep.subr.mxu0 0.0
  %426 = vmatpush1.msra.mxu0 0.0
  %427 = vmatprep.subr.mxu0 0.0
  %428 = vmatpush1.msra.mxu0 0.0
  %429 = vmatprep.subr.mxu0 0.0
  %430 = vmatpush1.msra.mxu0 0.0
  %431 = vmatprep.subr.mxu0 0.0
  %432 = vmatpush1.msra.mxu0 0.0
  %433 = vmatprep.subr.mxu0 0.0
  %434 = vmatpush1.msra.mxu0 0.0
  %435 = vmatprep.subr.mxu0 0.0
  %436 = vmatpush1.msra.mxu0 0.0
  %437 = vmatprep.subr.mxu0 0.0
  %438 = vmatpush1.msra.mxu0 0.0
  %439 = vmatprep.subr.mxu0 0.0
  %440 = vmatpush1.msra.mxu0 0.0
  %441 = vmatprep.subr.mxu0 0.0
  %442 = vmatpush1.msra.mxu0 0.0
  %443 = vmatprep.subr.mxu0 0.0
  %444 = vmatpush1.msra.mxu0 0.0
  %445 = vmatprep.mubr.f32.mxu0 0.0
  %446 = vmatmul.mubr.f32.gmra.mrb[0].mxu0 %v379
  %v447 = vpop.f32.mrb[0].mxu0
  %v448 = vadd.f32 %v376, %v447
  %v449 = vpop.f32.mrb[0].mxu0
  %450 = vdwg.mxu0
  %v451 = vmax.f32 %v448, 0.0
  %v452 = vadd.f32 %v451, %v275
  %v453 = vmax.f32 %v452, 0.0
  %v454 = vld [vmem:[%s10] sm:$0xff]
  %v455 = vld [vmem:[%s10 + $0x8] sm:$0xff]
  %v456 = vld [vmem:[%s10 + $0x10] sm:$0xff]
  %v457 = vld [vmem:[%s10 + $0x18] sm:$0xff]
  %v458 = vld [vmem:[%s11] sm:$0xff]
  %v459 = vld [vmem:[%s11 + $0x8] sm:$0xff]
  %v460 = vld [vmem:[%s11 + $0x10] sm:$0xff]
  %v461 = vld [vmem:[%s11 + $0x18] sm:$0xff]
  %v462 = vld [vmem:[%s12] sm:$0xff]
  %v463 = vld [vmem:[%s12 + $0x8] sm:$0xff]
  %v464 = vld [vmem:[%s12 + $0x10] sm:$0xff]
  %v465 = vld [vmem:[%s12 + $0x18] sm:$0xff]
  %v466 = vld [vmem:[#allocation2] sm:$0x1]
  %v467 = vld [vmem:[%s14] sm:$0xff]
  %v468 = vld [vmem:[%s14 + $0x8] sm:$0xff]
  %v469 = vld [vmem:[%s14 + $0x10] sm:$0xff]
  %v470 = vld [vmem:[%s14 + $0x18] sm:$0xff]
  %472 = vset.pattern.permute.xlu0 0
  %473 = vperm.xlu0 %472, %v458
  %v474 = vpop.permute.xlu0 %473
  %477 = vset.pattern.permute.xlu0 0
  %478 = vperm.xlu0 %477, %v459
  %v479 = vpop.permute.xlu0 %478
  %482 = vset.pattern.permute.xlu0 0
  %483 = vperm.xlu0 %482, %v460
  %v484 = vpop.permute.xlu0 %483
  %487 = vset.pattern.permute.xlu0 0
  %488 = vperm.xlu0 %487, %v461
  %v489 = vpop.permute.xlu0 %488
  %vm491 = vcmask 64512
  %v493 = vsel %vm491, %v454, 0
  %v496 = vsel %vm491, %v455, 0
  %v499 = vsel %vm491, %v456, 0
  %v502 = vsel %vm491, %v457, 0
  %504 = vmatprep.subr.mxu0 0.0
  %505 = vmatpush1.msra.mxu0 %v453
  %506 = vmatprep.subr.mxu0 0.0
  %507 = vmatpush1.msra.mxu0 0.0
  %508 = vmatprep.subr.mxu0 0.0
  %509 = vmatpush1.msra.mxu0 0.0
  %510 = vmatprep.subr.mxu0 0.0
  %511 = vmatpush1.msra.mxu0 0.0
  %512 = vmatprep.subr.mxu0 0.0
  %513 = vmatpush1.msra.mxu0 0.0
  %514 = vmatprep.subr.mxu0 0.0
  %515 = vmatpush1.msra.mxu0 0.0
  %516 = vmatprep.subr.mxu0 0.0
  %517 = vmatpush1.msra.mxu0 0.0
  %518 = vmatprep.subr.mxu0 0.0
  %519 = vmatpush1.msra.mxu0 0.0
  %520 = vmatprep.subr.mxu0 0.0
  %521 = vmatpush1.msra.mxu0 0.0
  %522 = vmatprep.subr.mxu0 0.0
  %523 = vmatpush1.msra.mxu0 0.0
  %524 = vmatprep.subr.mxu0 0.0
  %525 = vmatpush1.msra.mxu0 0.0
  %526 = vmatprep.subr.mxu0 0.0
  %527 = vmatpush1.msra.mxu0 0.0
  %528 = vmatprep.subr.mxu0 0.0
  %529 = vmatpush1.msra.mxu0 0.0
  %530 = vmatprep.subr.mxu0 0.0
  %531 = vmatpush1.msra.mxu0 0.0
  %532 = vmatprep.subr.mxu0 0.0
  %533 = vmatpush1.msra.mxu0 0.0
  %534 = vmatprep.subr.mxu0 0.0
  %535 = vmatpush1.msra.mxu0 0.0
  %536 = vmatprep.subr.mxu0 0.0
  %537 = vmatpush1.msra.mxu0 0.0
  %538 = vmatprep.subr.mxu0 0.0
  %539 = vmatpush1.msra.mxu0 0.0
  %540 = vmatprep.subr.mxu0 0.0
  %541 = vmatpush1.msra.mxu0 0.0
  %542 = vmatprep.subr.mxu0 0.0
  %543 = vmatpush1.msra.mxu0 0.0
  %544 = vmatprep.subr.mxu0 0.0
  %545 = vmatpush1.msra.mxu0 0.0
  %546 = vmatprep.subr.mxu0 0.0
  %547 = vmatpush1.msra.mxu0 0.0
  %548 = vmatprep.subr.mxu0 0.0
  %549 = vmatpush1.msra.mxu0 0.0
  %550 = vmatprep.subr.mxu0 0.0
  %551 = vmatpush1.msra.mxu0 0.0
  %552 = vmatprep.subr.mxu0 0.0
  %553 = vmatpush1.msra.mxu0 0.0
  %554 = vmatprep.subr.mxu0 0.0
  %555 = vmatpush1.msra.mxu0 0.0
  %556 = vmatprep.subr.mxu0 0.0
  %557 = vmatpush1.msra.mxu0 0.0
  %558 = vmatprep.subr.mxu0 0.0
  %559 = vmatpush1.msra.mxu0 0.0
  %560 = vmatprep.subr.mxu0 0.0
  %561 = vmatpush1.msra.mxu0 0.0
  %562 = vmatprep.subr.mxu0 0.0
  %563 = vmatpush1.msra.mxu0 0.0
  %564 = vmatprep.subr.mxu0 0.0
  %565 = vmatpush1.msra.mxu0 0.0
  %566 = vmatprep.subr.mxu0 0.0
  %567 = vmatpush1.msra.mxu0 0.0
  %568 = vmatprep.mubr.f32.mxu0 0.0
  %569 = vmatmul.mubr.f32.gmra.mrb[0].mxu0 %v493
  %v570 = vpop.f32.mrb[0].mxu0
  %v571 = vadd.f32 %v474, %v570
  %v572 = vpop.f32.mrb[0].mxu0
  %573 = vmatprep.mubr.f32.mxu0 0.0
  %574 = vmatmul.mubr.f32.gmra.mrb[0].mxu0 %v496
  %v575 = vpop.f32.mrb[0].mxu0
  %v576 = vadd.f32 %v479, %v575
  %v577 = vpop.f32.mrb[0].mxu0
  %578 = vmatprep.mubr.f32.mxu0 0.0
  %579 = vmatmul.mubr.f32.gmra.mrb[0].mxu0 %v499
  %v580 = vpop.f32.mrb[0].mxu0
  %v581 = vadd.f32 %v484, %v580
  %v582 = vpop.f32.mrb[0].mxu0
  %583 = vmatprep.mubr.f32.mxu0 0.0
  %584 = vmatmul.mubr.f32.gmra.mrb[0].mxu0 %v502
  %v585 = vpop.f32.mrb[0].mxu0
  %v586 = vadd.f32 %v489, %v585
  %v587 = vpop.f32.mrb[0].mxu0
  %588 = vdwg.mxu0
  %v590 = vlaneseq
  %v591 = vshrl.u32 %v590, 7
  %v592 = vsub.s32 0, %v591
  %v593 = vrot.slane %v466, %v592
  %594 = vset.pattern.permute.xlu0 0
  %595 = vperm.xlu0 %594, %v593
  %v596 = vpop.permute.xlu0 %595
  %vm598 = vcmask 261120
  %v600 = vsel %vm598, %v571, 0
  %v603 = vsel %vm598, %v576, 0
  %v606 = vsel %vm598, %v581, 0
  %v609 = vsel %vm598, %v586, 0
  %611 = vmatprep.subr.mxu0 0.0
  %612 = vmatpush1.msra.mxu0 %v462
  %613 = vmatprep.subr.mxu0 0.0
  %614 = vmatpush1.msra.mxu0 %v463
  %615 = vmatprep.subr.mxu0 0.0
  %616 = vmatpush1.msra.mxu0 %v464
  %617 = vmatprep.subr.mxu0 0.0
  %618 = vmatpush1.msra.mxu0 %v465
  %619 = vmatprep.subr.mxu0 0.0
  %620 = vmatpush1.msra.mxu0 0.0
  %621 = vmatprep.subr.mxu0 0.0
  %622 = vmatpush1.msra.mxu0 0.0
  %623 = vmatprep.subr.mxu0 0.0
  %624 = vmatpush1.msra.mxu0 0.0
  %625 = vmatprep.subr.mxu0 0.0
  %626 = vmatpush1.msra.mxu0 0.0
  %627 = vmatprep.subr.mxu0 0.0
  %628 = vmatpush1.msra.mxu0 0.0
  %629 = vmatprep.subr.mxu0 0.0
  %630 = vmatpush1.msra.mxu0 0.0
  %631 = vmatprep.subr.mxu0 0.0
  %632 = vmatpush1.msra.mxu0 0.0
  %633 = vmatprep.subr.mxu0 0.0
  %634 = vmatpush1.msra.mxu0 0.0
  %635 = vmatprep.subr.mxu0 0.0
  %636 = vmatpush1.msra.mxu0 0.0
  %637 = vmatprep.subr.mxu0 0.0
  %638 = vmatpush1.msra.mxu0 0.0
  %639 = vmatprep.subr.mxu0 0.0
  %640 = vmatpush1.msra.mxu0 0.0
  %641 = vmatprep.subr.mxu0 0.0
  %642 = vmatpush1.msra.mxu0 0.0
  %643 = vmatprep.subr.mxu0 0.0
  %644 = vmatpush1.msra.mxu0 0.0
  %645 = vmatprep.subr.mxu0 0.0
  %646 = vmatpush1.msra.mxu0 0.0
  %647 = vmatprep.subr.mxu0 0.0
  %648 = vmatpush1.msra.mxu0 0.0
  %649 = vmatprep.subr.mxu0 0.0
  %650 = vmatpush1.msra.mxu0 0.0
  %651 = vmatprep.subr.mxu0 0.0
  %652 = vmatpush1.msra.mxu0 0.0
  %653 = vmatprep.subr.mxu0 0.0
  %654 = vmatpush1.msra.mxu0 0.0
  %655 = vmatprep.subr.mxu0 0.0
  %656 = vmatpush1.msra.mxu0 0.0
  %657 = vmatprep.subr.mxu0 0.0
  %658 = vmatpush1.msra.mxu0 0.0
  %659 = vmatprep.subr.mxu0 0.0
  %660 = vmatpush1.msra.mxu0 0.0
  %661 = vmatprep.subr.mxu0 0.0
  %662 = vmatpush1.msra.mxu0 0.0
  %663 = vmatprep.subr.mxu0 0.0
  %664 = vmatpush1.msra.mxu0 0.0
  %665 = vmatprep.subr.mxu0 0.0
  %666 = vmatpush1.msra.mxu0 0.0
  %667 = vmatprep.subr.mxu0 0.0
  %668 = vmatpush1.msra.mxu0 0.0
  %669 = vmatprep.subr.mxu0 0.0
  %670 = vmatpush1.msra.mxu0 0.0
  %671 = vmatprep.subr.mxu0 0.0
  %672 = vmatpush1.msra.mxu0 0.0
  %673 = vmatprep.subr.mxu0 0.0
  %674 = vmatpush1.msra.mxu0 0.0
  %675 = vmatprep.mubr.f32.mxu0 0.0
  %676 = vmatmul.mubr.f32.gmra.mrb[0].mxu0 %v600
  %v677 = vpop.f32.mrb[0].mxu0
  %v678 = vadd.f32 %v596, %v677
  %v679 = vpop.f32.mrb[0].mxu0
  %680 = vmatprep.mubr.f32.mxu0 0.0
  %681 = vmatmul.mubr.f32.gmra.mrb[0].mxu0 %v603
  %v682 = vpop.f32.mrb[0].mxu0
  %v683 = vadd.f32 %v596, %v682
  %v684 = vpop.f32.mrb[0].mxu0
  %685 = vmatprep.mubr.f32.mxu0 0.0
  %686 = vmatmul.mubr.f32.gmra.mrb[0].mxu0 %v606
  %v687 = vpop.f32.mrb[0].mxu0
  %v688 = vadd.f32 %v596, %v687
  %v689 = vpop.f32.mrb[0].mxu0
  %690 = vmatprep.mubr.f32.mxu0 0.0
  %691 = vmatmul.mubr.f32.gmra.mrb[0].mxu0 %v609
  %v692 = vpop.f32.mrb[0].mxu0
  %v693 = vadd.f32 %v596, %v692
  %v694 = vpop.f32.mrb[0].mxu0
  %695 = vdwg.mxu0
  %696 = vmatprep.subr.mxu0 0.0
  %697 = vmatpush1.msra.mxu0 %v467
  %698 = vmatprep.subr.mxu0 0.0
  %699 = vmatpush1.msra.mxu0 %v468
  %700 = vmatprep.subr.mxu0 0.0
  %701 = vmatpush1.msra.mxu0 %v469
  %702 = vmatprep.subr.mxu0 0.0
  %703 = vmatpush1.msra.mxu0 %v470
  %704 = vmatprep.subr.mxu0 0.0
  %705 = vmatpush1.msra.mxu0 0.0
  %706 = vmatprep.subr.mxu0 0.0
  %707 = vmatpush1.msra.mxu0 0.0
  %708 = vmatprep.subr.mxu0 0.0
  %709 = vmatpush1.msra.mxu0 0.0
  %710 = vmatprep.subr.mxu0 0.0
  %711 = vmatpush1.msra.mxu0 0.0
  %712 = vmatprep.subr.mxu0 0.0
  %713 = vmatpush1.msra.mxu0 0.0
  %714 = vmatprep.subr.mxu0 0.0
  %715 = vmatpush1.msra.mxu0 0.0
  %716 = vmatprep.subr.mxu0 0.0
  %717 = vmatpush1.msra.mxu0 0.0
  %718 = vmatprep.subr.mxu0 0.0
  %719 = vmatpush1.msra.mxu0 0.0
  %720 = vmatprep.subr.mxu0 0.0
  %721 = vmatpush1.msra.mxu0 0.0
  %722 = vmatprep.subr.mxu0 0.0
  %723 = vmatpush1.msra.mxu0 0.0
  %724 = vmatprep.subr.mxu0 0.0
  %725 = vmatpush1.msra.mxu0 0.0
  %726 = vmatprep.subr.mxu0 0.0
  %727 = vmatpush1.msra.mxu0 0.0
  %728 = vmatprep.subr.mxu0 0.0
  %729 = vmatpush1.msra.mxu0 0.0
  %730 = vmatprep.subr.mxu0 0.0
  %731 = vmatpush1.msra.mxu0 0.0
  %732 = vmatprep.subr.mxu0 0.0
  %733 = vmatpush1.msra.mxu0 0.0
  %734 = vmatprep.subr.mxu0 0.0
  %735 = vmatpush1.msra.mxu0 0.0
  %736 = vmatprep.subr.mxu0 0.0
  %737 = vmatpush1.msra.mxu0 0.0
  %738 = vmatprep.subr.mxu0 0.0
  %739 = vmatpush1.msra.mxu0 0.0
  %740 = vmatprep.subr.mxu0 0.0
  %741 = vmatpush1.msra.mxu0 0.0
  %742 = vmatprep.subr.mxu0 0.0
  %743 = vmatpush1.msra.mxu0 0.0
  %744 = vmatprep.subr.mxu0 0.0
  %745 = vmatpush1.msra.mxu0 0.0
  %746 = vmatprep.subr.mxu0 0.0
  %747 = vmatpush1.msra.mxu0 0.0
  %748 = vmatprep.subr.mxu0 0.0
  %749 = vmatpush1.msra.mxu0 0.0
  %750 = vmatprep.subr.mxu0 0.0
  %751 = vmatpush1.msra.mxu0 0.0
  %752 = vmatprep.subr.mxu0 0.0
  %753 = vmatpush1.msra.mxu0 0.0
  %754 = vmatprep.subr.mxu0 0.0
  %755 = vmatpush1.msra.mxu0 0.0
  %756 = vmatprep.subr.mxu0 0.0
  %757 = vmatpush1.msra.mxu0 0.0
  %758 = vmatprep.subr.mxu0 0.0
  %759 = vmatpush1.msra.mxu0 0.0
  %760 = vmatprep.mubr.f32.mxu0 0.0
  %761 = vmatmul.mubr.f32.gmra.mrb[0].mxu0 %v600
  %v762 = vpop.f32.mrb[0].mxu0
  %v763 = vadd.f32 0.0, %v762
  %v764 = vpop.f32.mrb[0].mxu0
  %765 = vmatprep.mubr.f32.mxu0 0.0
  %766 = vmatmul.mubr.f32.gmra.mrb[0].mxu0 %v603
  %v767 = vpop.f32.mrb[0].mxu0
  %v768 = vadd.f32 0.0, %v767
  %v769 = vpop.f32.mrb[0].mxu0
  %770 = vmatprep.mubr.f32.mxu0 0.0
  %771 = vmatmul.mubr.f32.gmra.mrb[0].mxu0 %v606
  %v772 = vpop.f32.mrb[0].mxu0
  %v773 = vadd.f32 0.0, %v772
  %v774 = vpop.f32.mrb[0].mxu0
  %775 = vmatprep.mubr.f32.mxu0 0.0
  %776 = vmatmul.mubr.f32.gmra.mrb[0].mxu0 %v609
  %v777 = vpop.f32.mrb[0].mxu0
  %v778 = vadd.f32 0.0, %v777
  %v779 = vpop.f32.mrb[0].mxu0
  %780 = vdwg.mxu0
  %v781 = vld [vmem:[%s15] sm:$0xff]
  %v782 = vld [vmem:[%s15 + $0x8] sm:$0xff]
  %v783 = vld [vmem:[%s15 + $0x10] sm:$0xff]
  %v784 = vld [vmem:[%s15 + $0x18] sm:$0xff]
  %v785 = vld [vmem:[%s15 + $0x20] sm:$0xff]
  %v786 = vld [vmem:[%s15 + $0x28] sm:$0xff]
  %v787 = vld [vmem:[%s15 + $0x30] sm:$0xff]
  %v788 = vld [vmem:[%s15 + $0x38] sm:$0xff]
  %v789 = vld [vmem:[%s15 + $0x40] sm:$0xff]
  %v790 = vld [vmem:[%s15 + $0x48] sm:$0xff]
  %v791 = vld [vmem:[%s15 + $0x50] sm:$0xff]
  %v792 = vld [vmem:[%s15 + $0x58] sm:$0xff]
  %v793 = vld [vmem:[%s15 + $0x60] sm:$0xff]
  %v794 = vld [vmem:[%s15 + $0x68] sm:$0xff]
  %v795 = vld [vmem:[%s15 + $0x70] sm:$0xff]
  %v796 = vld [vmem:[%s15 + $0x78] sm:$0xff]
  %v797 = vld [vmem:[%s16] sm:$0xff]
  %v798 = vld [vmem:[%s16 + $0x8] sm:$0xff]
  %v799 = vld [vmem:[%s16 + $0x10] sm:$0xff]
  %v800 = vld [vmem:[%s16 + $0x18] sm:$0xff]
  %v801 = vld [vmem:[%s16 + $0x20] sm:$0xff]
  %v802 = vld [vmem:[%s16 + $0x28] sm:$0xff]
  %v803 = vld [vmem:[%s16 + $0x30] sm:$0xff]
  %v804 = vld [vmem:[%s16 + $0x38] sm:$0xff]
  %v805 = vld [vmem:[%s16 + $0x40] sm:$0xff]
  %v806 = vld [vmem:[%s16 + $0x48] sm:$0xff]
  %v807 = vld [vmem:[%s16 + $0x50] sm:$0xff]
  %v808 = vld [vmem:[%s16 + $0x58] sm:$0xff]
  %v809 = vld [vmem:[%s16 + $0x60] sm:$0xff]
  %v810 = vld [vmem:[%s16 + $0x68] sm:$0xff]
  %v811 = vld [vmem:[%s16 + $0x70] sm:$0xff]
  %v812 = vld [vmem:[%s16 + $0x78] sm:$0xff]
  %v813 = vld [vmem:[%s17] sm:$0xff]
  %v814 = vld [vmem:[%s17 + $0x8] sm:$0xff]
  %v815 = vld [vmem:[%s17 + $0x10] sm:$0xff]
  %v816 = vld [vmem:[%s17 + $0x18] sm:$0xff]
  %v817 = vld [vmem:[%s17 + $0x20] sm:$0xff]
  %v818 = vld [vmem:[%s17 + $0x28] sm:$0xff]
  %v819 = vld [vmem:[%s17 + $0x30] sm:$0xff]
  %v820 = vld [vmem:[%s17 + $0x38] sm:$0xff]
  %v821 = vld [vmem:[%s17 + $0x40] sm:$0xff]
  %v822 = vld [vmem:[%s17 + $0x48] sm:$0xff]
  %v823 = vld [vmem:[%s17 + $0x50] sm:$0xff]
  %v824 = vld [vmem:[%s17 + $0x58] sm:$0xff]
  %v825 = vld [vmem:[%s17 + $0x60] sm:$0xff]
  %v826 = vld [vmem:[%s17 + $0x68] sm:$0xff]
  %v827 = vld [vmem:[%s17 + $0x70] sm:$0xff]
  %v828 = vld [vmem:[%s17 + $0x78] sm:$0xff]
  %v829 = vld [vmem:[%s18] sm:$0x3]
  %v830 = vld [vmem:[%s19] sm:$0x3]
  %v831 = vld [vmem:[%s1] sm:$0x3]
  %v833 = vsel %vm598, %v797, 0
  %v836 = vsel %vm598, %v798, 0
  %v839 = vsel %vm598, %v799, 0
  %v842 = vsel %vm598, %v800, 0
  %v845 = vsel %vm598, %v801, 0
  %v848 = vsel %vm598, %v802, 0
  %v851 = vsel %vm598, %v803, 0
  %v854 = vsel %vm598, %v804, 0
  %v857 = vsel %vm598, %v805, 0
  %v860 = vsel %vm598, %v806, 0
  %v863 = vsel %vm598, %v807, 0
  %v866 = vsel %vm598, %v808, 0
  %v869 = vsel %vm598, %v809, 0
  %v872 = vsel %vm598, %v810, 0
  %v875 = vsel %vm598, %v811, 0
  %v878 = vsel %vm598, %v812, 0
  %880 = vmatprep.subr.mxu0 0.0
  %881 = vmatpush1.msra.mxu0 %v763
  %882 = vmatprep.subr.mxu0 0.0
  %883 = vmatpush1.msra.mxu0 %v768
  %884 = vmatprep.subr.mxu0 0.0
  %885 = vmatpush1.msra.mxu0 %v773
  %886 = vmatprep.subr.mxu0 0.0
  %887 = vmatpush1.msra.mxu0 %v778
  %888 = vmatprep.subr.mxu0 0.0
  %889 = vmatpush1.msra.mxu0 0.0
  %890 = vmatprep.subr.mxu0 0.0
  %891 = vmatpush1.msra.mxu0 0.0
  %892 = vmatprep.subr.mxu0 0.0
  %893 = vmatpush1.msra.mxu0 0.0
  %894 = vmatprep.subr.mxu0 0.0
  %895 = vmatpush1.msra.mxu0 0.0
  %896 = vmatprep.subr.mxu0 0.0
  %897 = vmatpush1.msra.mxu0 0.0
  %898 = vmatprep.subr.mxu0 0.0
  %899 = vmatpush1.msra.mxu0 0.0
  %900 = vmatprep.subr.mxu0 0.0
  %901 = vmatpush1.msra.mxu0 0.0
  %902 = vmatprep.subr.mxu0 0.0
  %903 = vmatpush1.msra.mxu0 0.0
  %904 = vmatprep.subr.mxu0 0.0
  %905 = vmatpush1.msra.mxu0 0.0
  %906 = vmatprep.subr.mxu0 0.0
  %907 = vmatpush1.msra.mxu0 0.0
  %908 = vmatprep.subr.mxu0 0.0
  %909 = vmatpush1.msra.mxu0 0.0
  %910 = vmatprep.subr.mxu0 0.0
  %911 = vmatpush1.msra.mxu0 0.0
  %912 = vmatprep.subr.mxu0 0.0
  %913 = vmatpush1.msra.mxu0 0.0
  %914 = vmatprep.subr.mxu0 0.0
  %915 = vmatpush1.msra.mxu0 0.0
  %916 = vmatprep.subr.mxu0 0.0
  %917 = vmatpush1.msra.mxu0 0.0
  %918 = vmatprep.subr.mxu0 0.0
  %919 = vmatpush1.msra.mxu0 0.0
  %920 = vmatprep.subr.mxu0 0.0
  %921 = vmatpush1.msra.mxu0 0.0
  %922 = vmatprep.subr.mxu0 0.0
  %923 = vmatpush1.msra.mxu0 0.0
  %924 = vmatprep.subr.mxu0 0.0
  %925 = vmatpush1.msra.mxu0 0.0
  %926 = vmatprep.subr.mxu0 0.0
  %927 = vmatpush1.msra.mxu0 0.0
  %928 = vmatprep.subr.mxu0 0.0
  %929 = vmatpush1.msra.mxu0 0.0
  %930 = vmatprep.subr.mxu0 0.0
  %931 = vmatpush1.msra.mxu0 0.0
  %932 = vmatprep.subr.mxu0 0.0
  %933 = vmatpush1.msra.mxu0 0.0
  %934 = vmatprep.subr.mxu0 0.0
  %935 = vmatpush1.msra.mxu0 0.0
  %936 = vmatprep.subr.mxu0 0.0
  %937 = vmatpush1.msra.mxu0 0.0
  %938 = vmatprep.subr.mxu0 0.0
  %939 = vmatpush1.msra.mxu0 0.0
  %940 = vmatprep.subr.mxu0 0.0
  %941 = vmatpush1.msra.mxu0 0.0
  %942 = vmatprep.subr.mxu0 0.0
  %943 = vmatpush1.msra.mxu0 0.0
  %944 = vmatprep.mubr.f32.mxu0 0.0
  %945 = vmatmul.mubr.f32.gmra.mrb[0].mxu0 %v833
  %v946 = vpop.f32.mrb[0].mxu0
  %v947 = vadd.f32 0.0, %v946
  %v948 = vpop.f32.mrb[0].mxu0
  %949 = vmatprep.mubr.f32.mxu0 0.0
  %950 = vmatmul.mubr.f32.gmra.mrb[0].mxu0 %v836
  %v951 = vpop.f32.mrb[0].mxu0
  %v952 = vadd.f32 0.0, %v951
  %v953 = vpop.f32.mrb[0].mxu0
  %954 = vmatprep.mubr.f32.mxu0 0.0
  %955 = vmatmul.mubr.f32.gmra.mrb[0].mxu0 %v839
  %v956 = vpop.f32.mrb[0].mxu0
  %v957 = vadd.f32 0.0, %v956
  %v958 = vpop.f32.mrb[0].mxu0
  %959 = vmatprep.mubr.f32.mxu0 0.0
  %960 = vmatmul.mubr.f32.gmra.mrb[0].mxu0 %v842
  %v961 = vpop.f32.mrb[0].mxu0
  %v962 = vadd.f32 0.0, %v961
  %v963 = vpop.f32.mrb[0].mxu0
  %964 = vmatprep.mubr.f32.mxu0 0.0
  %965 = vmatmul.mubr.f32.gmra.mrb[0].mxu0 %v845
  %v966 = vpop.f32.mrb[0].mxu0
  %v967 = vadd.f32 0.0, %v966
  %v968 = vpop.f32.mrb[0].mxu0
  %969 = vmatprep.mubr.f32.mxu0 0.0
  %970 = vmatmul.mubr.f32.gmra.mrb[0].mxu0 %v848
  %v971 = vpop.f32.mrb[0].mxu0
  %v972 = vadd.f32 0.0, %v971
  %v973 = vpop.f32.mrb[0].mxu0
  %974 = vmatprep.mubr.f32.mxu0 0.0
  %975 = vmatmul.mubr.f32.gmra.mrb[0].mxu0 %v851
  %v976 = vpop.f32.mrb[0].mxu0
  %v977 = vadd.f32 0.0, %v976
  %v978 = vpop.f32.mrb[0].mxu0
  %979 = vmatprep.mubr.f32.mxu0 0.0
  %980 = vmatmul.mubr.f32.gmra.mrb[0].mxu0 %v854
  %v981 = vpop.f32.mrb[0].mxu0
  %v982 = vadd.f32 0.0, %v981
  %v983 = vpop.f32.mrb[0].mxu0
  %984 = vmatprep.mubr.f32.mxu0 0.0
  %985 = vmatmul.mubr.f32.gmra.mrb[0].mxu0 %v857
  %v986 = vpop.f32.mrb[0].mxu0
  %v987 = vadd.f32 0.0, %v986
  %v988 = vpop.f32.mrb[0].mxu0
  %989 = vmatprep.mubr.f32.mxu0 0.0
  %990 = vmatmul.mubr.f32.gmra.mrb[0].mxu0 %v860
  %v991 = vpop.f32.mrb[0].mxu0
  %v992 = vadd.f32 0.0, %v991
  %v993 = vpop.f32.mrb[0].mxu0
  %994 = vmatprep.mubr.f32.mxu0 0.0
  %995 = vmatmul.mubr.f32.gmra.mrb[0].mxu0 %v863
  %v996 = vpop.f32.mrb[0].mxu0
  %v997 = vadd.f32 0.0, %v996
  %v998 = vpop.f32.mrb[0].mxu0
  %999 = vmatprep.mubr.f32.mxu0 0.0
  %1000 = vmatmul.mubr.f32.gmra.mrb[0].mxu0 %v866
  %v1001 = vpop.f32.mrb[0].mxu0
  %v1002 = vadd.f32 0.0, %v1001
  %v1003 = vpop.f32.mrb[0].mxu0
  %1004 = vmatprep.mubr.f32.mxu0 0.0
  %1005 = vmatmul.mubr.f32.gmra.mrb[0].mxu0 %v869
  %v1006 = vpop.f32.mrb[0].mxu0
  %v1007 = vadd.f32 0.0, %v1006
  %v1008 = vpop.f32.mrb[0].mxu0
  %1009 = vmatprep.mubr.f32.mxu0 0.0
  %1010 = vmatmul.mubr.f32.gmra.mrb[0].mxu0 %v872
  %v1011 = vpop.f32.mrb[0].mxu0
  %v1012 = vadd.f32 0.0, %v1011
  %v1013 = vpop.f32.mrb[0].mxu0
  %1014 = vmatprep.mubr.f32.mxu0 0.0
  %1015 = vmatmul.mubr.f32.gmra.mrb[0].mxu0 %v875
  %v1016 = vpop.f32.mrb[0].mxu0
  %v1017 = vadd.f32 0.0, %v1016
  %v1018 = vpop.f32.mrb[0].mxu0
  %1019 = vmatprep.mubr.f32.mxu0 0.0
  %1020 = vmatmul.mubr.f32.gmra.mrb[0].mxu0 %v878
  %v1021 = vpop.f32.mrb[0].mxu0
  %v1022 = vadd.f32 0.0, %v1021
  %v1023 = vpop.f32.mrb[0].mxu0
  %1024 = vdwg.mxu0
  %v1026 = vsel %vm284, %v781, 0
  %v1029 = vsel %vm284, %v782, 0
  %v1032 = vsel %vm284, %v783, 0
  %v1035 = vsel %vm284, %v784, 0
  %v1038 = vsel %vm284, %v785, 0
  %v1041 = vsel %vm284, %v786, 0
  %v1044 = vsel %vm284, %v787, 0
  %v1047 = vsel %vm284, %v788, 0
  %v1050 = vsel %vm284, %v789, 0
  %v1053 = vsel %vm284, %v790, 0
  %v1056 = vsel %vm284, %v791, 0
  %v1059 = vsel %vm284, %v792, 0
  %v1062 = vsel %vm284, %v793, 0
  %v1065 = vsel %vm284, %v794, 0
  %v1068 = vsel %vm284, %v795, 0
  %v1071 = vsel %vm284, %v796, 0
  %vm1073 = vcmask 1041408
  %v1075 = vsel %vm1073, %v831, 0
  %1077 = vmatprep.subr.mxu0 0.0
  %1078 = vmatpush1.msra.mxu0 %v1075
  %1079 = vmatprep.subr.mxu0 0.0
  %1080 = vmatpush1.msra.mxu0 0.0
  %1081 = vmatprep.subr.mxu0 0.0
  %1082 = vmatpush1.msra.mxu0 0.0
  %1083 = vmatprep.subr.mxu0 0.0
  %1084 = vmatpush1.msra.mxu0 0.0
  %1085 = vmatprep.subr.mxu0 0.0
  %1086 = vmatpush1.msra.mxu0 0.0
  %1087 = vmatprep.subr.mxu0 0.0
  %1088 = vmatpush1.msra.mxu0 0.0
  %1089 = vmatprep.subr.mxu0 0.0
  %1090 = vmatpush1.msra.mxu0 0.0
  %1091 = vmatprep.subr.mxu0 0.0
  %1092 = vmatpush1.msra.mxu0 0.0
  %1093 = vmatprep.subr.mxu0 0.0
  %1094 = vmatpush1.msra.mxu0 0.0
  %1095 = vmatprep.subr.mxu0 0.0
  %1096 = vmatpush1.msra.mxu0 0.0
  %1097 = vmatprep.subr.mxu0 0.0
  %1098 = vmatpush1.msra.mxu0 0.0
  %1099 = vmatprep.subr.mxu0 0.0
  %1100 = vmatpush1.msra.mxu0 0.0
  %1101 = vmatprep.subr.mxu0 0.0
  %1102 = vmatpush1.msra.mxu0 0.0
  %1103 = vmatprep.subr.mxu0 0.0
  %1104 = vmatpush1.msra.mxu0 0.0
  %1105 = vmatprep.subr.mxu0 0.0
  %1106 = vmatpush1.msra.mxu0 0.0
  %1107 = vmatprep.subr.mxu0 0.0
  %1108 = vmatpush1.msra.mxu0 0.0
  %1109 = vmatprep.subr.mxu0 0.0
  %1110 = vmatpush1.msra.mxu0 0.0
  %1111 = vmatprep.subr.mxu0 0.0
  %1112 = vmatpush1.msra.mxu0 0.0
  %1113 = vmatprep.subr.mxu0 0.0
  %1114 = vmatpush1.msra.mxu0 0.0
  %1115 = vmatprep.subr.mxu0 0.0
  %1116 = vmatpush1.msra.mxu0 0.0
  %1117 = vmatprep.subr.mxu0 0.0
  %1118 = vmatpush1.msra.mxu0 0.0
  %1119 = vmatprep.subr.mxu0 0.0
  %1120 = vmatpush1.msra.mxu0 0.0
  %1121 = vmatprep.subr.mxu0 0.0
  %1122 = vmatpush1.msra.mxu0 0.0
  %1123 = vmatprep.subr.mxu0 0.0
  %1124 = vmatpush1.msra.mxu0 0.0
  %1125 = vmatprep.subr.mxu0 0.0
  %1126 = vmatpush1.msra.mxu0 0.0
  %1127 = vmatprep.subr.mxu0 0.0
  %1128 = vmatpush1.msra.mxu0 0.0
  %1129 = vmatprep.subr.mxu0 0.0
  %1130 = vmatpush1.msra.mxu0 0.0
  %1131 = vmatprep.subr.mxu0 0.0
  %1132 = vmatpush1.msra.mxu0 0.0
  %1133 = vmatprep.subr.mxu0 0.0
  %1134 = vmatpush1.msra.mxu0 0.0
  %1135 = vmatprep.subr.mxu0 0.0
  %1136 = vmatpush1.msra.mxu0 0.0
  %1137 = vmatprep.subr.mxu0 0.0
  %1138 = vmatpush1.msra.mxu0 0.0
  %1139 = vmatprep.subr.mxu0 0.0
  %1140 = vmatpush1.msra.mxu0 0.0
  %1141 = vmatprep.mubr.f32.mxu0 0.0
  %1142 = vmatmul.mubr.f32.gmra.mrb[0].mxu0 %v1026
  %v1143 = vpop.f32.mrb[0].mxu0
  %v1144 = vadd.f32 %v947, %v1143
  %v1145 = vpop.f32.mrb[0].mxu0
  %1146 = vmatprep.mubr.f32.mxu0 0.0
  %1147 = vmatmul.mubr.f32.gmra.mrb[0].mxu0 %v1029
  %v1148 = vpop.f32.mrb[0].mxu0
  %v1149 = vadd.f32 %v952, %v1148
  %v1150 = vpop.f32.mrb[0].mxu0
  %1151 = vmatprep.mubr.f32.mxu0 0.0
  %1152 = vmatmul.mubr.f32.gmra.mrb[0].mxu0 %v1032
  %v1153 = vpop.f32.mrb[0].mxu0
  %v1154 = vadd.f32 %v957, %v1153
  %v1155 = vpop.f32.mrb[0].mxu0
  %1156 = vmatprep.mubr.f32.mxu0 0.0
  %1157 = vmatmul.mubr.f32.gmra.mrb[0].mxu0 %v1035
  %v1158 = vpop.f32.mrb[0].mxu0
  %v1159 = vadd.f32 %v962, %v1158
  %v1160 = vpop.f32.mrb[0].mxu0
  %1161 = vmatprep.mubr.f32.mxu0 0.0
  %1162 = vmatmul.mubr.f32.gmra.mrb[0].mxu0 %v1038
  %v1163 = vpop.f32.mrb[0].mxu0
  %v1164 = vadd.f32 %v967, %v1163
  %v1165 = vpop.f32.mrb[0].mxu0
  %1166 = vmatprep.mubr.f32.mxu0 0.0
  %1167 = vmatmul.mubr.f32.gmra.mrb[0].mxu0 %v1041
  %v1168 = vpop.f32.mrb[0].mxu0
  %v1169 = vadd.f32 %v972, %v1168
  %v1170 = vpop.f32.mrb[0].mxu0
  %1171 = vmatprep.mubr.f32.mxu0 0.0
  %1172 = vmatmul.mubr.f32.gmra.mrb[0].mxu0 %v1044
  %v1173 = vpop.f32.mrb[0].mxu0
  %v1174 = vadd.f32 %v977, %v1173
  %v1175 = vpop.f32.mrb[0].mxu0
  %1176 = vmatprep.mubr.f32.mxu0 0.0
  %1177 = vmatmul.mubr.f32.gmra.mrb[0].mxu0 %v1047
  %v1178 = vpop.f32.mrb[0].mxu0
  %v1179 = vadd.f32 %v982, %v1178
  %v1180 = vpop.f32.mrb[0].mxu0
  %1181 = vmatprep.mubr.f32.mxu0 0.0
  %1182 = vmatmul.mubr.f32.gmra.mrb[0].mxu0 %v1050
  %v1183 = vpop.f32.mrb[0].mxu0
  %v1184 = vadd.f32 %v987, %v1183
  %v1185 = vpop.f32.mrb[0].mxu0
  %1186 = vmatprep.mubr.f32.mxu0 0.0
  %1187 = vmatmul.mubr.f32.gmra.mrb[0].mxu0 %v1053
  %v1188 = vpop.f32.mrb[0].mxu0
  %v1189 = vadd.f32 %v992, %v1188
  %v1190 = vpop.f32.mrb[0].mxu0
  %1191 = vmatprep.mubr.f32.mxu0 0.0
  %1192 = vmatmul.mubr.f32.gmra.mrb[0].mxu0 %v1056
  %v1193 = vpop.f32.mrb[0].mxu0
  %v1194 = vadd.f32 %v997, %v1193
  %v1195 = vpop.f32.mrb[0].mxu0
  %1196 = vmatprep.mubr.f32.mxu0 0.0
  %1197 = vmatmul.mubr.f32.gmra.mrb[0].mxu0 %v1059
  %v1198 = vpop.f32.mrb[0].mxu0
  %v1199 = vadd.f32 %v1002, %v1198
  %v1200 = vpop.f32.mrb[0].mxu0
  %1201 = vmatprep.mubr.f32.mxu0 0.0
  %1202 = vmatmul.mubr.f32.gmra.mrb[0].mxu0 %v1062
  %v1203 = vpop.f32.mrb[0].mxu0
  %v1204 = vadd.f32 %v1007, %v1203
  %v1205 = vpop.f32.mrb[0].mxu0
  %1206 = vmatprep.mubr.f32.mxu0 0.0
  %1207 = vmatmul.mubr.f32.gmra.mrb[0].mxu0 %v1065
  %v1208 = vpop.f32.mrb[0].mxu0
  %v1209 = vadd.f32 %v1012, %v1208
  %v1210 = vpop.f32.mrb[0].mxu0
  %1211 = vmatprep.mubr.f32.mxu0 0.0
  %1212 = vmatmul.mubr.f32.gmra.mrb[0].mxu0 %v1068
  %v1213 = vpop.f32.mrb[0].mxu0
  %v1214 = vadd.f32 %v1017, %v1213
  %v1215 = vpop.f32.mrb[0].mxu0
  %1216 = vmatprep.mubr.f32.mxu0 0.0
  %1217 = vmatmul.mubr.f32.gmra.mrb[0].mxu0 %v1071
  %v1218 = vpop.f32.mrb[0].mxu0
  %v1219 = vadd.f32 %v1022, %v1218
  %v1220 = vpop.f32.mrb[0].mxu0
  %1221 = vdwg.mxu0
  %v1222 = vadd.f32 %v1144, %v813
  %v1223 = vadd.f32 %v1149, %v814
  %v1224 = vadd.f32 %v1154, %v815
  %v1225 = vadd.f32 %v1159, %v816
  %v1226 = vadd.f32 %v1164, %v817
  %v1227 = vadd.f32 %v1169, %v818
  %v1228 = vadd.f32 %v1174, %v819
  %v1229 = vadd.f32 %v1179, %v820
  %v1230 = vadd.f32 %v1184, %v821
  %v1231 = vadd.f32 %v1189, %v822
  %v1232 = vadd.f32 %v1194, %v823
  %v1233 = vadd.f32 %v1199, %v824
  %v1234 = vadd.f32 %v1204, %v825
  %v1235 = vadd.f32 %v1209, %v826
  %v1236 = vadd.f32 %v1214, %v827
  %v1237 = vadd.f32 %v1219, %v828
  %v1238 = vxor.u32 %v1222, 2147483648
  %v1239 = vxor.u32 %v1223, 2147483648
  %v1240 = vxor.u32 %v1224, 2147483648
  %v1241 = vxor.u32 %v1225, 2147483648
  %v1242 = vmul.f32 %v1238, 1.442695
  %v1243 = vpow.pop %v1242
  %v1244 = vmul.f32 %v1239, 1.442695
  %v1245 = vpow.pop %v1244
  %v1246 = vmul.f32 %v1240, 1.442695
  %v1247 = vpow.pop %v1246
  %v1248 = vmul.f32 %v1241, 1.442695
  %v1249 = vpow.pop %v1248
  %v1250 = vadd.f32 %v1243, 1.0
  %v1251 = vadd.f32 %v1245, 1.0
  %v1252 = vadd.f32 %v1247, 1.0
  %v1253 = vadd.f32 %v1249, 1.0
  %v1254 = vrcp.pop %v1250
  %v1255 = vmul.f32 1.0, %v1254
  %v1256 = vrcp.pop %v1251
  %v1257 = vmul.f32 1.0, %v1256
  %v1258 = vrcp.pop %v1252
  %v1259 = vmul.f32 1.0, %v1258
  %v1260 = vrcp.pop %v1253
  %v1261 = vmul.f32 1.0, %v1260
  %v1262 = vxor.u32 %v1226, 2147483648
  %v1263 = vxor.u32 %v1227, 2147483648
  %v1264 = vxor.u32 %v1228, 2147483648
  %v1265 = vxor.u32 %v1229, 2147483648
  %v1266 = vmul.f32 %v1262, 1.442695
  %v1267 = vpow.pop %v1266
  %v1268 = vmul.f32 %v1263, 1.442695
  %v1269 = vpow.pop %v1268
  %v1270 = vmul.f32 %v1264, 1.442695
  %v1271 = vpow.pop %v1270
  %v1272 = vmul.f32 %v1265, 1.442695
  %v1273 = vpow.pop %v1272
  %v1274 = vadd.f32 %v1267, 1.0
  %v1275 = vadd.f32 %v1269, 1.0
  %v1276 = vadd.f32 %v1271, 1.0
  %v1277 = vadd.f32 %v1273, 1.0
  %v1278 = vrcp.pop %v1274
  %v1279 = vmul.f32 1.0, %v1278
  %v1280 = vrcp.pop %v1275
  %v1281 = vmul.f32 1.0, %v1280
  %v1282 = vrcp.pop %v1276
  %v1283 = vmul.f32 1.0, %v1282
  %v1284 = vrcp.pop %v1277
  %v1285 = vmul.f32 1.0, %v1284
  %v1286 = vtanh.pop %v1230
  %v1287 = vtanh.pop %v1231
  %v1288 = vtanh.pop %v1232
  %v1289 = vtanh.pop %v1233
  %v1290 = vxor.u32 %v1234, 2147483648
  %v1291 = vxor.u32 %v1235, 2147483648
  %v1292 = vxor.u32 %v1236, 2147483648
  %v1293 = vxor.u32 %v1237, 2147483648
  %v1294 = vmul.f32 %v1290, 1.442695
  %v1295 = vpow.pop %v1294
  %v1296 = vmul.f32 %v1291, 1.442695
  %v1297 = vpow.pop %v1296
  %v1298 = vmul.f32 %v1292, 1.442695
  %v1299 = vpow.pop %v1298
  %v1300 = vmul.f32 %v1293, 1.442695
  %v1301 = vpow.pop %v1300
  %v1302 = vadd.f32 %v1295, 1.0
  %v1303 = vadd.f32 %v1297, 1.0
  %v1304 = vadd.f32 %v1299, 1.0
  %v1305 = vadd.f32 %v1301, 1.0
  %v1306 = vrcp.pop %v1302
  %v1307 = vmul.f32 1.0, %v1306
  %v1308 = vrcp.pop %v1303
  %v1309 = vmul.f32 1.0, %v1308
  %v1310 = vrcp.pop %v1304
  %v1311 = vmul.f32 1.0, %v1310
  %v1312 = vrcp.pop %v1305
  %v1313 = vmul.f32 1.0, %v1312
  %v1314 = vmul.f32 %v1279, %v678
  %v1315 = vmul.f32 %v1281, %v683
  %v1316 = vmul.f32 %v1283, %v688
  %v1317 = vmul.f32 %v1285, %v693
  %v1318 = vmul.f32 %v1255, %v1286
  %v1319 = vmul.f32 %v1257, %v1287
  %v1320 = vmul.f32 %v1259, %v1288
  %v1321 = vmul.f32 %v1261, %v1289
  %v1322 = vadd.f32 %v1314, %v1318
  %v1323 = vadd.f32 %v1315, %v1319
  %v1324 = vadd.f32 %v1316, %v1320
  %v1325 = vadd.f32 %v1317, %v1321
  %v1326 = vtanh.pop %v1322
  %v1327 = vtanh.pop %v1323
  %v1328 = vtanh.pop %v1324
  %v1329 = vtanh.pop %v1325
  %v1330 = vmul.f32 %v1307, %v1326
  %v1331 = vmul.f32 %v1309, %v1327
  %v1332 = vmul.f32 %v1311, %v1328
  %v1333 = vmul.f32 %v1313, %v1329
  %v1335 = vsel %vm598, %v829, 0
  %1337 = vmatprep.subr.mxu0 0.0
  %1338 = vmatpush1.msra.mxu0 %v1330
  %1339 = vmatprep.subr.mxu0 0.0
  %1340 = vmatpush1.msra.mxu0 %v1331
  %1341 = vmatprep.subr.mxu0 0.0
  %1342 = vmatpush1.msra.mxu0 %v1332
  %1343 = vmatprep.subr.mxu0 0.0
  %1344 = vmatpush1.msra.mxu0 %v1333
  %1345 = vmatprep.subr.mxu0 0.0
  %1346 = vmatpush1.msra.mxu0 0.0
  %1347 = vmatprep.subr.mxu0 0.0
  %1348 = vmatpush1.msra.mxu0 0.0
  %1349 = vmatprep.subr.mxu0 0.0
  %1350 = vmatpush1.msra.mxu0 0.0
  %1351 = vmatprep.subr.mxu0 0.0
  %1352 = vmatpush1.msra.mxu0 0.0
  %1353 = vmatprep.subr.mxu0 0.0
  %1354 = vmatpush1.msra.mxu0 0.0
  %1355 = vmatprep.subr.mxu0 0.0
  %1356 = vmatpush1.msra.mxu0 0.0
  %1357 = vmatprep.subr.mxu0 0.0
  %1358 = vmatpush1.msra.mxu0 0.0
  %1359 = vmatprep.subr.mxu0 0.0
  %1360 = vmatpush1.msra.mxu0 0.0
  %1361 = vmatprep.subr.mxu0 0.0
  %1362 = vmatpush1.msra.mxu0 0.0
  %1363 = vmatprep.subr.mxu0 0.0
  %1364 = vmatpush1.msra.mxu0 0.0
  %1365 = vmatprep.subr.mxu0 0.0
  %1366 = vmatpush1.msra.mxu0 0.0
  %1367 = vmatprep.subr.mxu0 0.0
  %1368 = vmatpush1.msra.mxu0 0.0
  %1369 = vmatprep.subr.mxu0 0.0
  %1370 = vmatpush1.msra.mxu0 0.0
  %1371 = vmatprep.subr.mxu0 0.0
  %1372 = vmatpush1.msra.mxu0 0.0
  %1373 = vmatprep.subr.mxu0 0.0
  %1374 = vmatpush1.msra.mxu0 0.0
  %1375 = vmatprep.subr.mxu0 0.0
  %1376 = vmatpush1.msra.mxu0 0.0
  %1377 = vmatprep.subr.mxu0 0.0
  %1378 = vmatpush1.msra.mxu0 0.0
  %1379 = vmatprep.subr.mxu0 0.0
  %1380 = vmatpush1.msra.mxu0 0.0
  %1381 = vmatprep.subr.mxu0 0.0
  %1382 = vmatpush1.msra.mxu0 0.0
  %1383 = vmatprep.subr.mxu0 0.0
  %1384 = vmatpush1.msra.mxu0 0.0
  %1385 = vmatprep.subr.mxu0 0.0
  %1386 = vmatpush1.msra.mxu0 0.0
  %1387 = vmatprep.subr.mxu0 0.0
  %1388 = vmatpush1.msra.mxu0 0.0
  %1389 = vmatprep.subr.mxu0 0.0
  %1390 = vmatpush1.msra.mxu0 0.0
  %1391 = vmatprep.subr.mxu0 0.0
  %1392 = vmatpush1.msra.mxu0 0.0
  %1393 = vmatprep.subr.mxu0 0.0
  %1394 = vmatpush1.msra.mxu0 0.0
  %1395 = vmatprep.subr.mxu0 0.0
  %1396 = vmatpush1.msra.mxu0 0.0
  %1397 = vmatprep.subr.mxu0 0.0
  %1398 = vmatpush1.msra.mxu0 0.0
  %1399 = vmatprep.subr.mxu0 0.0
  %1400 = vmatpush1.msra.mxu0 0.0
  %1401 = vmatprep.mubr.f32.mxu0 0.0
  %1402 = vmatmul.mubr.f32.gmra.mrb[0].mxu0 %v1335
  %v1403 = vpop.f32.mrb[0].mxu0
  %v1404 = vadd.f32 %v830, %v1403
  %v1405 = vpop.f32.mrb[0].mxu0
  %1406 = vdwg.mxu0
  %1407 = vmatprep.subr.mxu0 0.0
  %1408 = vmatpush1.msra.mxu0 %v1330
  %1409 = vmatprep.subr.mxu0 0.0
  %1410 = vmatpush1.msra.mxu0 %v1331
  %1411 = vmatprep.subr.mxu0 0.0
  %1412 = vmatpush1.msra.mxu0 %v1332
  %1413 = vmatprep.subr.mxu0 0.0
  %1414 = vmatpush1.msra.mxu0 %v1333
  %1415 = vmatprep.subr.mxu0 0.0
  %1416 = vmatpush1.msra.mxu0 0.0
  %1417 = vmatprep.subr.mxu0 0.0
  %1418 = vmatpush1.msra.mxu0 0.0
  %1419 = vmatprep.subr.mxu0 0.0
  %1420 = vmatpush1.msra.mxu0 0.0
  %1421 = vmatprep.subr.mxu0 0.0
  %1422 = vmatpush1.msra.mxu0 0.0
  %1423 = vmatprep.subr.mxu0 0.0
  %1424 = vmatpush1.msra.mxu0 0.0
  %1425 = vmatprep.subr.mxu0 0.0
  %1426 = vmatpush1.msra.mxu0 0.0
  %1427 = vmatprep.subr.mxu0 0.0
  %1428 = vmatpush1.msra.mxu0 0.0
  %1429 = vmatprep.subr.mxu0 0.0
  %1430 = vmatpush1.msra.mxu0 0.0
  %1431 = vmatprep.subr.mxu0 0.0
  %1432 = vmatpush1.msra.mxu0 0.0
  %1433 = vmatprep.subr.mxu0 0.0
  %1434 = vmatpush1.msra.mxu0 0.0
  %1435 = vmatprep.subr.mxu0 0.0
  %1436 = vmatpush1.msra.mxu0 0.0
  %1437 = vmatprep.subr.mxu0 0.0
  %1438 = vmatpush1.msra.mxu0 0.0
  %1439 = vmatprep.subr.mxu0 0.0
  %1440 = vmatpush1.msra.mxu0 0.0
  %1441 = vmatprep.subr.mxu0 0.0
  %1442 = vmatpush1.msra.mxu0 0.0
  %1443 = vmatprep.subr.mxu0 0.0
  %1444 = vmatpush1.msra.mxu0 0.0
  %1445 = vmatprep.subr.mxu0 0.0
  %1446 = vmatpush1.msra.mxu0 0.0
  %1447 = vmatprep.subr.mxu0 0.0
  %1448 = vmatpush1.msra.mxu0 0.0
  %1449 = vmatprep.subr.mxu0 0.0
  %1450 = vmatpush1.msra.mxu0 0.0
  %1451 = vmatprep.subr.mxu0 0.0
  %1452 = vmatpush1.msra.mxu0 0.0
  %1453 = vmatprep.subr.mxu0 0.0
  %1454 = vmatpush1.msra.mxu0 0.0
  %1455 = vmatprep.subr.mxu0 0.0
  %1456 = vmatpush1.msra.mxu0 0.0
  %1457 = vmatprep.subr.mxu0 0.0
  %1458 = vmatpush1.msra.mxu0 0.0
  %1459 = vmatprep.subr.mxu0 0.0
  %1460 = vmatpush1.msra.mxu0 0.0
  %1461 = vmatprep.subr.mxu0 0.0
  %1462 = vmatpush1.msra.mxu0 0.0
  %1463 = vmatprep.subr.mxu0 0.0
  %1464 = vmatpush1.msra.mxu0 0.0
  %1465 = vmatprep.subr.mxu0 0.0
  %1466 = vmatpush1.msra.mxu0 0.0
  %1467 = vmatprep.subr.mxu0 0.0
  %1468 = vmatpush1.msra.mxu0 0.0
  %1469 = vmatprep.subr.mxu0 0.0
  %1470 = vmatpush1.msra.mxu0 0.0
  %1471 = vmatprep.mubr.f32.mxu0 0.0
  %1472 = vmatmul.mubr.f32.gmra.mrb[0].mxu0 %v833
  %v1473 = vpop.f32.mrb[0].mxu0
  %v1474 = vadd.f32 0.0, %v1473
  %v1475 = vpop.f32.mrb[0].mxu0
  %1476 = vmatprep.mubr.f32.mxu0 0.0
  %1477 = vmatmul.mubr.f32.gmra.mrb[0].mxu0 %v836
  %v1478 = vpop.f32.mrb[0].mxu0
  %v1479 = vadd.f32 0.0, %v1478
  %v1480 = vpop.f32.mrb[0].mxu0
  %1481 = vmatprep.mubr.f32.mxu0 0.0
  %1482 = vmatmul.mubr.f32.gmra.mrb[0].mxu0 %v839
  %v1483 = vpop.f32.mrb[0].mxu0
  %v1484 = vadd.f32 0.0, %v1483
  %v1485 = vpop.f32.mrb[0].mxu0
  %1486 = vmatprep.mubr.f32.mxu0 0.0
  %1487 = vmatmul.mubr.f32.gmra.mrb[0].mxu0 %v842
  %v1488 = vpop.f32.mrb[0].mxu0
  %v1489 = vadd.f32 0.0, %v1488
  %v1490 = vpop.f32.mrb[0].mxu0
  %1491 = vmatprep.mubr.f32.mxu0 0.0
  %1492 = vmatmul.mubr.f32.gmra.mrb[0].mxu0 %v845
  %v1493 = vpop.f32.mrb[0].mxu0
  %v1494 = vadd.f32 0.0, %v1493
  %v1495 = vpop.f32.mrb[0].mxu0
  %1496 = vmatprep.mubr.f32.mxu0 0.0
  %1497 = vmatmul.mubr.f32.gmra.mrb[0].mxu0 %v848
  %v1498 = vpop.f32.mrb[0].mxu0
  %v1499 = vadd.f32 0.0, %v1498
  %v1500 = vpop.f32.mrb[0].mxu0
  %1501 = vmatprep.mubr.f32.mxu0 0.0
  %1502 = vmatmul.mubr.f32.gmra.mrb[0].mxu0 %v851
  %v1503 = vpop.f32.mrb[0].mxu0
  %v1504 = vadd.f32 0.0, %v1503
  %v1505 = vpop.f32.mrb[0].mxu0
  %1506 = vmatprep.mubr.f32.mxu0 0.0
  %1507 = vmatmul.mubr.f32.gmra.mrb[0].mxu0 %v854
  %v1508 = vpop.f32.mrb[0].mxu0
  %v1509 = vadd.f32 0.0, %v1508
  %v1510 = vpop.f32.mrb[0].mxu0
  %1511 = vmatprep.mubr.f32.mxu0 0.0
  %1512 = vmatmul.mubr.f32.gmra.mrb[0].mxu0 %v857
  %v1513 = vpop.f32.mrb[0].mxu0
  %v1514 = vadd.f32 0.0, %v1513
  %v1515 = vpop.f32.mrb[0].mxu0
  %1516 = vmatprep.mubr.f32.mxu0 0.0
  %1517 = vmatmul.mubr.f32.gmra.mrb[0].mxu0 %v860
  %v1518 = vpop.f32.mrb[0].mxu0
  %v1519 = vadd.f32 0.0, %v1518
  %v1520 = vpop.f32.mrb[0].mxu0
  %1521 = vmatprep.mubr.f32.mxu0 0.0
  %1522 = vmatmul.mubr.f32.gmra.mrb[0].mxu0 %v863
  %v1523 = vpop.f32.mrb[0].mxu0
  %v1524 = vadd.f32 0.0, %v1523
  %v1525 = vpop.f32.mrb[0].mxu0
  %1526 = vmatprep.mubr.f32.mxu0 0.0
  %1527 = vmatmul.mubr.f32.gmra.mrb[0].mxu0 %v866
  %v1528 = vpop.f32.mrb[0].mxu0
  %v1529 = vadd.f32 0.0, %v1528
  %v1530 = vpop.f32.mrb[0].mxu0
  %1531 = vmatprep.mubr.f32.mxu0 0.0
  %1532 = vmatmul.mubr.f32.gmra.mrb[0].mxu0 %v869
  %v1533 = vpop.f32.mrb[0].mxu0
  %v1534 = vadd.f32 0.0, %v1533
  %v1535 = vpop.f32.mrb[0].mxu0
  %1536 = vmatprep.mubr.f32.mxu0 0.0
  %1537 = vmatmul.mubr.f32.gmra.mrb[0].mxu0 %v872
  %v1538 = vpop.f32.mrb[0].mxu0
  %v1539 = vadd.f32 0.0, %v1538
  %v1540 = vpop.f32.mrb[0].mxu0
  %1541 = vmatprep.mubr.f32.mxu0 0.0
  %1542 = vmatmul.mubr.f32.gmra.mrb[0].mxu0 %v875
  %v1543 = vpop.f32.mrb[0].mxu0
  %v1544 = vadd.f32 0.0, %v1543
  %v1545 = vpop.f32.mrb[0].mxu0
  %1546 = vmatprep.mubr.f32.mxu0 0.0
  %1547 = vmatmul.mubr.f32.gmra.mrb[0].mxu0 %v878
  %v1548 = vpop.f32.mrb[0].mxu0
  %v1549 = vadd.f32 0.0, %v1548
  %v1550 = vpop.f32.mrb[0].mxu0
  %1551 = vdwg.mxu0
  %v1553 = vsel %vm1073, %v1404, 0
  %1555 = vmatprep.subr.mxu0 0.0
  %1556 = vmatpush1.msra.mxu0 %v1553
  %1557 = vmatprep.subr.mxu0 0.0
  %1558 = vmatpush1.msra.mxu0 0.0
  %1559 = vmatprep.subr.mxu0 0.0
  %1560 = vmatpush1.msra.mxu0 0.0
  %1561 = vmatprep.subr.mxu0 0.0
  %1562 = vmatpush1.msra.mxu0 0.0
  %1563 = vmatprep.subr.mxu0 0.0
  %1564 = vmatpush1.msra.mxu0 0.0
  %1565 = vmatprep.subr.mxu0 0.0
  %1566 = vmatpush1.msra.mxu0 0.0
  %1567 = vmatprep.subr.mxu0 0.0
  %1568 = vmatpush1.msra.mxu0 0.0
  %1569 = vmatprep.subr.mxu0 0.0
  %1570 = vmatpush1.msra.mxu0 0.0
  %1571 = vmatprep.subr.mxu0 0.0
  %1572 = vmatpush1.msra.mxu0 0.0
  %1573 = vmatprep.subr.mxu0 0.0
  %1574 = vmatpush1.msra.mxu0 0.0
  %1575 = vmatprep.subr.mxu0 0.0
  %1576 = vmatpush1.msra.mxu0 0.0
  %1577 = vmatprep.subr.mxu0 0.0
  %1578 = vmatpush1.msra.mxu0 0.0
  %1579 = vmatprep.subr.mxu0 0.0
  %1580 = vmatpush1.msra.mxu0 0.0
  %1581 = vmatprep.subr.mxu0 0.0
  %1582 = vmatpush1.msra.mxu0 0.0
  %1583 = vmatprep.subr.mxu0 0.0
  %1584 = vmatpush1.msra.mxu0 0.0
  %1585 = vmatprep.subr.mxu0 0.0
  %1586 = vmatpush1.msra.mxu0 0.0
  %1587 = vmatprep.subr.mxu0 0.0
  %1588 = vmatpush1.msra.mxu0 0.0
  %1589 = vmatprep.subr.mxu0 0.0
  %1590 = vmatpush1.msra.mxu0 0.0
  %1591 = vmatprep.subr.mxu0 0.0
  %1592 = vmatpush1.msra.mxu0 0.0
  %1593 = vmatprep.subr.mxu0 0.0
  %1594 = vmatpush1.msra.mxu0 0.0
  %1595 = vmatprep.subr.mxu0 0.0
  %1596 = vmatpush1.msra.mxu0 0.0
  %1597 = vmatprep.subr.mxu0 0.0
  %1598 = vmatpush1.msra.mxu0 0.0
  %1599 = vmatprep.subr.mxu0 0.0
  %1600 = vmatpush1.msra.mxu0 0.0
  %1601 = vmatprep.subr.mxu0 0.0
  %1602 = vmatpush1.msra.mxu0 0.0
  %1603 = vmatprep.subr.mxu0 0.0
  %1604 = vmatpush1.msra.mxu0 0.0
  %1605 = vmatprep.subr.mxu0 0.0
  %1606 = vmatpush1.msra.mxu0 0.0
  %1607 = vmatprep.subr.mxu0 0.0
  %1608 = vmatpush1.msra.mxu0 0.0
  %1609 = vmatprep.subr.mxu0 0.0
  %1610 = vmatpush1.msra.mxu0 0.0
  %1611 = vmatprep.subr.mxu0 0.0
  %1612 = vmatpush1.msra.mxu0 0.0
  %1613 = vmatprep.subr.mxu0 0.0
  %1614 = vmatpush1.msra.mxu0 0.0
  %1615 = vmatprep.subr.mxu0 0.0
  %1616 = vmatpush1.msra.mxu0 0.0
  %1617 = vmatprep.subr.mxu0 0.0
  %1618 = vmatpush1.msra.mxu0 0.0
  %1619 = vmatprep.mubr.f32.mxu0 0.0
  %1620 = vmatmul.mubr.f32.gmra.mrb[0].mxu0 %v1026
  %v1621 = vpop.f32.mrb[0].mxu0
  %v1622 = vadd.f32 %v1474, %v1621
  %v1623 = vpop.f32.mrb[0].mxu0
  %1624 = vmatprep.mubr.f32.mxu0 0.0
  %1625 = vmatmul.mubr.f32.gmra.mrb[0].mxu0 %v1029
  %v1626 = vpop.f32.mrb[0].mxu0
  %v1627 = vadd.f32 %v1479, %v1626
  %v1628 = vpop.f32.mrb[0].mxu0
  %1629 = vmatprep.mubr.f32.mxu0 0.0
  %1630 = vmatmul.mubr.f32.gmra.mrb[0].mxu0 %v1032
  %v1631 = vpop.f32.mrb[0].mxu0
  %v1632 = vadd.f32 %v1484, %v1631
  %v1633 = vpop.f32.mrb[0].mxu0
  %1634 = vmatprep.mubr.f32.mxu0 0.0
  %1635 = vmatmul.mubr.f32.gmra.mrb[0].mxu0 %v1035
  %v1636 = vpop.f32.mrb[0].mxu0
  %v1637 = vadd.f32 %v1489, %v1636
  %v1638 = vpop.f32.mrb[0].mxu0
  %1639 = vmatprep.mubr.f32.mxu0 0.0
  %1640 = vmatmul.mubr.f32.gmra.mrb[0].mxu0 %v1038
  %v1641 = vpop.f32.mrb[0].mxu0
  %v1642 = vadd.f32 %v1494, %v1641
  %v1643 = vpop.f32.mrb[0].mxu0
  %1644 = vmatprep.mubr.f32.mxu0 0.0
  %1645 = vmatmul.mubr.f32.gmra.mrb[0].mxu0 %v1041
  %v1646 = vpop.f32.mrb[0].mxu0
  %v1647 = vadd.f32 %v1499, %v1646
  %v1648 = vpop.f32.mrb[0].mxu0
  %1649 = vmatprep.mubr.f32.mxu0 0.0
  %1650 = vmatmul.mubr.f32.gmra.mrb[0].mxu0 %v1044
  %v1651 = vpop.f32.mrb[0].mxu0
  %v1652 = vadd.f32 %v1504, %v1651
  %v1653 = vpop.f32.mrb[0].mxu0
  %1654 = vmatprep.mubr.f32.mxu0 0.0
  %1655 = vmatmul.mubr.f32.gmra.mrb[0].mxu0 %v1047
  %v1656 = vpop.f32.mrb[0].mxu0
  %v1657 = vadd.f32 %v1509, %v1656
  %v1658 = vpop.f32.mrb[0].mxu0
  %1659 = vmatprep.mubr.f32.mxu0 0.0
  %1660 = vmatmul.mubr.f32.gmra.mrb[0].mxu0 %v1050
  %v1661 = vpop.f32.mrb[0].mxu0
  %v1662 = vadd.f32 %v1514, %v1661
  %v1663 = vpop.f32.mrb[0].mxu0
  %1664 = vmatprep.mubr.f32.mxu0 0.0
  %1665 = vmatmul.mubr.f32.gmra.mrb[0].mxu0 %v1053
  %v1666 = vpop.f32.mrb[0].mxu0
  %v1667 = vadd.f32 %v1519, %v1666
  %v1668 = vpop.f32.mrb[0].mxu0
  %1669 = vmatprep.mubr.f32.mxu0 0.0
  %1670 = vmatmul.mubr.f32.gmra.mrb[0].mxu0 %v1056
  %v1671 = vpop.f32.mrb[0].mxu0
  %v1672 = vadd.f32 %v1524, %v1671
  %v1673 = vpop.f32.mrb[0].mxu0
  %1674 = vmatprep.mubr.f32.mxu0 0.0
  %1675 = vmatmul.mubr.f32.gmra.mrb[0].mxu0 %v1059
  %v1676 = vpop.f32.mrb[0].mxu0
  %v1677 = vadd.f32 %v1529, %v1676
  %v1678 = vpop.f32.mrb[0].mxu0
  %1679 = vmatprep.mubr.f32.mxu0 0.0
  %1680 = vmatmul.mubr.f32.gmra.mrb[0].mxu0 %v1062
  %v1681 = vpop.f32.mrb[0].mxu0
  %v1682 = vadd.f32 %v1534, %v1681
  %v1683 = vpop.f32.mrb[0].mxu0
  %1684 = vmatprep.mubr.f32.mxu0 0.0
  %1685 = vmatmul.mubr.f32.gmra.mrb[0].mxu0 %v1065
  %v1686 = vpop.f32.mrb[0].mxu0
  %v1687 = vadd.f32 %v1539, %v1686
  %v1688 = vpop.f32.mrb[0].mxu0
  %1689 = vmatprep.mubr.f32.mxu0 0.0
  %1690 = vmatmul.mubr.f32.gmra.mrb[0].mxu0 %v1068
  %v1691 = vpop.f32.mrb[0].mxu0
  %v1692 = vadd.f32 %v1544, %v1691
  %v1693 = vpop.f32.mrb[0].mxu0
  %1694 = vmatprep.mubr.f32.mxu0 0.0
  %1695 = vmatmul.mubr.f32.gmra.mrb[0].mxu0 %v1071
  %v1696 = vpop.f32.mrb[0].mxu0
  %v1697 = vadd.f32 %v1549, %v1696
  %v1698 = vpop.f32.mrb[0].mxu0
  %1699 = vdwg.mxu0
  %v1700 = vadd.f32 %v1622, %v813
  %v1701 = vadd.f32 %v1627, %v814
  %v1702 = vadd.f32 %v1632, %v815
  %v1703 = vadd.f32 %v1637, %v816
  %v1704 = vadd.f32 %v1642, %v817
  %v1705 = vadd.f32 %v1647, %v818
  %v1706 = vadd.f32 %v1652, %v819
  %v1707 = vadd.f32 %v1657, %v820
  %v1708 = vadd.f32 %v1662, %v821
  %v1709 = vadd.f32 %v1667, %v822
  %v1710 = vadd.f32 %v1672, %v823
  %v1711 = vadd.f32 %v1677, %v824
  %v1712 = vadd.f32 %v1682, %v825
  %v1713 = vadd.f32 %v1687, %v826
  %v1714 = vadd.f32 %v1692, %v827
  %v1715 = vadd.f32 %v1697, %v828
  %v1716 = vxor.u32 %v1700, 2147483648
  %v1717 = vxor.u32 %v1701, 2147483648
  %v1718 = vxor.u32 %v1702, 2147483648
  %v1719 = vxor.u32 %v1703, 2147483648
  %v1720 = vmul.f32 %v1716, 1.442695
  %v1721 = vpow.pop %v1720
  %v1722 = vmul.f32 %v1717, 1.442695
  %v1723 = vpow.pop %v1722
  %v1724 = vmul.f32 %v1718, 1.442695
  %v1725 = vpow.pop %v1724
  %v1726 = vmul.f32 %v1719, 1.442695
  %v1727 = vpow.pop %v1726
  %v1728 = vadd.f32 %v1721, 1.0
  %v1729 = vadd.f32 %v1723, 1.0
  %v1730 = vadd.f32 %v1725, 1.0
  %v1731 = vadd.f32 %v1727, 1.0
  %v1732 = vrcp.pop %v1728
  %v1733 = vmul.f32 1.0, %v1732
  %v1734 = vrcp.pop %v1729
  %v1735 = vmul.f32 1.0, %v1734
  %v1736 = vrcp.pop %v1730
  %v1737 = vmul.f32 1.0, %v1736
  %v1738 = vrcp.pop %v1731
  %v1739 = vmul.f32 1.0, %v1738
  %v1740 = vxor.u32 %v1704, 2147483648
  %v1741 = vxor.u32 %v1705, 2147483648
  %v1742 = vxor.u32 %v1706, 2147483648
  %v1743 = vxor.u32 %v1707, 2147483648
  %v1744 = vmul.f32 %v1740, 1.442695
  %v1745 = vpow.pop %v1744
  %v1746 = vmul.f32 %v1741, 1.442695
  %v1747 = vpow.pop %v1746
  %v1748 = vmul.f32 %v1742, 1.442695
  %v1749 = vpow.pop %v1748
  %v1750 = vmul.f32 %v1743, 1.442695
  %v1751 = vpow.pop %v1750
  %v1752 = vadd.f32 %v1745, 1.0
  %v1753 = vadd.f32 %v1747, 1.0
  %v1754 = vadd.f32 %v1749, 1.0
  %v1755 = vadd.f32 %v1751, 1.0
  %v1756 = vrcp.pop %v1752
  %v1757 = vmul.f32 1.0, %v1756
  %v1758 = vrcp.pop %v1753
  %v1759 = vmul.f32 1.0, %v1758
  %v1760 = vrcp.pop %v1754
  %v1761 = vmul.f32 1.0, %v1760
  %v1762 = vrcp.pop %v1755
  %v1763 = vmul.f32 1.0, %v1762
  %v1764 = vtanh.pop %v1708
  %v1765 = vtanh.pop %v1709
  %v1766 = vtanh.pop %v1710
  %v1767 = vtanh.pop %v1711
  %v1768 = vxor.u32 %v1712, 2147483648
  %v1769 = vxor.u32 %v1713, 2147483648
  %v1770 = vxor.u32 %v1714, 2147483648
  %v1771 = vxor.u32 %v1715, 2147483648
  %v1772 = vmul.f32 %v1768, 1.442695
  %v1773 = vpow.pop %v1772
  %v1774 = vmul.f32 %v1769, 1.442695
  %v1775 = vpow.pop %v1774
  %v1776 = vmul.f32 %v1770, 1.442695
  %v1777 = vpow.pop %v1776
  %v1778 = vmul.f32 %v1771, 1.442695
  %v1779 = vpow.pop %v1778
  %v1780 = vadd.f32 %v1773, 1.0
  %v1781 = vadd.f32 %v1775, 1.0
  %v1782 = vadd.f32 %v1777, 1.0
  %v1783 = vadd.f32 %v1779, 1.0
  %v1784 = vrcp.pop %v1780
  %v1785 = vmul.f32 1.0, %v1784
  %v1786 = vrcp.pop %v1781
  %v1787 = vmul.f32 1.0, %v1786
  %v1788 = vrcp.pop %v1782
  %v1789 = vmul.f32 1.0, %v1788
  %v1790 = vrcp.pop %v1783
  %v1791 = vmul.f32 1.0, %v1790
  %v1792 = vmul.f32 %v1757, %v1322
  %v1793 = vmul.f32 %v1759, %v1323
  %v1794 = vmul.f32 %v1761, %v1324
  %v1795 = vmul.f32 %v1763, %v1325
  %v1796 = vmul.f32 %v1733, %v1764
  %v1797 = vmul.f32 %v1735, %v1765
  %v1798 = vmul.f32 %v1737, %v1766
  %v1799 = vmul.f32 %v1739, %v1767
  %v1800 = vadd.f32 %v1792, %v1796
  %v1801 = vadd.f32 %v1793, %v1797
  %v1802 = vadd.f32 %v1794, %v1798
  %v1803 = vadd.f32 %v1795, %v1799
  %v1804 = vtanh.pop %v1800
  %v1805 = vtanh.pop %v1801
  %v1806 = vtanh.pop %v1802
  %v1807 = vtanh.pop %v1803
  %v1808 = vmul.f32 %v1785, %v1804
  %v1809 = vmul.f32 %v1787, %v1805
  %v1810 = vmul.f32 %v1789, %v1806
  %v1811 = vmul.f32 %v1791, %v1807
  %1812 = vmatprep.subr.mxu0 0.0
  %1813 = vmatpush1.msra.mxu0 %v1808
  %1814 = vmatprep.subr.mxu0 0.0
  %1815 = vmatpush1.msra.mxu0 %v1809
  %1816 = vmatprep.subr.mxu0 0.0
  %1817 = vmatpush1.msra.mxu0 %v1810
  %1818 = vmatprep.subr.mxu0 0.0
  %1819 = vmatpush1.msra.mxu0 %v1811
  %1820 = vmatprep.subr.mxu0 0.0
  %1821 = vmatpush1.msra.mxu0 0.0
  %1822 = vmatprep.subr.mxu0 0.0
  %1823 = vmatpush1.msra.mxu0 0.0
  %1824 = vmatprep.subr.mxu0 0.0
  %1825 = vmatpush1.msra.mxu0 0.0
  %1826 = vmatprep.subr.mxu0 0.0
  %1827 = vmatpush1.msra.mxu0 0.0
  %1828 = vmatprep.subr.mxu0 0.0
  %1829 = vmatpush1.msra.mxu0 0.0
  %1830 = vmatprep.subr.mxu0 0.0
  %1831 = vmatpush1.msra.mxu0 0.0
  %1832 = vmatprep.subr.mxu0 0.0
  %1833 = vmatpush1.msra.mxu0 0.0
  %1834 = vmatprep.subr.mxu0 0.0
  %1835 = vmatpush1.msra.mxu0 0.0
  %1836 = vmatprep.subr.mxu0 0.0
  %1837 = vmatpush1.msra.mxu0 0.0
  %1838 = vmatprep.subr.mxu0 0.0
  %1839 = vmatpush1.msra.mxu0 0.0
  %1840 = vmatprep.subr.mxu0 0.0
  %1841 = vmatpush1.msra.mxu0 0.0
  %1842 = vmatprep.subr.mxu0 0.0
  %1843 = vmatpush1.msra.mxu0 0.0
  %1844 = vmatprep.subr.mxu0 0.0
  %1845 = vmatpush1.msra.mxu0 0.0
  %1846 = vmatprep.subr.mxu0 0.0
  %1847 = vmatpush1.msra.mxu0 0.0
  %1848 = vmatprep.subr.mxu0 0.0
  %1849 = vmatpush1.msra.mxu0 0.0
  %1850 = vmatprep.subr.mxu0 0.0
  %1851 = vmatpush1.msra.mxu0 0.0
  %1852 = vmatprep.subr.mxu0 0.0
  %1853 = vmatpush1.msra.mxu0 0.0
  %1854 = vmatprep.subr.mxu0 0.0
  %1855 = vmatpush1.msra.mxu0 0.0
  %1856 = vmatprep.subr.mxu0 0.0
  %1857 = vmatpush1.msra.mxu0 0.0
  %1858 = vmatprep.subr.mxu0 0.0
  %1859 = vmatpush1.msra.mxu0 0.0
  %1860 = vmatprep.subr.mxu0 0.0
  %1861 = vmatpush1.msra.mxu0 0.0
  %1862 = vmatprep.subr.mxu0 0.0
  %1863 = vmatpush1.msra.mxu0 0.0
  %1864 = vmatprep.subr.mxu0 0.0
  %1865 = vmatpush1.msra.mxu0 0.0
  %1866 = vmatprep.subr.mxu0 0.0
  %1867 = vmatpush1.msra.mxu0 0.0
  %1868 = vmatprep.subr.mxu0 0.0
  %1869 = vmatpush1.msra.mxu0 0.0
  %1870 = vmatprep.subr.mxu0 0.0
  %1871 = vmatpush1.msra.mxu0 0.0
  %1872 = vmatprep.subr.mxu0 0.0
  %1873 = vmatpush1.msra.mxu0 0.0
  %1874 = vmatprep.subr.mxu0 0.0
  %1875 = vmatpush1.msra.mxu0 0.0
  %1876 = vmatprep.mubr.f32.mxu0 0.0
  %1877 = vmatmul.mubr.f32.gmra.mrb[0].mxu0 %v1335
  %v1878 = vpop.f32.mrb[0].mxu0
  %v1879 = vadd.f32 %v830, %v1878
  %v1880 = vpop.f32.mrb[0].mxu0
  %1881 = vdwg.mxu0
  %1882 = vmatprep.subr.mxu0 0.0
  %1883 = vmatpush1.msra.mxu0 %v1808
  %1884 = vmatprep.subr.mxu0 0.0
  %1885 = vmatpush1.msra.mxu0 %v1809
  %1886 = vmatprep.subr.mxu0 0.0
  %1887 = vmatpush1.msra.mxu0 %v1810
  %1888 = vmatprep.subr.mxu0 0.0
  %1889 = vmatpush1.msra.mxu0 %v1811
  %1890 = vmatprep.subr.mxu0 0.0
  %1891 = vmatpush1.msra.mxu0 0.0
  %1892 = vmatprep.subr.mxu0 0.0
  %1893 = vmatpush1.msra.mxu0 0.0
  %1894 = vmatprep.subr.mxu0 0.0
  %1895 = vmatpush1.msra.mxu0 0.0
  %1896 = vmatprep.subr.mxu0 0.0
  %1897 = vmatpush1.msra.mxu0 0.0
  %1898 = vmatprep.subr.mxu0 0.0
  %1899 = vmatpush1.msra.mxu0 0.0
  %1900 = vmatprep.subr.mxu0 0.0
  %1901 = vmatpush1.msra.mxu0 0.0
  %1902 = vmatprep.subr.mxu0 0.0
  %1903 = vmatpush1.msra.mxu0 0.0
  %1904 = vmatprep.subr.mxu0 0.0
  %1905 = vmatpush1.msra.mxu0 0.0
  %1906 = vmatprep.subr.mxu0 0.0
  %1907 = vmatpush1.msra.mxu0 0.0
  %1908 = vmatprep.subr.mxu0 0.0
  %1909 = vmatpush1.msra.mxu0 0.0
  %1910 = vmatprep.subr.mxu0 0.0
  %1911 = vmatpush1.msra.mxu0 0.0
  %1912 = vmatprep.subr.mxu0 0.0
  %1913 = vmatpush1.msra.mxu0 0.0
  %1914 = vmatprep.subr.mxu0 0.0
  %1915 = vmatpush1.msra.mxu0 0.0
  %1916 = vmatprep.subr.mxu0 0.0
  %1917 = vmatpush1.msra.mxu0 0.0
  %1918 = vmatprep.subr.mxu0 0.0
  %1919 = vmatpush1.msra.mxu0 0.0
  %1920 = vmatprep.subr.mxu0 0.0
  %1921 = vmatpush1.msra.mxu0 0.0
  %1922 = vmatprep.subr.mxu0 0.0
  %1923 = vmatpush1.msra.mxu0 0.0
  %1924 = vmatprep.subr.mxu0 0.0
  %1925 = vmatpush1.msra.mxu0 0.0
  %1926 = vmatprep.subr.mxu0 0.0
  %1927 = vmatpush1.msra.mxu0 0.0
  %1928 = vmatprep.subr.mxu0 0.0
  %1929 = vmatpush1.msra.mxu0 0.0
  %1930 = vmatprep.subr.mxu0 0.0
  %1931 = vmatpush1.msra.mxu0 0.0
  %1932 = vmatprep.subr.mxu0 0.0
  %1933 = vmatpush1.msra.mxu0 0.0
  %1934 = vmatprep.subr.mxu0 0.0
  %1935 = vmatpush1.msra.mxu0 0.0
  %1936 = vmatprep.subr.mxu0 0.0
  %1937 = vmatpush1.msra.mxu0 0.0
  %1938 = vmatprep.subr.mxu0 0.0
  %1939 = vmatpush1.msra.mxu0 0.0
  %1940 = vmatprep.subr.mxu0 0.0
  %1941 = vmatpush1.msra.mxu0 0.0
  %1942 = vmatprep.subr.mxu0 0.0
  %1943 = vmatpush1.msra.mxu0 0.0
  %1944 = vmatprep.subr.mxu0 0.0
  %1945 = vmatpush1.msra.mxu0 0.0
  %1946 = vmatprep.mubr.f32.mxu0 0.0
  %1947 = vmatmul.mubr.f32.gmra.mrb[0].mxu0 %v833
  %v1948 = vpop.f32.mrb[0].mxu0
  %v1949 = vadd.f32 0.0, %v1948
  %v1950 = vpop.f32.mrb[0].mxu0
  %1951 = vmatprep.mubr.f32.mxu0 0.0
  %1952 = vmatmul.mubr.f32.gmra.mrb[0].mxu0 %v836
  %v1953 = vpop.f32.mrb[0].mxu0
  %v1954 = vadd.f32 0.0, %v1953
  %v1955 = vpop.f32.mrb[0].mxu0
  %1956 = vmatprep.mubr.f32.mxu0 0.0
  %1957 = vmatmul.mubr.f32.gmra.mrb[0].mxu0 %v839
  %v1958 = vpop.f32.mrb[0].mxu0
  %v1959 = vadd.f32 0.0, %v1958
  %v1960 = vpop.f32.mrb[0].mxu0
  %1961 = vmatprep.mubr.f32.mxu0 0.0
  %1962 = vmatmul.mubr.f32.gmra.mrb[0].mxu0 %v842
  %v1963 = vpop.f32.mrb[0].mxu0
  %v1964 = vadd.f32 0.0, %v1963
  %v1965 = vpop.f32.mrb[0].mxu0
  %1966 = vmatprep.mubr.f32.mxu0 0.0
  %1967 = vmatmul.mubr.f32.gmra.mrb[0].mxu0 %v845
  %v1968 = vpop.f32.mrb[0].mxu0
  %v1969 = vadd.f32 0.0, %v1968
  %v1970 = vpop.f32.mrb[0].mxu0
  %1971 = vmatprep.mubr.f32.mxu0 0.0
  %1972 = vmatmul.mubr.f32.gmra.mrb[0].mxu0 %v848
  %v1973 = vpop.f32.mrb[0].mxu0
  %v1974 = vadd.f32 0.0, %v1973
  %v1975 = vpop.f32.mrb[0].mxu0
  %1976 = vmatprep.mubr.f32.mxu0 0.0
  %1977 = vmatmul.mubr.f32.gmra.mrb[0].mxu0 %v851
  %v1978 = vpop.f32.mrb[0].mxu0
  %v1979 = vadd.f32 0.0, %v1978
  %v1980 = vpop.f32.mrb[0].mxu0
  %1981 = vmatprep.mubr.f32.mxu0 0.0
  %1982 = vmatmul.mubr.f32.gmra.mrb[0].mxu0 %v854
  %v1983 = vpop.f32.mrb[0].mxu0
  %v1984 = vadd.f32 0.0, %v1983
  %v1985 = vpop.f32.mrb[0].mxu0
  %1986 = vmatprep.mubr.f32.mxu0 0.0
  %1987 = vmatmul.mubr.f32.gmra.mrb[0].mxu0 %v857
  %v1988 = vpop.f32.mrb[0].mxu0
  %v1989 = vadd.f32 0.0, %v1988
  %v1990 = vpop.f32.mrb[0].mxu0
  %1991 = vmatprep.mubr.f32.mxu0 0.0
  %1992 = vmatmul.mubr.f32.gmra.mrb[0].mxu0 %v860
  %v1993 = vpop.f32.mrb[0].mxu0
  %v1994 = vadd.f32 0.0, %v1993
  %v1995 = vpop.f32.mrb[0].mxu0
  %1996 = vmatprep.mubr.f32.mxu0 0.0
  %1997 = vmatmul.mubr.f32.gmra.mrb[0].mxu0 %v863
  %v1998 = vpop.f32.mrb[0].mxu0
  %v1999 = vadd.f32 0.0, %v1998
  %v2000 = vpop.f32.mrb[0].mxu0
  %2001 = vmatprep.mubr.f32.mxu0 0.0
  %2002 = vmatmul.mubr.f32.gmra.mrb[0].mxu0 %v866
  %v2003 = vpop.f32.mrb[0].mxu0
  %v2004 = vadd.f32 0.0, %v2003
  %v2005 = vpop.f32.mrb[0].mxu0
  %2006 = vmatprep.mubr.f32.mxu0 0.0
  %2007 = vmatmul.mubr.f32.gmra.mrb[0].mxu0 %v869
  %v2008 = vpop.f32.mrb[0].mxu0
  %v2009 = vadd.f32 0.0, %v2008
  %v2010 = vpop.f32.mrb[0].mxu0
  %2011 = vmatprep.mubr.f32.mxu0 0.0
  %2012 = vmatmul.mubr.f32.gmra.mrb[0].mxu0 %v872
  %v2013 = vpop.f32.mrb[0].mxu0
  %v2014 = vadd.f32 0.0, %v2013
  %v2015 = vpop.f32.mrb[0].mxu0
  %2016 = vmatprep.mubr.f32.mxu0 0.0
  %2017 = vmatmul.mubr.f32.gmra.mrb[0].mxu0 %v875
  %v2018 = vpop.f32.mrb[0].mxu0
  %v2019 = vadd.f32 0.0, %v2018
  %v2020 = vpop.f32.mrb[0].mxu0
  %2021 = vmatprep.mubr.f32.mxu0 0.0
  %2022 = vmatmul.mubr.f32.gmra.mrb[0].mxu0 %v878
  %v2023 = vpop.f32.mrb[0].mxu0
  %v2024 = vadd.f32 0.0, %v2023
  %v2025 = vpop.f32.mrb[0].mxu0
  %2026 = vdwg.mxu0
  %v2028 = vsel %vm1073, %v1879, 0
  %2030 = vmatprep.subr.mxu0 0.0
  %2031 = vmatpush1.msra.mxu0 %v2028
  %2032 = vmatprep.subr.mxu0 0.0
  %2033 = vmatpush1.msra.mxu0 0.0
  %2034 = vmatprep.subr.mxu0 0.0
  %2035 = vmatpush1.msra.mxu0 0.0
  %2036 = vmatprep.subr.mxu0 0.0
  %2037 = vmatpush1.msra.mxu0 0.0
  %2038 = vmatprep.subr.mxu0 0.0
  %2039 = vmatpush1.msra.mxu0 0.0
  %2040 = vmatprep.subr.mxu0 0.0
  %2041 = vmatpush1.msra.mxu0 0.0
  %2042 = vmatprep.subr.mxu0 0.0
  %2043 = vmatpush1.msra.mxu0 0.0
  %2044 = vmatprep.subr.mxu0 0.0
  %2045 = vmatpush1.msra.mxu0 0.0
  %2046 = vmatprep.subr.mxu0 0.0
  %2047 = vmatpush1.msra.mxu0 0.0
  %2048 = vmatprep.subr.mxu0 0.0
  %2049 = vmatpush1.msra.mxu0 0.0
  %2050 = vmatprep.subr.mxu0 0.0
  %2051 = vmatpush1.msra.mxu0 0.0
  %2052 = vmatprep.subr.mxu0 0.0
  %2053 = vmatpush1.msra.mxu0 0.0
  %2054 = vmatprep.subr.mxu0 0.0
  %2055 = vmatpush1.msra.mxu0 0.0
  %2056 = vmatprep.subr.mxu0 0.0
  %2057 = vmatpush1.msra.mxu0 0.0
  %2058 = vmatprep.subr.mxu0 0.0
  %2059 = vmatpush1.msra.mxu0 0.0
  %2060 = vmatprep.subr.mxu0 0.0
  %2061 = vmatpush1.msra.mxu0 0.0
  %2062 = vmatprep.subr.mxu0 0.0
  %2063 = vmatpush1.msra.mxu0 0.0
  %2064 = vmatprep.subr.mxu0 0.0
  %2065 = vmatpush1.msra.mxu0 0.0
  %2066 = vmatprep.subr.mxu0 0.0
  %2067 = vmatpush1.msra.mxu0 0.0
  %2068 = vmatprep.subr.mxu0 0.0
  %2069 = vmatpush1.msra.mxu0 0.0
  %2070 = vmatprep.subr.mxu0 0.0
  %2071 = vmatpush1.msra.mxu0 0.0
  %2072 = vmatprep.subr.mxu0 0.0
  %2073 = vmatpush1.msra.mxu0 0.0
  %2074 = vmatprep.subr.mxu0 0.0
  %2075 = vmatpush1.msra.mxu0 0.0
  %2076 = vmatprep.subr.mxu0 0.0
  %2077 = vmatpush1.msra.mxu0 0.0
  %2078 = vmatprep.subr.mxu0 0.0
  %2079 = vmatpush1.msra.mxu0 0.0
  %2080 = vmatprep.subr.mxu0 0.0
  %2081 = vmatpush1.msra.mxu0 0.0
  %2082 = vmatprep.subr.mxu0 0.0
  %2083 = vmatpush1.msra.mxu0 0.0
  %2084 = vmatprep.subr.mxu0 0.0
  %2085 = vmatpush1.msra.mxu0 0.0
  %2086 = vmatprep.subr.mxu0 0.0
  %2087 = vmatpush1.msra.mxu0 0.0
  %2088 = vmatprep.subr.mxu0 0.0
  %2089 = vmatpush1.msra.mxu0 0.0
  %2090 = vmatprep.subr.mxu0 0.0
  %2091 = vmatpush1.msra.mxu0 0.0
  %2092 = vmatprep.subr.mxu0 0.0
  %2093 = vmatpush1.msra.mxu0 0.0
  %2094 = vmatprep.mubr.f32.mxu0 0.0
  %2095 = vmatmul.mubr.f32.gmra.mrb[0].mxu0 %v1026
  %v2096 = vpop.f32.mrb[0].mxu0
  %v2097 = vadd.f32 %v1949, %v2096
  %v2098 = vpop.f32.mrb[0].mxu0
  %2099 = vmatprep.mubr.f32.mxu0 0.0
  %2100 = vmatmul.mubr.f32.gmra.mrb[0].mxu0 %v1029
  %v2101 = vpop.f32.mrb[0].mxu0
  %v2102 = vadd.f32 %v1954, %v2101
  %v2103 = vpop.f32.mrb[0].mxu0
  %2104 = vmatprep.mubr.f32.mxu0 0.0
  %2105 = vmatmul.mubr.f32.gmra.mrb[0].mxu0 %v1032
  %v2106 = vpop.f32.mrb[0].mxu0
  %v2107 = vadd.f32 %v1959, %v2106
  %v2108 = vpop.f32.mrb[0].mxu0
  %2109 = vmatprep.mubr.f32.mxu0 0.0
  %2110 = vmatmul.mubr.f32.gmra.mrb[0].mxu0 %v1035
  %v2111 = vpop.f32.mrb[0].mxu0
  %v2112 = vadd.f32 %v1964, %v2111
  %v2113 = vpop.f32.mrb[0].mxu0
  %2114 = vmatprep.mubr.f32.mxu0 0.0
  %2115 = vmatmul.mubr.f32.gmra.mrb[0].mxu0 %v1038
  %v2116 = vpop.f32.mrb[0].mxu0
  %v2117 = vadd.f32 %v1969, %v2116
  %v2118 = vpop.f32.mrb[0].mxu0
  %2119 = vmatprep.mubr.f32.mxu0 0.0
  %2120 = vmatmul.mubr.f32.gmra.mrb[0].mxu0 %v1041
  %v2121 = vpop.f32.mrb[0].mxu0
  %v2122 = vadd.f32 %v1974, %v2121
  %v2123 = vpop.f32.mrb[0].mxu0
  %2124 = vmatprep.mubr.f32.mxu0 0.0
  %2125 = vmatmul.mubr.f32.gmra.mrb[0].mxu0 %v1044
  %v2126 = vpop.f32.mrb[0].mxu0
  %v2127 = vadd.f32 %v1979, %v2126
  %v2128 = vpop.f32.mrb[0].mxu0
  %2129 = vmatprep.mubr.f32.mxu0 0.0
  %2130 = vmatmul.mubr.f32.gmra.mrb[0].mxu0 %v1047
  %v2131 = vpop.f32.mrb[0].mxu0
  %v2132 = vadd.f32 %v1984, %v2131
  %v2133 = vpop.f32.mrb[0].mxu0
  %2134 = vmatprep.mubr.f32.mxu0 0.0
  %2135 = vmatmul.mubr.f32.gmra.mrb[0].mxu0 %v1050
  %v2136 = vpop.f32.mrb[0].mxu0
  %v2137 = vadd.f32 %v1989, %v2136
  %v2138 = vpop.f32.mrb[0].mxu0
  %2139 = vmatprep.mubr.f32.mxu0 0.0
  %2140 = vmatmul.mubr.f32.gmra.mrb[0].mxu0 %v1053
  %v2141 = vpop.f32.mrb[0].mxu0
  %v2142 = vadd.f32 %v1994, %v2141
  %v2143 = vpop.f32.mrb[0].mxu0
  %2144 = vmatprep.mubr.f32.mxu0 0.0
  %2145 = vmatmul.mubr.f32.gmra.mrb[0].mxu0 %v1056
  %v2146 = vpop.f32.mrb[0].mxu0
  %v2147 = vadd.f32 %v1999, %v2146
  %v2148 = vpop.f32.mrb[0].mxu0
  %2149 = vmatprep.mubr.f32.mxu0 0.0
  %2150 = vmatmul.mubr.f32.gmra.mrb[0].mxu0 %v1059
  %v2151 = vpop.f32.mrb[0].mxu0
  %v2152 = vadd.f32 %v2004, %v2151
  %v2153 = vpop.f32.mrb[0].mxu0
  %2154 = vmatprep.mubr.f32.mxu0 0.0
  %2155 = vmatmul.mubr.f32.gmra.mrb[0].mxu0 %v1062
  %v2156 = vpop.f32.mrb[0].mxu0
  %v2157 = vadd.f32 %v2009, %v2156
  %v2158 = vpop.f32.mrb[0].mxu0
  %2159 = vmatprep.mubr.f32.mxu0 0.0
  %2160 = vmatmul.mubr.f32.gmra.mrb[0].mxu0 %v1065
  %v2161 = vpop.f32.mrb[0].mxu0
  %v2162 = vadd.f32 %v2014, %v2161
  %v2163 = vpop.f32.mrb[0].mxu0
  %2164 = vmatprep.mubr.f32.mxu0 0.0
  %2165 = vmatmul.mubr.f32.gmra.mrb[0].mxu0 %v1068
  %v2166 = vpop.f32.mrb[0].mxu0
  %v2167 = vadd.f32 %v2019, %v2166
  %v2168 = vpop.f32.mrb[0].mxu0
  %2169 = vmatprep.mubr.f32.mxu0 0.0
  %2170 = vmatmul.mubr.f32.gmra.mrb[0].mxu0 %v1071
  %v2171 = vpop.f32.mrb[0].mxu0
  %v2172 = vadd.f32 %v2024, %v2171
  %v2173 = vpop.f32.mrb[0].mxu0
  %2174 = vdwg.mxu0
  %v2175 = vadd.f32 %v2097, %v813
  %v2176 = vadd.f32 %v2102, %v814
  %v2177 = vadd.f32 %v2107, %v815
  %v2178 = vadd.f32 %v2112, %v816
  %v2179 = vadd.f32 %v2117, %v817
  %v2180 = vadd.f32 %v2122, %v818
  %v2181 = vadd.f32 %v2127, %v819
  %v2182 = vadd.f32 %v2132, %v820
  %v2183 = vadd.f32 %v2137, %v821
  %v2184 = vadd.f32 %v2142, %v822
  %v2185 = vadd.f32 %v2147, %v823
  %v2186 = vadd.f32 %v2152, %v824
  %v2187 = vadd.f32 %v2157, %v825
  %v2188 = vadd.f32 %v2162, %v826
  %v2189 = vadd.f32 %v2167, %v827
  %v2190 = vadd.f32 %v2172, %v828
  %v2191 = vxor.u32 %v2175, 2147483648
  %v2192 = vxor.u32 %v2176, 2147483648
  %v2193 = vxor.u32 %v2177, 2147483648
  %v2194 = vxor.u32 %v2178, 2147483648
  %v2195 = vmul.f32 %v2191, 1.442695
  %v2196 = vpow.pop %v2195
  %v2197 = vmul.f32 %v2192, 1.442695
  %v2198 = vpow.pop %v2197
  %v2199 = vmul.f32 %v2193, 1.442695
  %v2200 = vpow.pop %v2199
  %v2201 = vmul.f32 %v2194, 1.442695
  %v2202 = vpow.pop %v2201
  %v2203 = vadd.f32 %v2196, 1.0
  %v2204 = vadd.f32 %v2198, 1.0
  %v2205 = vadd.f32 %v2200, 1.0
  %v2206 = vadd.f32 %v2202, 1.0
  %v2207 = vrcp.pop %v2203
  %v2208 = vmul.f32 1.0, %v2207
  %v2209 = vrcp.pop %v2204
  %v2210 = vmul.f32 1.0, %v2209
  %v2211 = vrcp.pop %v2205
  %v2212 = vmul.f32 1.0, %v2211
  %v2213 = vrcp.pop %v2206
  %v2214 = vmul.f32 1.0, %v2213
  %v2215 = vxor.u32 %v2179, 2147483648
  %v2216 = vxor.u32 %v2180, 2147483648
  %v2217 = vxor.u32 %v2181, 2147483648
  %v2218 = vxor.u32 %v2182, 2147483648
  %v2219 = vmul.f32 %v2215, 1.442695
  %v2220 = vpow.pop %v2219
  %v2221 = vmul.f32 %v2216, 1.442695
  %v2222 = vpow.pop %v2221
  %v2223 = vmul.f32 %v2217, 1.442695
  %v2224 = vpow.pop %v2223
  %v2225 = vmul.f32 %v2218, 1.442695
  %v2226 = vpow.pop %v2225
  %v2227 = vadd.f32 %v2220, 1.0
  %v2228 = vadd.f32 %v2222, 1.0
  %v2229 = vadd.f32 %v2224, 1.0
  %v2230 = vadd.f32 %v2226, 1.0
  %v2231 = vrcp.pop %v2227
  %v2232 = vmul.f32 1.0, %v2231
  %v2233 = vrcp.pop %v2228
  %v2234 = vmul.f32 1.0, %v2233
  %v2235 = vrcp.pop %v2229
  %v2236 = vmul.f32 1.0, %v2235
  %v2237 = vrcp.pop %v2230
  %v2238 = vmul.f32 1.0, %v2237
  %v2239 = vtanh.pop %v2183
  %v2240 = vtanh.pop %v2184
  %v2241 = vtanh.pop %v2185
  %v2242 = vtanh.pop %v2186
  %v2243 = vxor.u32 %v2187, 2147483648
  %v2244 = vxor.u32 %v2188, 2147483648
  %v2245 = vxor.u32 %v2189, 2147483648
  %v2246 = vxor.u32 %v2190, 2147483648
  %v2247 = vmul.f32 %v2243, 1.442695
  %v2248 = vpow.pop %v2247
  %v2249 = vmul.f32 %v2244, 1.442695
  %v2250 = vpow.pop %v2249
  %v2251 = vmul.f32 %v2245, 1.442695
  %v2252 = vpow.pop %v2251
  %v2253 = vmul.f32 %v2246, 1.442695
  %v2254 = vpow.pop %v2253
  %v2255 = vadd.f32 %v2248, 1.0
  %v2256 = vadd.f32 %v2250, 1.0
  %v2257 = vadd.f32 %v2252, 1.0
  %v2258 = vadd.f32 %v2254, 1.0
  %v2259 = vrcp.pop %v2255
  %v2260 = vmul.f32 1.0, %v2259
  %v2261 = vrcp.pop %v2256
  %v2262 = vmul.f32 1.0, %v2261
  %v2263 = vrcp.pop %v2257
  %v2264 = vmul.f32 1.0, %v2263
  %v2265 = vrcp.pop %v2258
  %v2266 = vmul.f32 1.0, %v2265
  %v2267 = vmul.f32 %v2232, %v1800
  %v2268 = vmul.f32 %v2234, %v1801
  %v2269 = vmul.f32 %v2236, %v1802
  %v2270 = vmul.f32 %v2238, %v1803
  %v2271 = vmul.f32 %v2208, %v2239
  %v2272 = vmul.f32 %v2210, %v2240
  %v2273 = vmul.f32 %v2212, %v2241
  %v2274 = vmul.f32 %v2214, %v2242
  %v2275 = vadd.f32 %v2267, %v2271
  %v2276 = vadd.f32 %v2268, %v2272
  %v2277 = vadd.f32 %v2269, %v2273
  %v2278 = vadd.f32 %v2270, %v2274
  %v2279 = vtanh.pop %v2275
  %v2280 = vtanh.pop %v2276
  %v2281 = vtanh.pop %v2277
  %v2282 = vtanh.pop %v2278
  %v2283 = vmul.f32 %v2260, %v2279
  %v2284 = vmul.f32 %v2262, %v2280
  %v2285 = vmul.f32 %v2264, %v2281
  %v2286 = vmul.f32 %v2266, %v2282
  %2287 = vmatprep.subr.mxu0 0.0
  %2288 = vmatpush1.msra.mxu0 %v2283
  %2289 = vmatprep.subr.mxu0 0.0
  %2290 = vmatpush1.msra.mxu0 %v2284
  %2291 = vmatprep.subr.mxu0 0.0
  %2292 = vmatpush1.msra.mxu0 %v2285
  %2293 = vmatprep.subr.mxu0 0.0
  %2294 = vmatpush1.msra.mxu0 %v2286
  %2295 = vmatprep.subr.mxu0 0.0
  %2296 = vmatpush1.msra.mxu0 0.0
  %2297 = vmatprep.subr.mxu0 0.0
  %2298 = vmatpush1.msra.mxu0 0.0
  %2299 = vmatprep.subr.mxu0 0.0
  %2300 = vmatpush1.msra.mxu0 0.0
  %2301 = vmatprep.subr.mxu0 0.0
  %2302 = vmatpush1.msra.mxu0 0.0
  %2303 = vmatprep.subr.mxu0 0.0
  %2304 = vmatpush1.msra.mxu0 0.0
  %2305 = vmatprep.subr.mxu0 0.0
  %2306 = vmatpush1.msra.mxu0 0.0
  %2307 = vmatprep.subr.mxu0 0.0
  %2308 = vmatpush1.msra.mxu0 0.0
  %2309 = vmatprep.subr.mxu0 0.0
  %2310 = vmatpush1.msra.mxu0 0.0
  %2311 = vmatprep.subr.mxu0 0.0
  %2312 = vmatpush1.msra.mxu0 0.0
  %2313 = vmatprep.subr.mxu0 0.0
  %2314 = vmatpush1.msra.mxu0 0.0
  %2315 = vmatprep.subr.mxu0 0.0
  %2316 = vmatpush1.msra.mxu0 0.0
  %2317 = vmatprep.subr.mxu0 0.0
  %2318 = vmatpush1.msra.mxu0 0.0
  %2319 = vmatprep.subr.mxu0 0.0
  %2320 = vmatpush1.msra.mxu0 0.0
  %2321 = vmatprep.subr.mxu0 0.0
  %2322 = vmatpush1.msra.mxu0 0.0
  %2323 = vmatprep.subr.mxu0 0.0
  %2324 = vmatpush1.msra.mxu0 0.0
  %2325 = vmatprep.subr.mxu0 0.0
  %2326 = vmatpush1.msra.mxu0 0.0
  %2327 = vmatprep.subr.mxu0 0.0
  %2328 = vmatpush1.msra.mxu0 0.0
  %2329 = vmatprep.subr.mxu0 0.0
  %2330 = vmatpush1.msra.mxu0 0.0
  %2331 = vmatprep.subr.mxu0 0.0
  %2332 = vmatpush1.msra.mxu0 0.0
  %2333 = vmatprep.subr.mxu0 0.0
  %2334 = vmatpush1.msra.mxu0 0.0
  %2335 = vmatprep.subr.mxu0 0.0
  %2336 = vmatpush1.msra.mxu0 0.0
  %2337 = vmatprep.subr.mxu0 0.0
  %2338 = vmatpush1.msra.mxu0 0.0
  %2339 = vmatprep.subr.mxu0 0.0
  %2340 = vmatpush1.msra.mxu0 0.0
  %2341 = vmatprep.subr.mxu0 0.0
  %2342 = vmatpush1.msra.mxu0 0.0
  %2343 = vmatprep.subr.mxu0 0.0
  %2344 = vmatpush1.msra.mxu0 0.0
  %2345 = vmatprep.subr.mxu0 0.0
  %2346 = vmatpush1.msra.mxu0 0.0
  %2347 = vmatprep.subr.mxu0 0.0
  %2348 = vmatpush1.msra.mxu0 0.0
  %2349 = vmatprep.subr.mxu0 0.0
  %2350 = vmatpush1.msra.mxu0 0.0
  %2351 = vmatprep.mubr.f32.mxu0 0.0
  %2352 = vmatmul.mubr.f32.gmra.mrb[0].mxu0 %v1335
  %v2353 = vpop.f32.mrb[0].mxu0
  %v2354 = vadd.f32 %v830, %v2353
  %v2355 = vpop.f32.mrb[0].mxu0
  %2356 = vdwg.mxu0
  %2357 = vmatprep.subr.mxu0 0.0
  %2358 = vmatpush1.msra.mxu0 %v2283
  %2359 = vmatprep.subr.mxu0 0.0
  %2360 = vmatpush1.msra.mxu0 %v2284
  %2361 = vmatprep.subr.mxu0 0.0
  %2362 = vmatpush1.msra.mxu0 %v2285
  %2363 = vmatprep.subr.mxu0 0.0
  %2364 = vmatpush1.msra.mxu0 %v2286
  %2365 = vmatprep.subr.mxu0 0.0
  %2366 = vmatpush1.msra.mxu0 0.0
  %2367 = vmatprep.subr.mxu0 0.0
  %2368 = vmatpush1.msra.mxu0 0.0
  %2369 = vmatprep.subr.mxu0 0.0
  %2370 = vmatpush1.msra.mxu0 0.0
  %2371 = vmatprep.subr.mxu0 0.0
  %2372 = vmatpush1.msra.mxu0 0.0
  %2373 = vmatprep.subr.mxu0 0.0
  %2374 = vmatpush1.msra.mxu0 0.0
  %2375 = vmatprep.subr.mxu0 0.0
  %2376 = vmatpush1.msra.mxu0 0.0
  %2377 = vmatprep.subr.mxu0 0.0
  %2378 = vmatpush1.msra.mxu0 0.0
  %2379 = vmatprep.subr.mxu0 0.0
  %2380 = vmatpush1.msra.mxu0 0.0
  %2381 = vmatprep.subr.mxu0 0.0
  %2382 = vmatpush1.msra.mxu0 0.0
  %2383 = vmatprep.subr.mxu0 0.0
  %2384 = vmatpush1.msra.mxu0 0.0
  %2385 = vmatprep.subr.mxu0 0.0
  %2386 = vmatpush1.msra.mxu0 0.0
  %2387 = vmatprep.subr.mxu0 0.0
  %2388 = vmatpush1.msra.mxu0 0.0
  %2389 = vmatprep.subr.mxu0 0.0
  %2390 = vmatpush1.msra.mxu0 0.0
  %2391 = vmatprep.subr.mxu0 0.0
  %2392 = vmatpush1.msra.mxu0 0.0
  %2393 = vmatprep.subr.mxu0 0.0
  %2394 = vmatpush1.msra.mxu0 0.0
  %2395 = vmatprep.subr.mxu0 0.0
  %2396 = vmatpush1.msra.mxu0 0.0
  %2397 = vmatprep.subr.mxu0 0.0
  %2398 = vmatpush1.msra.mxu0 0.0
  %2399 = vmatprep.subr.mxu0 0.0
  %2400 = vmatpush1.msra.mxu0 0.0
  %2401 = vmatprep.subr.mxu0 0.0
  %2402 = vmatpush1.msra.mxu0 0.0
  %2403 = vmatprep.subr.mxu0 0.0
  %2404 = vmatpush1.msra.mxu0 0.0
  %2405 = vmatprep.subr.mxu0 0.0
  %2406 = vmatpush1.msra.mxu0 0.0
  %2407 = vmatprep.subr.mxu0 0.0
  %2408 = vmatpush1.msra.mxu0 0.0
  %2409 = vmatprep.subr.mxu0 0.0
  %2410 = vmatpush1.msra.mxu0 0.0
  %2411 = vmatprep.subr.mxu0 0.0
  %2412 = vmatpush1.msra.mxu0 0.0
  %2413 = vmatprep.subr.mxu0 0.0
  %2414 = vmatpush1.msra.mxu0 0.0
  %2415 = vmatprep.subr.mxu0 0.0
  %2416 = vmatpush1.msra.mxu0 0.0
  %2417 = vmatprep.subr.mxu0 0.0
  %2418 = vmatpush1.msra.mxu0 0.0
  %2419 = vmatprep.subr.mxu0 0.0
  %2420 = vmatpush1.msra.mxu0 0.0
  %2421 = vmatprep.mubr.f32.mxu0 0.0
  %2422 = vmatmul.mubr.f32.gmra.mrb[0].mxu0 %v833
  %v2423 = vpop.f32.mrb[0].mxu0
  %v2424 = vadd.f32 0.0, %v2423
  %v2425 = vpop.f32.mrb[0].mxu0
  %2426 = vmatprep.mubr.f32.mxu0 0.0
  %2427 = vmatmul.mubr.f32.gmra.mrb[0].mxu0 %v836
  %v2428 = vpop.f32.mrb[0].mxu0
  %v2429 = vadd.f32 0.0, %v2428
  %v2430 = vpop.f32.mrb[0].mxu0
  %2431 = vmatprep.mubr.f32.mxu0 0.0
  %2432 = vmatmul.mubr.f32.gmra.mrb[0].mxu0 %v839
  %v2433 = vpop.f32.mrb[0].mxu0
  %v2434 = vadd.f32 0.0, %v2433
  %v2435 = vpop.f32.mrb[0].mxu0
  %2436 = vmatprep.mubr.f32.mxu0 0.0
  %2437 = vmatmul.mubr.f32.gmra.mrb[0].mxu0 %v842
  %v2438 = vpop.f32.mrb[0].mxu0
  %v2439 = vadd.f32 0.0, %v2438
  %v2440 = vpop.f32.mrb[0].mxu0
  %2441 = vmatprep.mubr.f32.mxu0 0.0
  %2442 = vmatmul.mubr.f32.gmra.mrb[0].mxu0 %v845
  %v2443 = vpop.f32.mrb[0].mxu0
  %v2444 = vadd.f32 0.0, %v2443
  %v2445 = vpop.f32.mrb[0].mxu0
  %2446 = vmatprep.mubr.f32.mxu0 0.0
  %2447 = vmatmul.mubr.f32.gmra.mrb[0].mxu0 %v848
  %v2448 = vpop.f32.mrb[0].mxu0
  %v2449 = vadd.f32 0.0, %v2448
  %v2450 = vpop.f32.mrb[0].mxu0
  %2451 = vmatprep.mubr.f32.mxu0 0.0
  %2452 = vmatmul.mubr.f32.gmra.mrb[0].mxu0 %v851
  %v2453 = vpop.f32.mrb[0].mxu0
  %v2454 = vadd.f32 0.0, %v2453
  %v2455 = vpop.f32.mrb[0].mxu0
  %2456 = vmatprep.mubr.f32.mxu0 0.0
  %2457 = vmatmul.mubr.f32.gmra.mrb[0].mxu0 %v854
  %v2458 = vpop.f32.mrb[0].mxu0
  %v2459 = vadd.f32 0.0, %v2458
  %v2460 = vpop.f32.mrb[0].mxu0
  %2461 = vmatprep.mubr.f32.mxu0 0.0
  %2462 = vmatmul.mubr.f32.gmra.mrb[0].mxu0 %v857
  %v2463 = vpop.f32.mrb[0].mxu0
  %v2464 = vadd.f32 0.0, %v2463
  %v2465 = vpop.f32.mrb[0].mxu0
  %2466 = vmatprep.mubr.f32.mxu0 0.0
  %2467 = vmatmul.mubr.f32.gmra.mrb[0].mxu0 %v860
  %v2468 = vpop.f32.mrb[0].mxu0
  %v2469 = vadd.f32 0.0, %v2468
  %v2470 = vpop.f32.mrb[0].mxu0
  %2471 = vmatprep.mubr.f32.mxu0 0.0
  %2472 = vmatmul.mubr.f32.gmra.mrb[0].mxu0 %v863
  %v2473 = vpop.f32.mrb[0].mxu0
  %v2474 = vadd.f32 0.0, %v2473
  %v2475 = vpop.f32.mrb[0].mxu0
  %2476 = vmatprep.mubr.f32.mxu0 0.0
  %2477 = vmatmul.mubr.f32.gmra.mrb[0].mxu0 %v866
  %v2478 = vpop.f32.mrb[0].mxu0
  %v2479 = vadd.f32 0.0, %v2478
  %v2480 = vpop.f32.mrb[0].mxu0
  %2481 = vmatprep.mubr.f32.mxu0 0.0
  %2482 = vmatmul.mubr.f32.gmra.mrb[0].mxu0 %v869
  %v2483 = vpop.f32.mrb[0].mxu0
  %v2484 = vadd.f32 0.0, %v2483
  %v2485 = vpop.f32.mrb[0].mxu0
  %2486 = vmatprep.mubr.f32.mxu0 0.0
  %2487 = vmatmul.mubr.f32.gmra.mrb[0].mxu0 %v872
  %v2488 = vpop.f32.mrb[0].mxu0
  %v2489 = vadd.f32 0.0, %v2488
  %v2490 = vpop.f32.mrb[0].mxu0
  %2491 = vmatprep.mubr.f32.mxu0 0.0
  %2492 = vmatmul.mubr.f32.gmra.mrb[0].mxu0 %v875
  %v2493 = vpop.f32.mrb[0].mxu0
  %v2494 = vadd.f32 0.0, %v2493
  %v2495 = vpop.f32.mrb[0].mxu0
  %2496 = vmatprep.mubr.f32.mxu0 0.0
  %2497 = vmatmul.mubr.f32.gmra.mrb[0].mxu0 %v878
  %v2498 = vpop.f32.mrb[0].mxu0
  %v2499 = vadd.f32 0.0, %v2498
  %v2500 = vpop.f32.mrb[0].mxu0
  %2501 = vdwg.mxu0
  %v2503 = vsel %vm1073, %v2354, 0
  %2505 = vmatprep.subr.mxu0 0.0
  %2506 = vmatpush1.msra.mxu0 %v2503
  %2507 = vmatprep.subr.mxu0 0.0
  %2508 = vmatpush1.msra.mxu0 0.0
  %2509 = vmatprep.subr.mxu0 0.0
  %2510 = vmatpush1.msra.mxu0 0.0
  %2511 = vmatprep.subr.mxu0 0.0
  %2512 = vmatpush1.msra.mxu0 0.0
  %2513 = vmatprep.subr.mxu0 0.0
  %2514 = vmatpush1.msra.mxu0 0.0
  %2515 = vmatprep.subr.mxu0 0.0
  %2516 = vmatpush1.msra.mxu0 0.0
  %2517 = vmatprep.subr.mxu0 0.0
  %2518 = vmatpush1.msra.mxu0 0.0
  %2519 = vmatprep.subr.mxu0 0.0
  %2520 = vmatpush1.msra.mxu0 0.0
  %2521 = vmatprep.subr.mxu0 0.0
  %2522 = vmatpush1.msra.mxu0 0.0
  %2523 = vmatprep.subr.mxu0 0.0
  %2524 = vmatpush1.msra.mxu0 0.0
  %2525 = vmatprep.subr.mxu0 0.0
  %2526 = vmatpush1.msra.mxu0 0.0
  %2527 = vmatprep.subr.mxu0 0.0
  %2528 = vmatpush1.msra.mxu0 0.0
  %2529 = vmatprep.subr.mxu0 0.0
  %2530 = vmatpush1.msra.mxu0 0.0
  %2531 = vmatprep.subr.mxu0 0.0
  %2532 = vmatpush1.msra.mxu0 0.0
  %2533 = vmatprep.subr.mxu0 0.0
  %2534 = vmatpush1.msra.mxu0 0.0
  %2535 = vmatprep.subr.mxu0 0.0
  %2536 = vmatpush1.msra.mxu0 0.0
  %2537 = vmatprep.subr.mxu0 0.0
  %2538 = vmatpush1.msra.mxu0 0.0
  %2539 = vmatprep.subr.mxu0 0.0
  %2540 = vmatpush1.msra.mxu0 0.0
  %2541 = vmatprep.subr.mxu0 0.0
  %2542 = vmatpush1.msra.mxu0 0.0
  %2543 = vmatprep.subr.mxu0 0.0
  %2544 = vmatpush1.msra.mxu0 0.0
  %2545 = vmatprep.subr.mxu0 0.0
  %2546 = vmatpush1.msra.mxu0 0.0
  %2547 = vmatprep.subr.mxu0 0.0
  %2548 = vmatpush1.msra.mxu0 0.0
  %2549 = vmatprep.subr.mxu0 0.0
  %2550 = vmatpush1.msra.mxu0 0.0
  %2551 = vmatprep.subr.mxu0 0.0
  %2552 = vmatpush1.msra.mxu0 0.0
  %2553 = vmatprep.subr.mxu0 0.0
  %2554 = vmatpush1.msra.mxu0 0.0
  %2555 = vmatprep.subr.mxu0 0.0
  %2556 = vmatpush1.msra.mxu0 0.0
  %2557 = vmatprep.subr.mxu0 0.0
  %2558 = vmatpush1.msra.mxu0 0.0
  %2559 = vmatprep.subr.mxu0 0.0
  %2560 = vmatpush1.msra.mxu0 0.0
  %2561 = vmatprep.subr.mxu0 0.0
  %2562 = vmatpush1.msra.mxu0 0.0
  %2563 = vmatprep.subr.mxu0 0.0
  %2564 = vmatpush1.msra.mxu0 0.0
  %2565 = vmatprep.subr.mxu0 0.0
  %2566 = vmatpush1.msra.mxu0 0.0
  %2567 = vmatprep.subr.mxu0 0.0
  %2568 = vmatpush1.msra.mxu0 0.0
  %2569 = vmatprep.mubr.f32.mxu0 0.0
  %2570 = vmatmul.mubr.f32.gmra.mrb[0].mxu0 %v1026
  %v2571 = vpop.f32.mrb[0].mxu0
  %v2572 = vadd.f32 %v2424, %v2571
  %v2573 = vpop.f32.mrb[0].mxu0
  %2574 = vmatprep.mubr.f32.mxu0 0.0
  %2575 = vmatmul.mubr.f32.gmra.mrb[0].mxu0 %v1029
  %v2576 = vpop.f32.mrb[0].mxu0
  %v2577 = vadd.f32 %v2429, %v2576
  %v2578 = vpop.f32.mrb[0].mxu0
  %2579 = vmatprep.mubr.f32.mxu0 0.0
  %2580 = vmatmul.mubr.f32.gmra.mrb[0].mxu0 %v1032
  %v2581 = vpop.f32.mrb[0].mxu0
  %v2582 = vadd.f32 %v2434, %v2581
  %v2583 = vpop.f32.mrb[0].mxu0
  %2584 = vmatprep.mubr.f32.mxu0 0.0
  %2585 = vmatmul.mubr.f32.gmra.mrb[0].mxu0 %v1035
  %v2586 = vpop.f32.mrb[0].mxu0
  %v2587 = vadd.f32 %v2439, %v2586
  %v2588 = vpop.f32.mrb[0].mxu0
  %2589 = vmatprep.mubr.f32.mxu0 0.0
  %2590 = vmatmul.mubr.f32.gmra.mrb[0].mxu0 %v1038
  %v2591 = vpop.f32.mrb[0].mxu0
  %v2592 = vadd.f32 %v2444, %v2591
  %v2593 = vpop.f32.mrb[0].mxu0
  %2594 = vmatprep.mubr.f32.mxu0 0.0
  %2595 = vmatmul.mubr.f32.gmra.mrb[0].mxu0 %v1041
  %v2596 = vpop.f32.mrb[0].mxu0
  %v2597 = vadd.f32 %v2449, %v2596
  %v2598 = vpop.f32.mrb[0].mxu0
  %2599 = vmatprep.mubr.f32.mxu0 0.0
  %2600 = vmatmul.mubr.f32.gmra.mrb[0].mxu0 %v1044
  %v2601 = vpop.f32.mrb[0].mxu0
  %v2602 = vadd.f32 %v2454, %v2601
  %v2603 = vpop.f32.mrb[0].mxu0
  %2604 = vmatprep.mubr.f32.mxu0 0.0
  %2605 = vmatmul.mubr.f32.gmra.mrb[0].mxu0 %v1047
  %v2606 = vpop.f32.mrb[0].mxu0
  %v2607 = vadd.f32 %v2459, %v2606
  %v2608 = vpop.f32.mrb[0].mxu0
  %2609 = vmatprep.mubr.f32.mxu0 0.0
  %2610 = vmatmul.mubr.f32.gmra.mrb[0].mxu0 %v1050
  %v2611 = vpop.f32.mrb[0].mxu0
  %v2612 = vadd.f32 %v2464, %v2611
  %v2613 = vpop.f32.mrb[0].mxu0
  %2614 = vmatprep.mubr.f32.mxu0 0.0
  %2615 = vmatmul.mubr.f32.gmra.mrb[0].mxu0 %v1053
  %v2616 = vpop.f32.mrb[0].mxu0
  %v2617 = vadd.f32 %v2469, %v2616
  %v2618 = vpop.f32.mrb[0].mxu0
  %2619 = vmatprep.mubr.f32.mxu0 0.0
  %2620 = vmatmul.mubr.f32.gmra.mrb[0].mxu0 %v1056
  %v2621 = vpop.f32.mrb[0].mxu0
  %v2622 = vadd.f32 %v2474, %v2621
  %v2623 = vpop.f32.mrb[0].mxu0
  %2624 = vmatprep.mubr.f32.mxu0 0.0
  %2625 = vmatmul.mubr.f32.gmra.mrb[0].mxu0 %v1059
  %v2626 = vpop.f32.mrb[0].mxu0
  %v2627 = vadd.f32 %v2479, %v2626
  %v2628 = vpop.f32.mrb[0].mxu0
  %2629 = vmatprep.mubr.f32.mxu0 0.0
  %2630 = vmatmul.mubr.f32.gmra.mrb[0].mxu0 %v1062
  %v2631 = vpop.f32.mrb[0].mxu0
  %v2632 = vadd.f32 %v2484, %v2631
  %v2633 = vpop.f32.mrb[0].mxu0
  %2634 = vmatprep.mubr.f32.mxu0 0.0
  %2635 = vmatmul.mubr.f32.gmra.mrb[0].mxu0 %v1065
  %v2636 = vpop.f32.mrb[0].mxu0
  %v2637 = vadd.f32 %v2489, %v2636
  %v2638 = vpop.f32.mrb[0].mxu0
  %2639 = vmatprep.mubr.f32.mxu0 0.0
  %2640 = vmatmul.mubr.f32.gmra.mrb[0].mxu0 %v1068
  %v2641 = vpop.f32.mrb[0].mxu0
  %v2642 = vadd.f32 %v2494, %v2641
  %v2643 = vpop.f32.mrb[0].mxu0
  %2644 = vmatprep.mubr.f32.mxu0 0.0
  %2645 = vmatmul.mubr.f32.gmra.mrb[0].mxu0 %v1071
  %v2646 = vpop.f32.mrb[0].mxu0
  %v2647 = vadd.f32 %v2499, %v2646
  %v2648 = vpop.f32.mrb[0].mxu0
  %2649 = vdwg.mxu0
  %v2650 = vadd.f32 %v2572, %v813
  %v2651 = vadd.f32 %v2577, %v814
  %v2652 = vadd.f32 %v2582, %v815
  %v2653 = vadd.f32 %v2587, %v816
  %v2654 = vadd.f32 %v2592, %v817
  %v2655 = vadd.f32 %v2597, %v818
  %v2656 = vadd.f32 %v2602, %v819
  %v2657 = vadd.f32 %v2607, %v820
  %v2658 = vadd.f32 %v2612, %v821
  %v2659 = vadd.f32 %v2617, %v822
  %v2660 = vadd.f32 %v2622, %v823
  %v2661 = vadd.f32 %v2627, %v824
  %v2662 = vadd.f32 %v2632, %v825
  %v2663 = vadd.f32 %v2637, %v826
  %v2664 = vadd.f32 %v2642, %v827
  %v2665 = vadd.f32 %v2647, %v828
  %v2666 = vxor.u32 %v2650, 2147483648
  %v2667 = vxor.u32 %v2651, 2147483648
  %v2668 = vxor.u32 %v2652, 2147483648
  %v2669 = vxor.u32 %v2653, 2147483648
  %v2670 = vmul.f32 %v2666, 1.442695
  %v2671 = vpow.pop %v2670
  %v2672 = vmul.f32 %v2667, 1.442695
  %v2673 = vpow.pop %v2672
  %v2674 = vmul.f32 %v2668, 1.442695
  %v2675 = vpow.pop %v2674
  %v2676 = vmul.f32 %v2669, 1.442695
  %v2677 = vpow.pop %v2676
  %v2678 = vadd.f32 %v2671, 1.0
  %v2679 = vadd.f32 %v2673, 1.0
  %v2680 = vadd.f32 %v2675, 1.0
  %v2681 = vadd.f32 %v2677, 1.0
  %v2682 = vrcp.pop %v2678
  %v2683 = vmul.f32 1.0, %v2682
  %v2684 = vrcp.pop %v2679
  %v2685 = vmul.f32 1.0, %v2684
  %v2686 = vrcp.pop %v2680
  %v2687 = vmul.f32 1.0, %v2686
  %v2688 = vrcp.pop %v2681
  %v2689 = vmul.f32 1.0, %v2688
  %v2690 = vxor.u32 %v2654, 2147483648
  %v2691 = vxor.u32 %v2655, 2147483648
  %v2692 = vxor.u32 %v2656, 2147483648
  %v2693 = vxor.u32 %v2657, 2147483648
  %v2694 = vmul.f32 %v2690, 1.442695
  %v2695 = vpow.pop %v2694
  %v2696 = vmul.f32 %v2691, 1.442695
  %v2697 = vpow.pop %v2696
  %v2698 = vmul.f32 %v2692, 1.442695
  %v2699 = vpow.pop %v2698
  %v2700 = vmul.f32 %v2693, 1.442695
  %v2701 = vpow.pop %v2700
  %v2702 = vadd.f32 %v2695, 1.0
  %v2703 = vadd.f32 %v2697, 1.0
  %v2704 = vadd.f32 %v2699, 1.0
  %v2705 = vadd.f32 %v2701, 1.0
  %v2706 = vrcp.pop %v2702
  %v2707 = vmul.f32 1.0, %v2706
  %v2708 = vrcp.pop %v2703
  %v2709 = vmul.f32 1.0, %v2708
  %v2710 = vrcp.pop %v2704
  %v2711 = vmul.f32 1.0, %v2710
  %v2712 = vrcp.pop %v2705
  %v2713 = vmul.f32 1.0, %v2712
  %v2714 = vtanh.pop %v2658
  %v2715 = vtanh.pop %v2659
  %v2716 = vtanh.pop %v2660
  %v2717 = vtanh.pop %v2661
  %v2718 = vxor.u32 %v2662, 2147483648
  %v2719 = vxor.u32 %v2663, 2147483648
  %v2720 = vxor.u32 %v2664, 2147483648
  %v2721 = vxor.u32 %v2665, 2147483648
  %v2722 = vmul.f32 %v2718, 1.442695
  %v2723 = vpow.pop %v2722
  %v2724 = vmul.f32 %v2719, 1.442695
  %v2725 = vpow.pop %v2724
  %v2726 = vmul.f32 %v2720, 1.442695
  %v2727 = vpow.pop %v2726
  %v2728 = vmul.f32 %v2721, 1.442695
  %v2729 = vpow.pop %v2728
  %v2730 = vadd.f32 %v2723, 1.0
  %v2731 = vadd.f32 %v2725, 1.0
  %v2732 = vadd.f32 %v2727, 1.0
  %v2733 = vadd.f32 %v2729, 1.0
  %v2734 = vrcp.pop %v2730
  %v2735 = vmul.f32 1.0, %v2734
  %v2736 = vrcp.pop %v2731
  %v2737 = vmul.f32 1.0, %v2736
  %v2738 = vrcp.pop %v2732
  %v2739 = vmul.f32 1.0, %v2738
  %v2740 = vrcp.pop %v2733
  %v2741 = vmul.f32 1.0, %v2740
  %v2742 = vmul.f32 %v2707, %v2275
  %v2743 = vmul.f32 %v2709, %v2276
  %v2744 = vmul.f32 %v2711, %v2277
  %v2745 = vmul.f32 %v2713, %v2278
  %v2746 = vmul.f32 %v2683, %v2714
  %v2747 = vmul.f32 %v2685, %v2715
  %v2748 = vmul.f32 %v2687, %v2716
  %v2749 = vmul.f32 %v2689, %v2717
  %v2750 = vadd.f32 %v2742, %v2746
  %v2751 = vadd.f32 %v2743, %v2747
  %v2752 = vadd.f32 %v2744, %v2748
  %v2753 = vadd.f32 %v2745, %v2749
  %v2754 = vtanh.pop %v2750
  %v2755 = vtanh.pop %v2751
  %v2756 = vtanh.pop %v2752
  %v2757 = vtanh.pop %v2753
  %v2758 = vmul.f32 %v2735, %v2754
  %v2759 = vmul.f32 %v2737, %v2755
  %v2760 = vmul.f32 %v2739, %v2756
  %v2761 = vmul.f32 %v2741, %v2757
  %2762 = vmatprep.subr.mxu0 0.0
  %2763 = vmatpush1.msra.mxu0 %v2758
  %2764 = vmatprep.subr.mxu0 0.0
  %2765 = vmatpush1.msra.mxu0 %v2759
  %2766 = vmatprep.subr.mxu0 0.0
  %2767 = vmatpush1.msra.mxu0 %v2760
  %2768 = vmatprep.subr.mxu0 0.0
  %2769 = vmatpush1.msra.mxu0 %v2761
  %2770 = vmatprep.subr.mxu0 0.0
  %2771 = vmatpush1.msra.mxu0 0.0
  %2772 = vmatprep.subr.mxu0 0.0
  %2773 = vmatpush1.msra.mxu0 0.0
  %2774 = vmatprep.subr.mxu0 0.0
  %2775 = vmatpush1.msra.mxu0 0.0
  %2776 = vmatprep.subr.mxu0 0.0
  %2777 = vmatpush1.msra.mxu0 0.0
  %2778 = vmatprep.subr.mxu0 0.0
  %2779 = vmatpush1.msra.mxu0 0.0
  %2780 = vmatprep.subr.mxu0 0.0
  %2781 = vmatpush1.msra.mxu0 0.0
  %2782 = vmatprep.subr.mxu0 0.0
  %2783 = vmatpush1.msra.mxu0 0.0
  %2784 = vmatprep.subr.mxu0 0.0
  %2785 = vmatpush1.msra.mxu0 0.0
  %2786 = vmatprep.subr.mxu0 0.0
  %2787 = vmatpush1.msra.mxu0 0.0
  %2788 = vmatprep.subr.mxu0 0.0
  %2789 = vmatpush1.msra.mxu0 0.0
  %2790 = vmatprep.subr.mxu0 0.0
  %2791 = vmatpush1.msra.mxu0 0.0
  %2792 = vmatprep.subr.mxu0 0.0
  %2793 = vmatpush1.msra.mxu0 0.0
  %2794 = vmatprep.subr.mxu0 0.0
  %2795 = vmatpush1.msra.mxu0 0.0
  %2796 = vmatprep.subr.mxu0 0.0
  %2797 = vmatpush1.msra.mxu0 0.0
  %2798 = vmatprep.subr.mxu0 0.0
  %2799 = vmatpush1.msra.mxu0 0.0
  %2800 = vmatprep.subr.mxu0 0.0
  %2801 = vmatpush1.msra.mxu0 0.0
  %2802 = vmatprep.subr.mxu0 0.0
  %2803 = vmatpush1.msra.mxu0 0.0
  %2804 = vmatprep.subr.mxu0 0.0
  %2805 = vmatpush1.msra.mxu0 0.0
  %2806 = vmatprep.subr.mxu0 0.0
  %2807 = vmatpush1.msra.mxu0 0.0
  %2808 = vmatprep.subr.mxu0 0.0
  %2809 = vmatpush1.msra.mxu0 0.0
  %2810 = vmatprep.subr.mxu0 0.0
  %2811 = vmatpush1.msra.mxu0 0.0
  %2812 = vmatprep.subr.mxu0 0.0
  %2813 = vmatpush1.msra.mxu0 0.0
  %2814 = vmatprep.subr.mxu0 0.0
  %2815 = vmatpush1.msra.mxu0 0.0
  %2816 = vmatprep.subr.mxu0 0.0
  %2817 = vmatpush1.msra.mxu0 0.0
  %2818 = vmatprep.subr.mxu0 0.0
  %2819 = vmatpush1.msra.mxu0 0.0
  %2820 = vmatprep.subr.mxu0 0.0
  %2821 = vmatpush1.msra.mxu0 0.0
  %2822 = vmatprep.subr.mxu0 0.0
  %2823 = vmatpush1.msra.mxu0 0.0
  %2824 = vmatprep.subr.mxu0 0.0
  %2825 = vmatpush1.msra.mxu0 0.0
  %2826 = vmatprep.mubr.f32.mxu0 0.0
  %2827 = vmatmul.mubr.f32.gmra.mrb[0].mxu0 %v1335
  %v2828 = vpop.f32.mrb[0].mxu0
  %v2829 = vadd.f32 %v830, %v2828
  %v2830 = vpop.f32.mrb[0].mxu0
  %2831 = vdwg.mxu0
  %2832 = vmatprep.subr.mxu0 0.0
  %2833 = vmatpush1.msra.mxu0 %v2758
  %2834 = vmatprep.subr.mxu0 0.0
  %2835 = vmatpush1.msra.mxu0 %v2759
  %2836 = vmatprep.subr.mxu0 0.0
  %2837 = vmatpush1.msra.mxu0 %v2760
  %2838 = vmatprep.subr.mxu0 0.0
  %2839 = vmatpush1.msra.mxu0 %v2761
  %2840 = vmatprep.subr.mxu0 0.0
  %2841 = vmatpush1.msra.mxu0 0.0
  %2842 = vmatprep.subr.mxu0 0.0
  %2843 = vmatpush1.msra.mxu0 0.0
  %2844 = vmatprep.subr.mxu0 0.0
  %2845 = vmatpush1.msra.mxu0 0.0
  %2846 = vmatprep.subr.mxu0 0.0
  %2847 = vmatpush1.msra.mxu0 0.0
  %2848 = vmatprep.subr.mxu0 0.0
  %2849 = vmatpush1.msra.mxu0 0.0
  %2850 = vmatprep.subr.mxu0 0.0
  %2851 = vmatpush1.msra.mxu0 0.0
  %2852 = vmatprep.subr.mxu0 0.0
  %2853 = vmatpush1.msra.mxu0 0.0
  %2854 = vmatprep.subr.mxu0 0.0
  %2855 = vmatpush1.msra.mxu0 0.0
  %2856 = vmatprep.subr.mxu0 0.0
  %2857 = vmatpush1.msra.mxu0 0.0
  %2858 = vmatprep.subr.mxu0 0.0
  %2859 = vmatpush1.msra.mxu0 0.0
  %2860 = vmatprep.subr.mxu0 0.0
  %2861 = vmatpush1.msra.mxu0 0.0
  %2862 = vmatprep.subr.mxu0 0.0
  %2863 = vmatpush1.msra.mxu0 0.0
  %2864 = vmatprep.subr.mxu0 0.0
  %2865 = vmatpush1.msra.mxu0 0.0
  %2866 = vmatprep.subr.mxu0 0.0
  %2867 = vmatpush1.msra.mxu0 0.0
  %2868 = vmatprep.subr.mxu0 0.0
  %2869 = vmatpush1.msra.mxu0 0.0
  %2870 = vmatprep.subr.mxu0 0.0
  %2871 = vmatpush1.msra.mxu0 0.0
  %2872 = vmatprep.subr.mxu0 0.0
  %2873 = vmatpush1.msra.mxu0 0.0
  %2874 = vmatprep.subr.mxu0 0.0
  %2875 = vmatpush1.msra.mxu0 0.0
  %2876 = vmatprep.subr.mxu0 0.0
  %2877 = vmatpush1.msra.mxu0 0.0
  %2878 = vmatprep.subr.mxu0 0.0
  %2879 = vmatpush1.msra.mxu0 0.0
  %2880 = vmatprep.subr.mxu0 0.0
  %2881 = vmatpush1.msra.mxu0 0.0
  %2882 = vmatprep.subr.mxu0 0.0
  %2883 = vmatpush1.msra.mxu0 0.0
  %2884 = vmatprep.subr.mxu0 0.0
  %2885 = vmatpush1.msra.mxu0 0.0
  %2886 = vmatprep.subr.mxu0 0.0
  %2887 = vmatpush1.msra.mxu0 0.0
  %2888 = vmatprep.subr.mxu0 0.0
  %2889 = vmatpush1.msra.mxu0 0.0
  %2890 = vmatprep.subr.mxu0 0.0
  %2891 = vmatpush1.msra.mxu0 0.0
  %2892 = vmatprep.subr.mxu0 0.0
  %2893 = vmatpush1.msra.mxu0 0.0
  %2894 = vmatprep.subr.mxu0 0.0
  %2895 = vmatpush1.msra.mxu0 0.0
  %2896 = vmatprep.mubr.f32.mxu0 0.0
  %2897 = vmatmul.mubr.f32.gmra.mrb[0].mxu0 %v833
  %v2898 = vpop.f32.mrb[0].mxu0
  %v2899 = vadd.f32 0.0, %v2898
  %v2900 = vpop.f32.mrb[0].mxu0
  %2901 = vmatprep.mubr.f32.mxu0 0.0
  %2902 = vmatmul.mubr.f32.gmra.mrb[0].mxu0 %v836
  %v2903 = vpop.f32.mrb[0].mxu0
  %v2904 = vadd.f32 0.0, %v2903
  %v2905 = vpop.f32.mrb[0].mxu0
  %2906 = vmatprep.mubr.f32.mxu0 0.0
  %2907 = vmatmul.mubr.f32.gmra.mrb[0].mxu0 %v839
  %v2908 = vpop.f32.mrb[0].mxu0
  %v2909 = vadd.f32 0.0, %v2908
  %v2910 = vpop.f32.mrb[0].mxu0
  %2911 = vmatprep.mubr.f32.mxu0 0.0
  %2912 = vmatmul.mubr.f32.gmra.mrb[0].mxu0 %v842
  %v2913 = vpop.f32.mrb[0].mxu0
  %v2914 = vadd.f32 0.0, %v2913
  %v2915 = vpop.f32.mrb[0].mxu0
  %2916 = vmatprep.mubr.f32.mxu0 0.0
  %2917 = vmatmul.mubr.f32.gmra.mrb[0].mxu0 %v845
  %v2918 = vpop.f32.mrb[0].mxu0
  %v2919 = vadd.f32 0.0, %v2918
  %v2920 = vpop.f32.mrb[0].mxu0
  %2921 = vmatprep.mubr.f32.mxu0 0.0
  %2922 = vmatmul.mubr.f32.gmra.mrb[0].mxu0 %v848
  %v2923 = vpop.f32.mrb[0].mxu0
  %v2924 = vadd.f32 0.0, %v2923
  %v2925 = vpop.f32.mrb[0].mxu0
  %2926 = vmatprep.mubr.f32.mxu0 0.0
  %2927 = vmatmul.mubr.f32.gmra.mrb[0].mxu0 %v851
  %v2928 = vpop.f32.mrb[0].mxu0
  %v2929 = vadd.f32 0.0, %v2928
  %v2930 = vpop.f32.mrb[0].mxu0
  %2931 = vmatprep.mubr.f32.mxu0 0.0
  %2932 = vmatmul.mubr.f32.gmra.mrb[0].mxu0 %v854
  %v2933 = vpop.f32.mrb[0].mxu0
  %v2934 = vadd.f32 0.0, %v2933
  %v2935 = vpop.f32.mrb[0].mxu0
  %2936 = vmatprep.mubr.f32.mxu0 0.0
  %2937 = vmatmul.mubr.f32.gmra.mrb[0].mxu0 %v857
  %v2938 = vpop.f32.mrb[0].mxu0
  %v2939 = vadd.f32 0.0, %v2938
  %v2940 = vpop.f32.mrb[0].mxu0
  %2941 = vmatprep.mubr.f32.mxu0 0.0
  %2942 = vmatmul.mubr.f32.gmra.mrb[0].mxu0 %v860
  %v2943 = vpop.f32.mrb[0].mxu0
  %v2944 = vadd.f32 0.0, %v2943
  %v2945 = vpop.f32.mrb[0].mxu0
  %2946 = vmatprep.mubr.f32.mxu0 0.0
  %2947 = vmatmul.mubr.f32.gmra.mrb[0].mxu0 %v863
  %v2948 = vpop.f32.mrb[0].mxu0
  %v2949 = vadd.f32 0.0, %v2948
  %v2950 = vpop.f32.mrb[0].mxu0
  %2951 = vmatprep.mubr.f32.mxu0 0.0
  %2952 = vmatmul.mubr.f32.gmra.mrb[0].mxu0 %v866
  %v2953 = vpop.f32.mrb[0].mxu0
  %v2954 = vadd.f32 0.0, %v2953
  %v2955 = vpop.f32.mrb[0].mxu0
  %2956 = vmatprep.mubr.f32.mxu0 0.0
  %2957 = vmatmul.mubr.f32.gmra.mrb[0].mxu0 %v869
  %v2958 = vpop.f32.mrb[0].mxu0
  %v2959 = vadd.f32 0.0, %v2958
  %v2960 = vpop.f32.mrb[0].mxu0
  %2961 = vmatprep.mubr.f32.mxu0 0.0
  %2962 = vmatmul.mubr.f32.gmra.mrb[0].mxu0 %v872
  %v2963 = vpop.f32.mrb[0].mxu0
  %v2964 = vadd.f32 0.0, %v2963
  %v2965 = vpop.f32.mrb[0].mxu0
  %2966 = vmatprep.mubr.f32.mxu0 0.0
  %2967 = vmatmul.mubr.f32.gmra.mrb[0].mxu0 %v875
  %v2968 = vpop.f32.mrb[0].mxu0
  %v2969 = vadd.f32 0.0, %v2968
  %v2970 = vpop.f32.mrb[0].mxu0
  %2971 = vmatprep.mubr.f32.mxu0 0.0
  %2972 = vmatmul.mubr.f32.gmra.mrb[0].mxu0 %v878
  %v2973 = vpop.f32.mrb[0].mxu0
  %v2974 = vadd.f32 0.0, %v2973
  %v2975 = vpop.f32.mrb[0].mxu0
  %2976 = vdwg.mxu0
  %v2978 = vsel %vm1073, %v2829, 0
  %2980 = vmatprep.subr.mxu0 0.0
  %2981 = vmatpush1.msra.mxu0 %v2978
  %2982 = vmatprep.subr.mxu0 0.0
  %2983 = vmatpush1.msra.mxu0 0.0
  %2984 = vmatprep.subr.mxu0 0.0
  %2985 = vmatpush1.msra.mxu0 0.0
  %2986 = vmatprep.subr.mxu0 0.0
  %2987 = vmatpush1.msra.mxu0 0.0
  %2988 = vmatprep.subr.mxu0 0.0
  %2989 = vmatpush1.msra.mxu0 0.0
  %2990 = vmatprep.subr.mxu0 0.0
  %2991 = vmatpush1.msra.mxu0 0.0
  %2992 = vmatprep.subr.mxu0 0.0
  %2993 = vmatpush1.msra.mxu0 0.0
  %2994 = vmatprep.subr.mxu0 0.0
  %2995 = vmatpush1.msra.mxu0 0.0
  %2996 = vmatprep.subr.mxu0 0.0
  %2997 = vmatpush1.msra.mxu0 0.0
  %2998 = vmatprep.subr.mxu0 0.0
  %2999 = vmatpush1.msra.mxu0 0.0
  %3000 = vmatprep.subr.mxu0 0.0
  %3001 = vmatpush1.msra.mxu0 0.0
  %3002 = vmatprep.subr.mxu0 0.0
  %3003 = vmatpush1.msra.mxu0 0.0
  %3004 = vmatprep.subr.mxu0 0.0
  %3005 = vmatpush1.msra.mxu0 0.0
  %3006 = vmatprep.subr.mxu0 0.0
  %3007 = vmatpush1.msra.mxu0 0.0
  %3008 = vmatprep.subr.mxu0 0.0
  %3009 = vmatpush1.msra.mxu0 0.0
  %3010 = vmatprep.subr.mxu0 0.0
  %3011 = vmatpush1.msra.mxu0 0.0
  %3012 = vmatprep.subr.mxu0 0.0
  %3013 = vmatpush1.msra.mxu0 0.0
  %3014 = vmatprep.subr.mxu0 0.0
  %3015 = vmatpush1.msra.mxu0 0.0
  %3016 = vmatprep.subr.mxu0 0.0
  %3017 = vmatpush1.msra.mxu0 0.0
  %3018 = vmatprep.subr.mxu0 0.0
  %3019 = vmatpush1.msra.mxu0 0.0
  %3020 = vmatprep.subr.mxu0 0.0
  %3021 = vmatpush1.msra.mxu0 0.0
  %3022 = vmatprep.subr.mxu0 0.0
  %3023 = vmatpush1.msra.mxu0 0.0
  %3024 = vmatprep.subr.mxu0 0.0
  %3025 = vmatpush1.msra.mxu0 0.0
  %3026 = vmatprep.subr.mxu0 0.0
  %3027 = vmatpush1.msra.mxu0 0.0
  %3028 = vmatprep.subr.mxu0 0.0
  %3029 = vmatpush1.msra.mxu0 0.0
  %3030 = vmatprep.subr.mxu0 0.0
  %3031 = vmatpush1.msra.mxu0 0.0
  %3032 = vmatprep.subr.mxu0 0.0
  %3033 = vmatpush1.msra.mxu0 0.0
  %3034 = vmatprep.subr.mxu0 0.0
  %3035 = vmatpush1.msra.mxu0 0.0
  %3036 = vmatprep.subr.mxu0 0.0
  %3037 = vmatpush1.msra.mxu0 0.0
  %3038 = vmatprep.subr.mxu0 0.0
  %3039 = vmatpush1.msra.mxu0 0.0
  %3040 = vmatprep.subr.mxu0 0.0
  %3041 = vmatpush1.msra.mxu0 0.0
  %3042 = vmatprep.subr.mxu0 0.0
  %3043 = vmatpush1.msra.mxu0 0.0
  %3044 = vmatprep.mubr.f32.mxu0 0.0
  %3045 = vmatmul.mubr.f32.gmra.mrb[0].mxu0 %v1026
  %v3046 = vpop.f32.mrb[0].mxu0
  %v3047 = vadd.f32 %v2899, %v3046
  %v3048 = vpop.f32.mrb[0].mxu0
  %3049 = vmatprep.mubr.f32.mxu0 0.0
  %3050 = vmatmul.mubr.f32.gmra.mrb[0].mxu0 %v1029
  %v3051 = vpop.f32.mrb[0].mxu0
  %v3052 = vadd.f32 %v2904, %v3051
  %v3053 = vpop.f32.mrb[0].mxu0
  %3054 = vmatprep.mubr.f32.mxu0 0.0
  %3055 = vmatmul.mubr.f32.gmra.mrb[0].mxu0 %v1032
  %v3056 = vpop.f32.mrb[0].mxu0
  %v3057 = vadd.f32 %v2909, %v3056
  %v3058 = vpop.f32.mrb[0].mxu0
  %3059 = vmatprep.mubr.f32.mxu0 0.0
  %3060 = vmatmul.mubr.f32.gmra.mrb[0].mxu0 %v1035
  %v3061 = vpop.f32.mrb[0].mxu0
  %v3062 = vadd.f32 %v2914, %v3061
  %v3063 = vpop.f32.mrb[0].mxu0
  %3064 = vmatprep.mubr.f32.mxu0 0.0
  %3065 = vmatmul.mubr.f32.gmra.mrb[0].mxu0 %v1038
  %v3066 = vpop.f32.mrb[0].mxu0
  %v3067 = vadd.f32 %v2919, %v3066
  %v3068 = vpop.f32.mrb[0].mxu0
  %3069 = vmatprep.mubr.f32.mxu0 0.0
  %3070 = vmatmul.mubr.f32.gmra.mrb[0].mxu0 %v1041
  %v3071 = vpop.f32.mrb[0].mxu0
  %v3072 = vadd.f32 %v2924, %v3071
  %v3073 = vpop.f32.mrb[0].mxu0
  %3074 = vmatprep.mubr.f32.mxu0 0.0
  %3075 = vmatmul.mubr.f32.gmra.mrb[0].mxu0 %v1044
  %v3076 = vpop.f32.mrb[0].mxu0
  %v3077 = vadd.f32 %v2929, %v3076
  %v3078 = vpop.f32.mrb[0].mxu0
  %3079 = vmatprep.mubr.f32.mxu0 0.0
  %3080 = vmatmul.mubr.f32.gmra.mrb[0].mxu0 %v1047
  %v3081 = vpop.f32.mrb[0].mxu0
  %v3082 = vadd.f32 %v2934, %v3081
  %v3083 = vpop.f32.mrb[0].mxu0
  %3084 = vmatprep.mubr.f32.mxu0 0.0
  %3085 = vmatmul.mubr.f32.gmra.mrb[0].mxu0 %v1050
  %v3086 = vpop.f32.mrb[0].mxu0
  %v3087 = vadd.f32 %v2939, %v3086
  %v3088 = vpop.f32.mrb[0].mxu0
  %3089 = vmatprep.mubr.f32.mxu0 0.0
  %3090 = vmatmul.mubr.f32.gmra.mrb[0].mxu0 %v1053
  %v3091 = vpop.f32.mrb[0].mxu0
  %v3092 = vadd.f32 %v2944, %v3091
  %v3093 = vpop.f32.mrb[0].mxu0
  %3094 = vmatprep.mubr.f32.mxu0 0.0
  %3095 = vmatmul.mubr.f32.gmra.mrb[0].mxu0 %v1056
  %v3096 = vpop.f32.mrb[0].mxu0
  %v3097 = vadd.f32 %v2949, %v3096
  %v3098 = vpop.f32.mrb[0].mxu0
  %3099 = vmatprep.mubr.f32.mxu0 0.0
  %3100 = vmatmul.mubr.f32.gmra.mrb[0].mxu0 %v1059
  %v3101 = vpop.f32.mrb[0].mxu0
  %v3102 = vadd.f32 %v2954, %v3101
  %v3103 = vpop.f32.mrb[0].mxu0
  %3104 = vmatprep.mubr.f32.mxu0 0.0
  %3105 = vmatmul.mubr.f32.gmra.mrb[0].mxu0 %v1062
  %v3106 = vpop.f32.mrb[0].mxu0
  %v3107 = vadd.f32 %v2959, %v3106
  %v3108 = vpop.f32.mrb[0].mxu0
  %3109 = vmatprep.mubr.f32.mxu0 0.0
  %3110 = vmatmul.mubr.f32.gmra.mrb[0].mxu0 %v1065
  %v3111 = vpop.f32.mrb[0].mxu0
  %v3112 = vadd.f32 %v2964, %v3111
  %v3113 = vpop.f32.mrb[0].mxu0
  %3114 = vmatprep.mubr.f32.mxu0 0.0
  %3115 = vmatmul.mubr.f32.gmra.mrb[0].mxu0 %v1068
  %v3116 = vpop.f32.mrb[0].mxu0
  %v3117 = vadd.f32 %v2969, %v3116
  %v3118 = vpop.f32.mrb[0].mxu0
  %3119 = vmatprep.mubr.f32.mxu0 0.0
  %3120 = vmatmul.mubr.f32.gmra.mrb[0].mxu0 %v1071
  %v3121 = vpop.f32.mrb[0].mxu0
  %v3122 = vadd.f32 %v2974, %v3121
  %v3123 = vpop.f32.mrb[0].mxu0
  %3124 = vdwg.mxu0
  %v3125 = vadd.f32 %v3047, %v813
  %v3126 = vadd.f32 %v3052, %v814
  %v3127 = vadd.f32 %v3057, %v815
  %v3128 = vadd.f32 %v3062, %v816
  %v3129 = vadd.f32 %v3067, %v817
  %v3130 = vadd.f32 %v3072, %v818
  %v3131 = vadd.f32 %v3077, %v819
  %v3132 = vadd.f32 %v3082, %v820
  %v3133 = vadd.f32 %v3087, %v821
  %v3134 = vadd.f32 %v3092, %v822
  %v3135 = vadd.f32 %v3097, %v823
  %v3136 = vadd.f32 %v3102, %v824
  %v3137 = vadd.f32 %v3107, %v825
  %v3138 = vadd.f32 %v3112, %v826
  %v3139 = vadd.f32 %v3117, %v827
  %v3140 = vadd.f32 %v3122, %v828
  %v3141 = vxor.u32 %v3125, 2147483648
  %v3142 = vxor.u32 %v3126, 2147483648
  %v3143 = vxor.u32 %v3127, 2147483648
  %v3144 = vxor.u32 %v3128, 2147483648
  %v3145 = vmul.f32 %v3141, 1.442695
  %v3146 = vpow.pop %v3145
  %v3147 = vmul.f32 %v3142, 1.442695
  %v3148 = vpow.pop %v3147
  %v3149 = vmul.f32 %v3143, 1.442695
  %v3150 = vpow.pop %v3149
  %v3151 = vmul.f32 %v3144, 1.442695
  %v3152 = vpow.pop %v3151
  %v3153 = vadd.f32 %v3146, 1.0
  %v3154 = vadd.f32 %v3148, 1.0
  %v3155 = vadd.f32 %v3150, 1.0
  %v3156 = vadd.f32 %v3152, 1.0
  %v3157 = vrcp.pop %v3153
  %v3158 = vmul.f32 1.0, %v3157
  %v3159 = vrcp.pop %v3154
  %v3160 = vmul.f32 1.0, %v3159
  %v3161 = vrcp.pop %v3155
  %v3162 = vmul.f32 1.0, %v3161
  %v3163 = vrcp.pop %v3156
  %v3164 = vmul.f32 1.0, %v3163
  %v3165 = vxor.u32 %v3129, 2147483648
  %v3166 = vxor.u32 %v3130, 2147483648
  %v3167 = vxor.u32 %v3131, 2147483648
  %v3168 = vxor.u32 %v3132, 2147483648
  %v3169 = vmul.f32 %v3165, 1.442695
  %v3170 = vpow.pop %v3169
  %v3171 = vmul.f32 %v3166, 1.442695
  %v3172 = vpow.pop %v3171
  %v3173 = vmul.f32 %v3167, 1.442695
  %v3174 = vpow.pop %v3173
  %v3175 = vmul.f32 %v3168, 1.442695
  %v3176 = vpow.pop %v3175
  %v3177 = vadd.f32 %v3170, 1.0
  %v3178 = vadd.f32 %v3172, 1.0
  %v3179 = vadd.f32 %v3174, 1.0
  %v3180 = vadd.f32 %v3176, 1.0
  %v3181 = vrcp.pop %v3177
  %v3182 = vmul.f32 1.0, %v3181
  %v3183 = vrcp.pop %v3178
  %v3184 = vmul.f32 1.0, %v3183
  %v3185 = vrcp.pop %v3179
  %v3186 = vmul.f32 1.0, %v3185
  %v3187 = vrcp.pop %v3180
  %v3188 = vmul.f32 1.0, %v3187
  %v3189 = vtanh.pop %v3133
  %v3190 = vtanh.pop %v3134
  %v3191 = vtanh.pop %v3135
  %v3192 = vtanh.pop %v3136
  %v3193 = vxor.u32 %v3137, 2147483648
  %v3194 = vxor.u32 %v3138, 2147483648
  %v3195 = vxor.u32 %v3139, 2147483648
  %v3196 = vxor.u32 %v3140, 2147483648
  %v3197 = vmul.f32 %v3193, 1.442695
  %v3198 = vpow.pop %v3197
  %v3199 = vmul.f32 %v3194, 1.442695
  %v3200 = vpow.pop %v3199
  %v3201 = vmul.f32 %v3195, 1.442695
  %v3202 = vpow.pop %v3201
  %v3203 = vmul.f32 %v3196, 1.442695
  %v3204 = vpow.pop %v3203
  %v3205 = vadd.f32 %v3198, 1.0
  %v3206 = vadd.f32 %v3200, 1.0
  %v3207 = vadd.f32 %v3202, 1.0
  %v3208 = vadd.f32 %v3204, 1.0
  %v3209 = vrcp.pop %v3205
  %v3210 = vmul.f32 1.0, %v3209
  %v3211 = vrcp.pop %v3206
  %v3212 = vmul.f32 1.0, %v3211
  %v3213 = vrcp.pop %v3207
  %v3214 = vmul.f32 1.0, %v3213
  %v3215 = vrcp.pop %v3208
  %v3216 = vmul.f32 1.0, %v3215
  %v3217 = vmul.f32 %v3182, %v2750
  %v3218 = vmul.f32 %v3184, %v2751
  %v3219 = vmul.f32 %v3186, %v2752
  %v3220 = vmul.f32 %v3188, %v2753
  %v3221 = vmul.f32 %v3158, %v3189
  %v3222 = vmul.f32 %v3160, %v3190
  %v3223 = vmul.f32 %v3162, %v3191
  %v3224 = vmul.f32 %v3164, %v3192
  %v3225 = vadd.f32 %v3217, %v3221
  %v3226 = vadd.f32 %v3218, %v3222
  %v3227 = vadd.f32 %v3219, %v3223
  %v3228 = vadd.f32 %v3220, %v3224
  %v3229 = vtanh.pop %v3225
  %v3230 = vtanh.pop %v3226
  %v3231 = vtanh.pop %v3227
  %v3232 = vtanh.pop %v3228
  %v3233 = vmul.f32 %v3210, %v3229
  %v3234 = vmul.f32 %v3212, %v3230
  %v3235 = vmul.f32 %v3214, %v3231
  %v3236 = vmul.f32 %v3216, %v3232
  %3237 = vmatprep.subr.mxu0 0.0
  %3238 = vmatpush1.msra.mxu0 %v3233
  %3239 = vmatprep.subr.mxu0 0.0
  %3240 = vmatpush1.msra.mxu0 %v3234
  %3241 = vmatprep.subr.mxu0 0.0
  %3242 = vmatpush1.msra.mxu0 %v3235
  %3243 = vmatprep.subr.mxu0 0.0
  %3244 = vmatpush1.msra.mxu0 %v3236
  %3245 = vmatprep.subr.mxu0 0.0
  %3246 = vmatpush1.msra.mxu0 0.0
  %3247 = vmatprep.subr.mxu0 0.0
  %3248 = vmatpush1.msra.mxu0 0.0
  %3249 = vmatprep.subr.mxu0 0.0
  %3250 = vmatpush1.msra.mxu0 0.0
  %3251 = vmatprep.subr.mxu0 0.0
  %3252 = vmatpush1.msra.mxu0 0.0
  %3253 = vmatprep.subr.mxu0 0.0
  %3254 = vmatpush1.msra.mxu0 0.0
  %3255 = vmatprep.subr.mxu0 0.0
  %3256 = vmatpush1.msra.mxu0 0.0
  %3257 = vmatprep.subr.mxu0 0.0
  %3258 = vmatpush1.msra.mxu0 0.0
  %3259 = vmatprep.subr.mxu0 0.0
  %3260 = vmatpush1.msra.mxu0 0.0
  %3261 = vmatprep.subr.mxu0 0.0
  %3262 = vmatpush1.msra.mxu0 0.0
  %3263 = vmatprep.subr.mxu0 0.0
  %3264 = vmatpush1.msra.mxu0 0.0
  %3265 = vmatprep.subr.mxu0 0.0
  %3266 = vmatpush1.msra.mxu0 0.0
  %3267 = vmatprep.subr.mxu0 0.0
  %3268 = vmatpush1.msra.mxu0 0.0
  %3269 = vmatprep.subr.mxu0 0.0
  %3270 = vmatpush1.msra.mxu0 0.0
  %3271 = vmatprep.subr.mxu0 0.0
  %3272 = vmatpush1.msra.mxu0 0.0
  %3273 = vmatprep.subr.mxu0 0.0
  %3274 = vmatpush1.msra.mxu0 0.0
  %3275 = vmatprep.subr.mxu0 0.0
  %3276 = vmatpush1.msra.mxu0 0.0
  %3277 = vmatprep.subr.mxu0 0.0
  %3278 = vmatpush1.msra.mxu0 0.0
  %3279 = vmatprep.subr.mxu0 0.0
  %3280 = vmatpush1.msra.mxu0 0.0
  %3281 = vmatprep.subr.mxu0 0.0
  %3282 = vmatpush1.msra.mxu0 0.0
  %3283 = vmatprep.subr.mxu0 0.0
  %3284 = vmatpush1.msra.mxu0 0.0
  %3285 = vmatprep.subr.mxu0 0.0
  %3286 = vmatpush1.msra.mxu0 0.0
  %3287 = vmatprep.subr.mxu0 0.0
  %3288 = vmatpush1.msra.mxu0 0.0
  %3289 = vmatprep.subr.mxu0 0.0
  %3290 = vmatpush1.msra.mxu0 0.0
  %3291 = vmatprep.subr.mxu0 0.0
  %3292 = vmatpush1.msra.mxu0 0.0
  %3293 = vmatprep.subr.mxu0 0.0
  %3294 = vmatpush1.msra.mxu0 0.0
  %3295 = vmatprep.subr.mxu0 0.0
  %3296 = vmatpush1.msra.mxu0 0.0
  %3297 = vmatprep.subr.mxu0 0.0
  %3298 = vmatpush1.msra.mxu0 0.0
  %3299 = vmatprep.subr.mxu0 0.0
  %3300 = vmatpush1.msra.mxu0 0.0
  %3301 = vmatprep.mubr.f32.mxu0 0.0
  %3302 = vmatmul.mubr.f32.gmra.mrb[0].mxu0 %v1335
  %v3303 = vpop.f32.mrb[0].mxu0
  %v3304 = vadd.f32 %v830, %v3303
  %v3305 = vpop.f32.mrb[0].mxu0
  %3306 = vdwg.mxu0
  %3307 = vmatprep.subr.mxu0 0.0
  %3308 = vmatpush1.msra.mxu0 %v3233
  %3309 = vmatprep.subr.mxu0 0.0
  %3310 = vmatpush1.msra.mxu0 %v3234
  %3311 = vmatprep.subr.mxu0 0.0
  %3312 = vmatpush1.msra.mxu0 %v3235
  %3313 = vmatprep.subr.mxu0 0.0
  %3314 = vmatpush1.msra.mxu0 %v3236
  %3315 = vmatprep.subr.mxu0 0.0
  %3316 = vmatpush1.msra.mxu0 0.0
  %3317 = vmatprep.subr.mxu0 0.0
  %3318 = vmatpush1.msra.mxu0 0.0
  %3319 = vmatprep.subr.mxu0 0.0
  %3320 = vmatpush1.msra.mxu0 0.0
  %3321 = vmatprep.subr.mxu0 0.0
  %3322 = vmatpush1.msra.mxu0 0.0
  %3323 = vmatprep.subr.mxu0 0.0
  %3324 = vmatpush1.msra.mxu0 0.0
  %3325 = vmatprep.subr.mxu0 0.0
  %3326 = vmatpush1.msra.mxu0 0.0
  %3327 = vmatprep.subr.mxu0 0.0
  %3328 = vmatpush1.msra.mxu0 0.0
  %3329 = vmatprep.subr.mxu0 0.0
  %3330 = vmatpush1.msra.mxu0 0.0
  %3331 = vmatprep.subr.mxu0 0.0
  %3332 = vmatpush1.msra.mxu0 0.0
  %3333 = vmatprep.subr.mxu0 0.0
  %3334 = vmatpush1.msra.mxu0 0.0
  %3335 = vmatprep.subr.mxu0 0.0
  %3336 = vmatpush1.msra.mxu0 0.0
  %3337 = vmatprep.subr.mxu0 0.0
  %3338 = vmatpush1.msra.mxu0 0.0
  %3339 = vmatprep.subr.mxu0 0.0
  %3340 = vmatpush1.msra.mxu0 0.0
  %3341 = vmatprep.subr.mxu0 0.0
  %3342 = vmatpush1.msra.mxu0 0.0
  %3343 = vmatprep.subr.mxu0 0.0
  %3344 = vmatpush1.msra.mxu0 0.0
  %3345 = vmatprep.subr.mxu0 0.0
  %3346 = vmatpush1.msra.mxu0 0.0
  %3347 = vmatprep.subr.mxu0 0.0
  %3348 = vmatpush1.msra.mxu0 0.0
  %3349 = vmatprep.subr.mxu0 0.0
  %3350 = vmatpush1.msra.mxu0 0.0
  %3351 = vmatprep.subr.mxu0 0.0
  %3352 = vmatpush1.msra.mxu0 0.0
  %3353 = vmatprep.subr.mxu0 0.0
  %3354 = vmatpush1.msra.mxu0 0.0
  %3355 = vmatprep.subr.mxu0 0.0
  %3356 = vmatpush1.msra.mxu0 0.0
  %3357 = vmatprep.subr.mxu0 0.0
  %3358 = vmatpush1.msra.mxu0 0.0
  %3359 = vmatprep.subr.mxu0 0.0
  %3360 = vmatpush1.msra.mxu0 0.0
  %3361 = vmatprep.subr.mxu0 0.0
  %3362 = vmatpush1.msra.mxu0 0.0
  %3363 = vmatprep.subr.mxu0 0.0
  %3364 = vmatpush1.msra.mxu0 0.0
  %3365 = vmatprep.subr.mxu0 0.0
  %3366 = vmatpush1.msra.mxu0 0.0
  %3367 = vmatprep.subr.mxu0 0.0
  %3368 = vmatpush1.msra.mxu0 0.0
  %3369 = vmatprep.subr.mxu0 0.0
  %3370 = vmatpush1.msra.mxu0 0.0
  %3371 = vmatprep.mubr.f32.mxu0 0.0
  %3372 = vmatmul.mubr.f32.gmra.mrb[0].mxu0 %v833
  %v3373 = vpop.f32.mrb[0].mxu0
  %v3374 = vadd.f32 0.0, %v3373
  %v3375 = vpop.f32.mrb[0].mxu0
  %3376 = vmatprep.mubr.f32.mxu0 0.0
  %3377 = vmatmul.mubr.f32.gmra.mrb[0].mxu0 %v836
  %v3378 = vpop.f32.mrb[0].mxu0
  %v3379 = vadd.f32 0.0, %v3378
  %v3380 = vpop.f32.mrb[0].mxu0
  %3381 = vmatprep.mubr.f32.mxu0 0.0
  %3382 = vmatmul.mubr.f32.gmra.mrb[0].mxu0 %v839
  %v3383 = vpop.f32.mrb[0].mxu0
  %v3384 = vadd.f32 0.0, %v3383
  %v3385 = vpop.f32.mrb[0].mxu0
  %3386 = vmatprep.mubr.f32.mxu0 0.0
  %3387 = vmatmul.mubr.f32.gmra.mrb[0].mxu0 %v842
  %v3388 = vpop.f32.mrb[0].mxu0
  %v3389 = vadd.f32 0.0, %v3388
  %v3390 = vpop.f32.mrb[0].mxu0
  %3391 = vmatprep.mubr.f32.mxu0 0.0
  %3392 = vmatmul.mubr.f32.gmra.mrb[0].mxu0 %v845
  %v3393 = vpop.f32.mrb[0].mxu0
  %v3394 = vadd.f32 0.0, %v3393
  %v3395 = vpop.f32.mrb[0].mxu0
  %3396 = vmatprep.mubr.f32.mxu0 0.0
  %3397 = vmatmul.mubr.f32.gmra.mrb[0].mxu0 %v848
  %v3398 = vpop.f32.mrb[0].mxu0
  %v3399 = vadd.f32 0.0, %v3398
  %v3400 = vpop.f32.mrb[0].mxu0
  %3401 = vmatprep.mubr.f32.mxu0 0.0
  %3402 = vmatmul.mubr.f32.gmra.mrb[0].mxu0 %v851
  %v3403 = vpop.f32.mrb[0].mxu0
  %v3404 = vadd.f32 0.0, %v3403
  %v3405 = vpop.f32.mrb[0].mxu0
  %3406 = vmatprep.mubr.f32.mxu0 0.0
  %3407 = vmatmul.mubr.f32.gmra.mrb[0].mxu0 %v854
  %v3408 = vpop.f32.mrb[0].mxu0
  %v3409 = vadd.f32 0.0, %v3408
  %v3410 = vpop.f32.mrb[0].mxu0
  %3411 = vmatprep.mubr.f32.mxu0 0.0
  %3412 = vmatmul.mubr.f32.gmra.mrb[0].mxu0 %v857
  %v3413 = vpop.f32.mrb[0].mxu0
  %v3414 = vadd.f32 0.0, %v3413
  %v3415 = vpop.f32.mrb[0].mxu0
  %3416 = vmatprep.mubr.f32.mxu0 0.0
  %3417 = vmatmul.mubr.f32.gmra.mrb[0].mxu0 %v860
  %v3418 = vpop.f32.mrb[0].mxu0
  %v3419 = vadd.f32 0.0, %v3418
  %v3420 = vpop.f32.mrb[0].mxu0
  %3421 = vmatprep.mubr.f32.mxu0 0.0
  %3422 = vmatmul.mubr.f32.gmra.mrb[0].mxu0 %v863
  %v3423 = vpop.f32.mrb[0].mxu0
  %v3424 = vadd.f32 0.0, %v3423
  %v3425 = vpop.f32.mrb[0].mxu0
  %3426 = vmatprep.mubr.f32.mxu0 0.0
  %3427 = vmatmul.mubr.f32.gmra.mrb[0].mxu0 %v866
  %v3428 = vpop.f32.mrb[0].mxu0
  %v3429 = vadd.f32 0.0, %v3428
  %v3430 = vpop.f32.mrb[0].mxu0
  %3431 = vmatprep.mubr.f32.mxu0 0.0
  %3432 = vmatmul.mubr.f32.gmra.mrb[0].mxu0 %v869
  %v3433 = vpop.f32.mrb[0].mxu0
  %v3434 = vadd.f32 0.0, %v3433
  %v3435 = vpop.f32.mrb[0].mxu0
  %3436 = vmatprep.mubr.f32.mxu0 0.0
  %3437 = vmatmul.mubr.f32.gmra.mrb[0].mxu0 %v872
  %v3438 = vpop.f32.mrb[0].mxu0
  %v3439 = vadd.f32 0.0, %v3438
  %v3440 = vpop.f32.mrb[0].mxu0
  %3441 = vmatprep.mubr.f32.mxu0 0.0
  %3442 = vmatmul.mubr.f32.gmra.mrb[0].mxu0 %v875
  %v3443 = vpop.f32.mrb[0].mxu0
  %v3444 = vadd.f32 0.0, %v3443
  %v3445 = vpop.f32.mrb[0].mxu0
  %3446 = vmatprep.mubr.f32.mxu0 0.0
  %3447 = vmatmul.mubr.f32.gmra.mrb[0].mxu0 %v878
  %v3448 = vpop.f32.mrb[0].mxu0
  %v3449 = vadd.f32 0.0, %v3448
  %v3450 = vpop.f32.mrb[0].mxu0
  %3451 = vdwg.mxu0
  %v3453 = vsel %vm1073, %v3304, 0
  %3455 = vmatprep.subr.mxu0 0.0
  %3456 = vmatpush1.msra.mxu0 %v3453
  %3457 = vmatprep.subr.mxu0 0.0
  %3458 = vmatpush1.msra.mxu0 0.0
  %3459 = vmatprep.subr.mxu0 0.0
  %3460 = vmatpush1.msra.mxu0 0.0
  %3461 = vmatprep.subr.mxu0 0.0
  %3462 = vmatpush1.msra.mxu0 0.0
  %3463 = vmatprep.subr.mxu0 0.0
  %3464 = vmatpush1.msra.mxu0 0.0
  %3465 = vmatprep.subr.mxu0 0.0
  %3466 = vmatpush1.msra.mxu0 0.0
  %3467 = vmatprep.subr.mxu0 0.0
  %3468 = vmatpush1.msra.mxu0 0.0
  %3469 = vmatprep.subr.mxu0 0.0
  %3470 = vmatpush1.msra.mxu0 0.0
  %3471 = vmatprep.subr.mxu0 0.0
  %3472 = vmatpush1.msra.mxu0 0.0
  %3473 = vmatprep.subr.mxu0 0.0
  %3474 = vmatpush1.msra.mxu0 0.0
  %3475 = vmatprep.subr.mxu0 0.0
  %3476 = vmatpush1.msra.mxu0 0.0
  %3477 = vmatprep.subr.mxu0 0.0
  %3478 = vmatpush1.msra.mxu0 0.0
  %3479 = vmatprep.subr.mxu0 0.0
  %3480 = vmatpush1.msra.mxu0 0.0
  %3481 = vmatprep.subr.mxu0 0.0
  %3482 = vmatpush1.msra.mxu0 0.0
  %3483 = vmatprep.subr.mxu0 0.0
  %3484 = vmatpush1.msra.mxu0 0.0
  %3485 = vmatprep.subr.mxu0 0.0
  %3486 = vmatpush1.msra.mxu0 0.0
  %3487 = vmatprep.subr.mxu0 0.0
  %3488 = vmatpush1.msra.mxu0 0.0
  %3489 = vmatprep.subr.mxu0 0.0
  %3490 = vmatpush1.msra.mxu0 0.0
  %3491 = vmatprep.subr.mxu0 0.0
  %3492 = vmatpush1.msra.mxu0 0.0
  %3493 = vmatprep.subr.mxu0 0.0
  %3494 = vmatpush1.msra.mxu0 0.0
  %3495 = vmatprep.subr.mxu0 0.0
  %3496 = vmatpush1.msra.mxu0 0.0
  %3497 = vmatprep.subr.mxu0 0.0
  %3498 = vmatpush1.msra.mxu0 0.0
  %3499 = vmatprep.subr.mxu0 0.0
  %3500 = vmatpush1.msra.mxu0 0.0
  %3501 = vmatprep.subr.mxu0 0.0
  %3502 = vmatpush1.msra.mxu0 0.0
  %3503 = vmatprep.subr.mxu0 0.0
  %3504 = vmatpush1.msra.mxu0 0.0
  %3505 = vmatprep.subr.mxu0 0.0
  %3506 = vmatpush1.msra.mxu0 0.0
  %3507 = vmatprep.subr.mxu0 0.0
  %3508 = vmatpush1.msra.mxu0 0.0
  %3509 = vmatprep.subr.mxu0 0.0
  %3510 = vmatpush1.msra.mxu0 0.0
  %3511 = vmatprep.subr.mxu0 0.0
  %3512 = vmatpush1.msra.mxu0 0.0
  %3513 = vmatprep.subr.mxu0 0.0
  %3514 = vmatpush1.msra.mxu0 0.0
  %3515 = vmatprep.subr.mxu0 0.0
  %3516 = vmatpush1.msra.mxu0 0.0
  %3517 = vmatprep.subr.mxu0 0.0
  %3518 = vmatpush1.msra.mxu0 0.0
  %3519 = vmatprep.mubr.f32.mxu0 0.0
  %3520 = vmatmul.mubr.f32.gmra.mrb[0].mxu0 %v1026
  %v3521 = vpop.f32.mrb[0].mxu0
  %v3522 = vadd.f32 %v3374, %v3521
  %v3523 = vpop.f32.mrb[0].mxu0
  %3524 = vmatprep.mubr.f32.mxu0 0.0
  %3525 = vmatmul.mubr.f32.gmra.mrb[0].mxu0 %v1029
  %v3526 = vpop.f32.mrb[0].mxu0
  %v3527 = vadd.f32 %v3379, %v3526
  %v3528 = vpop.f32.mrb[0].mxu0
  %3529 = vmatprep.mubr.f32.mxu0 0.0
  %3530 = vmatmul.mubr.f32.gmra.mrb[0].mxu0 %v1032
  %v3531 = vpop.f32.mrb[0].mxu0
  %v3532 = vadd.f32 %v3384, %v3531
  %v3533 = vpop.f32.mrb[0].mxu0
  %3534 = vmatprep.mubr.f32.mxu0 0.0
  %3535 = vmatmul.mubr.f32.gmra.mrb[0].mxu0 %v1035
  %v3536 = vpop.f32.mrb[0].mxu0
  %v3537 = vadd.f32 %v3389, %v3536
  %v3538 = vpop.f32.mrb[0].mxu0
  %3539 = vmatprep.mubr.f32.mxu0 0.0
  %3540 = vmatmul.mubr.f32.gmra.mrb[0].mxu0 %v1038
  %v3541 = vpop.f32.mrb[0].mxu0
  %v3542 = vadd.f32 %v3394, %v3541
  %v3543 = vpop.f32.mrb[0].mxu0
  %3544 = vmatprep.mubr.f32.mxu0 0.0
  %3545 = vmatmul.mubr.f32.gmra.mrb[0].mxu0 %v1041
  %v3546 = vpop.f32.mrb[0].mxu0
  %v3547 = vadd.f32 %v3399, %v3546
  %v3548 = vpop.f32.mrb[0].mxu0
  %3549 = vmatprep.mubr.f32.mxu0 0.0
  %3550 = vmatmul.mubr.f32.gmra.mrb[0].mxu0 %v1044
  %v3551 = vpop.f32.mrb[0].mxu0
  %v3552 = vadd.f32 %v3404, %v3551
  %v3553 = vpop.f32.mrb[0].mxu0
  %3554 = vmatprep.mubr.f32.mxu0 0.0
  %3555 = vmatmul.mubr.f32.gmra.mrb[0].mxu0 %v1047
  %v3556 = vpop.f32.mrb[0].mxu0
  %v3557 = vadd.f32 %v3409, %v3556
  %v3558 = vpop.f32.mrb[0].mxu0
  %3559 = vmatprep.mubr.f32.mxu0 0.0
  %3560 = vmatmul.mubr.f32.gmra.mrb[0].mxu0 %v1050
  %v3561 = vpop.f32.mrb[0].mxu0
  %v3562 = vadd.f32 %v3414, %v3561
  %v3563 = vpop.f32.mrb[0].mxu0
  %3564 = vmatprep.mubr.f32.mxu0 0.0
  %3565 = vmatmul.mubr.f32.gmra.mrb[0].mxu0 %v1053
  %v3566 = vpop.f32.mrb[0].mxu0
  %v3567 = vadd.f32 %v3419, %v3566
  %v3568 = vpop.f32.mrb[0].mxu0
  %3569 = vmatprep.mubr.f32.mxu0 0.0
  %3570 = vmatmul.mubr.f32.gmra.mrb[0].mxu0 %v1056
  %v3571 = vpop.f32.mrb[0].mxu0
  %v3572 = vadd.f32 %v3424, %v3571
  %v3573 = vpop.f32.mrb[0].mxu0
  %3574 = vmatprep.mubr.f32.mxu0 0.0
  %3575 = vmatmul.mubr.f32.gmra.mrb[0].mxu0 %v1059
  %v3576 = vpop.f32.mrb[0].mxu0
  %v3577 = vadd.f32 %v3429, %v3576
  %v3578 = vpop.f32.mrb[0].mxu0
  %3579 = vmatprep.mubr.f32.mxu0 0.0
  %3580 = vmatmul.mubr.f32.gmra.mrb[0].mxu0 %v1062
  %v3581 = vpop.f32.mrb[0].mxu0
  %v3582 = vadd.f32 %v3434, %v3581
  %v3583 = vpop.f32.mrb[0].mxu0
  %3584 = vmatprep.mubr.f32.mxu0 0.0
  %3585 = vmatmul.mubr.f32.gmra.mrb[0].mxu0 %v1065
  %v3586 = vpop.f32.mrb[0].mxu0
  %v3587 = vadd.f32 %v3439, %v3586
  %v3588 = vpop.f32.mrb[0].mxu0
  %3589 = vmatprep.mubr.f32.mxu0 0.0
  %3590 = vmatmul.mubr.f32.gmra.mrb[0].mxu0 %v1068
  %v3591 = vpop.f32.mrb[0].mxu0
  %v3592 = vadd.f32 %v3444, %v3591
  %v3593 = vpop.f32.mrb[0].mxu0
  %3594 = vmatprep.mubr.f32.mxu0 0.0
  %3595 = vmatmul.mubr.f32.gmra.mrb[0].mxu0 %v1071
  %v3596 = vpop.f32.mrb[0].mxu0
  %v3597 = vadd.f32 %v3449, %v3596
  %v3598 = vpop.f32.mrb[0].mxu0
  %3599 = vdwg.mxu0
  %v3600 = vadd.f32 %v3522, %v813
  %v3601 = vadd.f32 %v3527, %v814
  %v3602 = vadd.f32 %v3532, %v815
  %v3603 = vadd.f32 %v3537, %v816
  %v3604 = vadd.f32 %v3542, %v817
  %v3605 = vadd.f32 %v3547, %v818
  %v3606 = vadd.f32 %v3552, %v819
  %v3607 = vadd.f32 %v3557, %v820
  %v3608 = vadd.f32 %v3562, %v821
  %v3609 = vadd.f32 %v3567, %v822
  %v3610 = vadd.f32 %v3572, %v823
  %v3611 = vadd.f32 %v3577, %v824
  %v3612 = vadd.f32 %v3582, %v825
  %v3613 = vadd.f32 %v3587, %v826
  %v3614 = vadd.f32 %v3592, %v827
  %v3615 = vadd.f32 %v3597, %v828
  %v3616 = vxor.u32 %v3600, 2147483648
  %v3617 = vxor.u32 %v3601, 2147483648
  %v3618 = vxor.u32 %v3602, 2147483648
  %v3619 = vxor.u32 %v3603, 2147483648
  %v3620 = vmul.f32 %v3616, 1.442695
  %v3621 = vpow.pop %v3620
  %v3622 = vmul.f32 %v3617, 1.442695
  %v3623 = vpow.pop %v3622
  %v3624 = vmul.f32 %v3618, 1.442695
  %v3625 = vpow.pop %v3624
  %v3626 = vmul.f32 %v3619, 1.442695
  %v3627 = vpow.pop %v3626
  %v3628 = vadd.f32 %v3621, 1.0
  %v3629 = vadd.f32 %v3623, 1.0
  %v3630 = vadd.f32 %v3625, 1.0
  %v3631 = vadd.f32 %v3627, 1.0
  %v3632 = vrcp.pop %v3628
  %v3633 = vmul.f32 1.0, %v3632
  %v3634 = vrcp.pop %v3629
  %v3635 = vmul.f32 1.0, %v3634
  %v3636 = vrcp.pop %v3630
  %v3637 = vmul.f32 1.0, %v3636
  %v3638 = vrcp.pop %v3631
  %v3639 = vmul.f32 1.0, %v3638
  %v3640 = vxor.u32 %v3604, 2147483648
  %v3641 = vxor.u32 %v3605, 2147483648
  %v3642 = vxor.u32 %v3606, 2147483648
  %v3643 = vxor.u32 %v3607, 2147483648
  %v3644 = vmul.f32 %v3640, 1.442695
  %v3645 = vpow.pop %v3644
  %v3646 = vmul.f32 %v3641, 1.442695
  %v3647 = vpow.pop %v3646
  %v3648 = vmul.f32 %v3642, 1.442695
  %v3649 = vpow.pop %v3648
  %v3650 = vmul.f32 %v3643, 1.442695
  %v3651 = vpow.pop %v3650
  %v3652 = vadd.f32 %v3645, 1.0
  %v3653 = vadd.f32 %v3647, 1.0
  %v3654 = vadd.f32 %v3649, 1.0
  %v3655 = vadd.f32 %v3651, 1.0
  %v3656 = vrcp.pop %v3652
  %v3657 = vmul.f32 1.0, %v3656
  %v3658 = vrcp.pop %v3653
  %v3659 = vmul.f32 1.0, %v3658
  %v3660 = vrcp.pop %v3654
  %v3661 = vmul.f32 1.0, %v3660
  %v3662 = vrcp.pop %v3655
  %v3663 = vmul.f32 1.0, %v3662
  %v3664 = vtanh.pop %v3608
  %v3665 = vtanh.pop %v3609
  %v3666 = vtanh.pop %v3610
  %v3667 = vtanh.pop %v3611
  %v3668 = vxor.u32 %v3612, 2147483648
  %v3669 = vxor.u32 %v3613, 2147483648
  %v3670 = vxor.u32 %v3614, 2147483648
  %v3671 = vxor.u32 %v3615, 2147483648
  %v3672 = vmul.f32 %v3668, 1.442695
  %v3673 = vpow.pop %v3672
  %v3674 = vmul.f32 %v3669, 1.442695
  %v3675 = vpow.pop %v3674
  %v3676 = vmul.f32 %v3670, 1.442695
  %v3677 = vpow.pop %v3676
  %v3678 = vmul.f32 %v3671, 1.442695
  %v3679 = vpow.pop %v3678
  %v3680 = vadd.f32 %v3673, 1.0
  %v3681 = vadd.f32 %v3675, 1.0
  %v3682 = vadd.f32 %v3677, 1.0
  %v3683 = vadd.f32 %v3679, 1.0
  %v3684 = vrcp.pop %v3680
  %v3685 = vmul.f32 1.0, %v3684
  %v3686 = vrcp.pop %v3681
  %v3687 = vmul.f32 1.0, %v3686
  %v3688 = vrcp.pop %v3682
  %v3689 = vmul.f32 1.0, %v3688
  %v3690 = vrcp.pop %v3683
  %v3691 = vmul.f32 1.0, %v3690
  %v3692 = vmul.f32 %v3657, %v3225
  %v3693 = vmul.f32 %v3659, %v3226
  %v3694 = vmul.f32 %v3661, %v3227
  %v3695 = vmul.f32 %v3663, %v3228
  %v3696 = vmul.f32 %v3633, %v3664
  %v3697 = vmul.f32 %v3635, %v3665
  %v3698 = vmul.f32 %v3637, %v3666
  %v3699 = vmul.f32 %v3639, %v3667
  %v3700 = vadd.f32 %v3692, %v3696
  %v3701 = vadd.f32 %v3693, %v3697
  %v3702 = vadd.f32 %v3694, %v3698
  %v3703 = vadd.f32 %v3695, %v3699
  %v3704 = vtanh.pop %v3700
  %v3705 = vtanh.pop %v3701
  %v3706 = vtanh.pop %v3702
  %v3707 = vtanh.pop %v3703
  %v3708 = vmul.f32 %v3685, %v3704
  %v3709 = vmul.f32 %v3687, %v3705
  %v3710 = vmul.f32 %v3689, %v3706
  %v3711 = vmul.f32 %v3691, %v3707
  %3712 = vmatprep.subr.mxu0 0.0
  %3713 = vmatpush1.msra.mxu0 %v3708
  %3714 = vmatprep.subr.mxu0 0.0
  %3715 = vmatpush1.msra.mxu0 %v3709
  %3716 = vmatprep.subr.mxu0 0.0
  %3717 = vmatpush1.msra.mxu0 %v3710
  %3718 = vmatprep.subr.mxu0 0.0
  %3719 = vmatpush1.msra.mxu0 %v3711
  %3720 = vmatprep.subr.mxu0 0.0
  %3721 = vmatpush1.msra.mxu0 0.0
  %3722 = vmatprep.subr.mxu0 0.0
  %3723 = vmatpush1.msra.mxu0 0.0
  %3724 = vmatprep.subr.mxu0 0.0
  %3725 = vmatpush1.msra.mxu0 0.0
  %3726 = vmatprep.subr.mxu0 0.0
  %3727 = vmatpush1.msra.mxu0 0.0
  %3728 = vmatprep.subr.mxu0 0.0
  %3729 = vmatpush1.msra.mxu0 0.0
  %3730 = vmatprep.subr.mxu0 0.0
  %3731 = vmatpush1.msra.mxu0 0.0
  %3732 = vmatprep.subr.mxu0 0.0
  %3733 = vmatpush1.msra.mxu0 0.0
  %3734 = vmatprep.subr.mxu0 0.0
  %3735 = vmatpush1.msra.mxu0 0.0
  %3736 = vmatprep.subr.mxu0 0.0
  %3737 = vmatpush1.msra.mxu0 0.0
  %3738 = vmatprep.subr.mxu0 0.0
  %3739 = vmatpush1.msra.mxu0 0.0
  %3740 = vmatprep.subr.mxu0 0.0
  %3741 = vmatpush1.msra.mxu0 0.0
  %3742 = vmatprep.subr.mxu0 0.0
  %3743 = vmatpush1.msra.mxu0 0.0
  %3744 = vmatprep.subr.mxu0 0.0
  %3745 = vmatpush1.msra.mxu0 0.0
  %3746 = vmatprep.subr.mxu0 0.0
  %3747 = vmatpush1.msra.mxu0 0.0
  %3748 = vmatprep.subr.mxu0 0.0
  %3749 = vmatpush1.msra.mxu0 0.0
  %3750 = vmatprep.subr.mxu0 0.0
  %3751 = vmatpush1.msra.mxu0 0.0
  %3752 = vmatprep.subr.mxu0 0.0
  %3753 = vmatpush1.msra.mxu0 0.0
  %3754 = vmatprep.subr.mxu0 0.0
  %3755 = vmatpush1.msra.mxu0 0.0
  %3756 = vmatprep.subr.mxu0 0.0
  %3757 = vmatpush1.msra.mxu0 0.0
  %3758 = vmatprep.subr.mxu0 0.0
  %3759 = vmatpush1.msra.mxu0 0.0
  %3760 = vmatprep.subr.mxu0 0.0
  %3761 = vmatpush1.msra.mxu0 0.0
  %3762 = vmatprep.subr.mxu0 0.0
  %3763 = vmatpush1.msra.mxu0 0.0
  %3764 = vmatprep.subr.mxu0 0.0
  %3765 = vmatpush1.msra.mxu0 0.0
  %3766 = vmatprep.subr.mxu0 0.0
  %3767 = vmatpush1.msra.mxu0 0.0
  %3768 = vmatprep.subr.mxu0 0.0
  %3769 = vmatpush1.msra.mxu0 0.0
  %3770 = vmatprep.subr.mxu0 0.0
  %3771 = vmatpush1.msra.mxu0 0.0
  %3772 = vmatprep.subr.mxu0 0.0
  %3773 = vmatpush1.msra.mxu0 0.0
  %3774 = vmatprep.subr.mxu0 0.0
  %3775 = vmatpush1.msra.mxu0 0.0
  %3776 = vmatprep.mubr.f32.mxu0 0.0
  %3777 = vmatmul.mubr.f32.gmra.mrb[0].mxu0 %v1335
  %v3778 = vpop.f32.mrb[0].mxu0
  %v3779 = vadd.f32 %v830, %v3778
  %v3780 = vpop.f32.mrb[0].mxu0
  %3781 = vdwg.mxu0
  %3782 = vmatprep.subr.mxu0 0.0
  %3783 = vmatpush1.msra.mxu0 %v3708
  %3784 = vmatprep.subr.mxu0 0.0
  %3785 = vmatpush1.msra.mxu0 %v3709
  %3786 = vmatprep.subr.mxu0 0.0
  %3787 = vmatpush1.msra.mxu0 %v3710
  %3788 = vmatprep.subr.mxu0 0.0
  %3789 = vmatpush1.msra.mxu0 %v3711
  %3790 = vmatprep.subr.mxu0 0.0
  %3791 = vmatpush1.msra.mxu0 0.0
  %3792 = vmatprep.subr.mxu0 0.0
  %3793 = vmatpush1.msra.mxu0 0.0
  %3794 = vmatprep.subr.mxu0 0.0
  %3795 = vmatpush1.msra.mxu0 0.0
  %3796 = vmatprep.subr.mxu0 0.0
  %3797 = vmatpush1.msra.mxu0 0.0
  %3798 = vmatprep.subr.mxu0 0.0
  %3799 = vmatpush1.msra.mxu0 0.0
  %3800 = vmatprep.subr.mxu0 0.0
  %3801 = vmatpush1.msra.mxu0 0.0
  %3802 = vmatprep.subr.mxu0 0.0
  %3803 = vmatpush1.msra.mxu0 0.0
  %3804 = vmatprep.subr.mxu0 0.0
  %3805 = vmatpush1.msra.mxu0 0.0
  %3806 = vmatprep.subr.mxu0 0.0
  %3807 = vmatpush1.msra.mxu0 0.0
  %3808 = vmatprep.subr.mxu0 0.0
  %3809 = vmatpush1.msra.mxu0 0.0
  %3810 = vmatprep.subr.mxu0 0.0
  %3811 = vmatpush1.msra.mxu0 0.0
  %3812 = vmatprep.subr.mxu0 0.0
  %3813 = vmatpush1.msra.mxu0 0.0
  %3814 = vmatprep.subr.mxu0 0.0
  %3815 = vmatpush1.msra.mxu0 0.0
  %3816 = vmatprep.subr.mxu0 0.0
  %3817 = vmatpush1.msra.mxu0 0.0
  %3818 = vmatprep.subr.mxu0 0.0
  %3819 = vmatpush1.msra.mxu0 0.0
  %3820 = vmatprep.subr.mxu0 0.0
  %3821 = vmatpush1.msra.mxu0 0.0
  %3822 = vmatprep.subr.mxu0 0.0
  %3823 = vmatpush1.msra.mxu0 0.0
  %3824 = vmatprep.subr.mxu0 0.0
  %3825 = vmatpush1.msra.mxu0 0.0
  %3826 = vmatprep.subr.mxu0 0.0
  %3827 = vmatpush1.msra.mxu0 0.0
  %3828 = vmatprep.subr.mxu0 0.0
  %3829 = vmatpush1.msra.mxu0 0.0
  %3830 = vmatprep.subr.mxu0 0.0
  %3831 = vmatpush1.msra.mxu0 0.0
  %3832 = vmatprep.subr.mxu0 0.0
  %3833 = vmatpush1.msra.mxu0 0.0
  %3834 = vmatprep.subr.mxu0 0.0
  %3835 = vmatpush1.msra.mxu0 0.0
  %3836 = vmatprep.subr.mxu0 0.0
  %3837 = vmatpush1.msra.mxu0 0.0
  %3838 = vmatprep.subr.mxu0 0.0
  %3839 = vmatpush1.msra.mxu0 0.0
  %3840 = vmatprep.subr.mxu0 0.0
  %3841 = vmatpush1.msra.mxu0 0.0
  %3842 = vmatprep.subr.mxu0 0.0
  %3843 = vmatpush1.msra.mxu0 0.0
  %3844 = vmatprep.subr.mxu0 0.0
  %3845 = vmatpush1.msra.mxu0 0.0
  %3846 = vmatprep.mubr.f32.mxu0 0.0
  %3847 = vmatmul.mubr.f32.gmra.mrb[0].mxu0 %v833
  %v3848 = vpop.f32.mrb[0].mxu0
  %v3849 = vadd.f32 0.0, %v3848
  %v3850 = vpop.f32.mrb[0].mxu0
  %3851 = vmatprep.mubr.f32.mxu0 0.0
  %3852 = vmatmul.mubr.f32.gmra.mrb[0].mxu0 %v836
  %v3853 = vpop.f32.mrb[0].mxu0
  %v3854 = vadd.f32 0.0, %v3853
  %v3855 = vpop.f32.mrb[0].mxu0
  %3856 = vmatprep.mubr.f32.mxu0 0.0
  %3857 = vmatmul.mubr.f32.gmra.mrb[0].mxu0 %v839
  %v3858 = vpop.f32.mrb[0].mxu0
  %v3859 = vadd.f32 0.0, %v3858
  %v3860 = vpop.f32.mrb[0].mxu0
  %3861 = vmatprep.mubr.f32.mxu0 0.0
  %3862 = vmatmul.mubr.f32.gmra.mrb[0].mxu0 %v842
  %v3863 = vpop.f32.mrb[0].mxu0
  %v3864 = vadd.f32 0.0, %v3863
  %v3865 = vpop.f32.mrb[0].mxu0
  %3866 = vmatprep.mubr.f32.mxu0 0.0
  %3867 = vmatmul.mubr.f32.gmra.mrb[0].mxu0 %v845
  %v3868 = vpop.f32.mrb[0].mxu0
  %v3869 = vadd.f32 0.0, %v3868
  %v3870 = vpop.f32.mrb[0].mxu0
  %3871 = vmatprep.mubr.f32.mxu0 0.0
  %3872 = vmatmul.mubr.f32.gmra.mrb[0].mxu0 %v848
  %v3873 = vpop.f32.mrb[0].mxu0
  %v3874 = vadd.f32 0.0, %v3873
  %v3875 = vpop.f32.mrb[0].mxu0
  %3876 = vmatprep.mubr.f32.mxu0 0.0
  %3877 = vmatmul.mubr.f32.gmra.mrb[0].mxu0 %v851
  %v3878 = vpop.f32.mrb[0].mxu0
  %v3879 = vadd.f32 0.0, %v3878
  %v3880 = vpop.f32.mrb[0].mxu0
  %3881 = vmatprep.mubr.f32.mxu0 0.0
  %3882 = vmatmul.mubr.f32.gmra.mrb[0].mxu0 %v854
  %v3883 = vpop.f32.mrb[0].mxu0
  %v3884 = vadd.f32 0.0, %v3883
  %v3885 = vpop.f32.mrb[0].mxu0
  %3886 = vmatprep.mubr.f32.mxu0 0.0
  %3887 = vmatmul.mubr.f32.gmra.mrb[0].mxu0 %v857
  %v3888 = vpop.f32.mrb[0].mxu0
  %v3889 = vadd.f32 0.0, %v3888
  %v3890 = vpop.f32.mrb[0].mxu0
  %3891 = vmatprep.mubr.f32.mxu0 0.0
  %3892 = vmatmul.mubr.f32.gmra.mrb[0].mxu0 %v860
  %v3893 = vpop.f32.mrb[0].mxu0
  %v3894 = vadd.f32 0.0, %v3893
  %v3895 = vpop.f32.mrb[0].mxu0
  %3896 = vmatprep.mubr.f32.mxu0 0.0
  %3897 = vmatmul.mubr.f32.gmra.mrb[0].mxu0 %v863
  %v3898 = vpop.f32.mrb[0].mxu0
  %v3899 = vadd.f32 0.0, %v3898
  %v3900 = vpop.f32.mrb[0].mxu0
  %3901 = vmatprep.mubr.f32.mxu0 0.0
  %3902 = vmatmul.mubr.f32.gmra.mrb[0].mxu0 %v866
  %v3903 = vpop.f32.mrb[0].mxu0
  %v3904 = vadd.f32 0.0, %v3903
  %v3905 = vpop.f32.mrb[0].mxu0
  %3906 = vmatprep.mubr.f32.mxu0 0.0
  %3907 = vmatmul.mubr.f32.gmra.mrb[0].mxu0 %v869
  %v3908 = vpop.f32.mrb[0].mxu0
  %v3909 = vadd.f32 0.0, %v3908
  %v3910 = vpop.f32.mrb[0].mxu0
  %3911 = vmatprep.mubr.f32.mxu0 0.0
  %3912 = vmatmul.mubr.f32.gmra.mrb[0].mxu0 %v872
  %v3913 = vpop.f32.mrb[0].mxu0
  %v3914 = vadd.f32 0.0, %v3913
  %v3915 = vpop.f32.mrb[0].mxu0
  %3916 = vmatprep.mubr.f32.mxu0 0.0
  %3917 = vmatmul.mubr.f32.gmra.mrb[0].mxu0 %v875
  %v3918 = vpop.f32.mrb[0].mxu0
  %v3919 = vadd.f32 0.0, %v3918
  %v3920 = vpop.f32.mrb[0].mxu0
  %3921 = vmatprep.mubr.f32.mxu0 0.0
  %3922 = vmatmul.mubr.f32.gmra.mrb[0].mxu0 %v878
  %v3923 = vpop.f32.mrb[0].mxu0
  %v3924 = vadd.f32 0.0, %v3923
  %v3925 = vpop.f32.mrb[0].mxu0
  %3926 = vdwg.mxu0
  %v3928 = vsel %vm1073, %v3779, 0
  %3930 = vmatprep.subr.mxu0 0.0
  %3931 = vmatpush1.msra.mxu0 %v3928
  %3932 = vmatprep.subr.mxu0 0.0
  %3933 = vmatpush1.msra.mxu0 0.0
  %3934 = vmatprep.subr.mxu0 0.0
  %3935 = vmatpush1.msra.mxu0 0.0
  %3936 = vmatprep.subr.mxu0 0.0
  %3937 = vmatpush1.msra.mxu0 0.0
  %3938 = vmatprep.subr.mxu0 0.0
  %3939 = vmatpush1.msra.mxu0 0.0
  %3940 = vmatprep.subr.mxu0 0.0
  %3941 = vmatpush1.msra.mxu0 0.0
  %3942 = vmatprep.subr.mxu0 0.0
  %3943 = vmatpush1.msra.mxu0 0.0
  %3944 = vmatprep.subr.mxu0 0.0
  %3945 = vmatpush1.msra.mxu0 0.0
  %3946 = vmatprep.subr.mxu0 0.0
  %3947 = vmatpush1.msra.mxu0 0.0
  %3948 = vmatprep.subr.mxu0 0.0
  %3949 = vmatpush1.msra.mxu0 0.0
  %3950 = vmatprep.subr.mxu0 0.0
  %3951 = vmatpush1.msra.mxu0 0.0
  %3952 = vmatprep.subr.mxu0 0.0
  %3953 = vmatpush1.msra.mxu0 0.0
  %3954 = vmatprep.subr.mxu0 0.0
  %3955 = vmatpush1.msra.mxu0 0.0
  %3956 = vmatprep.subr.mxu0 0.0
  %3957 = vmatpush1.msra.mxu0 0.0
  %3958 = vmatprep.subr.mxu0 0.0
  %3959 = vmatpush1.msra.mxu0 0.0
  %3960 = vmatprep.subr.mxu0 0.0
  %3961 = vmatpush1.msra.mxu0 0.0
  %3962 = vmatprep.subr.mxu0 0.0
  %3963 = vmatpush1.msra.mxu0 0.0
  %3964 = vmatprep.subr.mxu0 0.0
  %3965 = vmatpush1.msra.mxu0 0.0
  %3966 = vmatprep.subr.mxu0 0.0
  %3967 = vmatpush1.msra.mxu0 0.0
  %3968 = vmatprep.subr.mxu0 0.0
  %3969 = vmatpush1.msra.mxu0 0.0
  %3970 = vmatprep.subr.mxu0 0.0
  %3971 = vmatpush1.msra.mxu0 0.0
  %3972 = vmatprep.subr.mxu0 0.0
  %3973 = vmatpush1.msra.mxu0 0.0
  %3974 = vmatprep.subr.mxu0 0.0
  %3975 = vmatpush1.msra.mxu0 0.0
  %3976 = vmatprep.subr.mxu0 0.0
  %3977 = vmatpush1.msra.mxu0 0.0
  %3978 = vmatprep.subr.mxu0 0.0
  %3979 = vmatpush1.msra.mxu0 0.0
  %3980 = vmatprep.subr.mxu0 0.0
  %3981 = vmatpush1.msra.mxu0 0.0
  %3982 = vmatprep.subr.mxu0 0.0
  %3983 = vmatpush1.msra.mxu0 0.0
  %3984 = vmatprep.subr.mxu0 0.0
  %3985 = vmatpush1.msra.mxu0 0.0
  %3986 = vmatprep.subr.mxu0 0.0
  %3987 = vmatpush1.msra.mxu0 0.0
  %3988 = vmatprep.subr.mxu0 0.0
  %3989 = vmatpush1.msra.mxu0 0.0
  %3990 = vmatprep.subr.mxu0 0.0
  %3991 = vmatpush1.msra.mxu0 0.0
  %3992 = vmatprep.subr.mxu0 0.0
  %3993 = vmatpush1.msra.mxu0 0.0
  %3994 = vmatprep.mubr.f32.mxu0 0.0
  %3995 = vmatmul.mubr.f32.gmra.mrb[0].mxu0 %v1026
  %v3996 = vpop.f32.mrb[0].mxu0
  %v3997 = vadd.f32 %v3849, %v3996
  %v3998 = vpop.f32.mrb[0].mxu0
  %3999 = vmatprep.mubr.f32.mxu0 0.0
  %4000 = vmatmul.mubr.f32.gmra.mrb[0].mxu0 %v1029
  %v4001 = vpop.f32.mrb[0].mxu0
  %v4002 = vadd.f32 %v3854, %v4001
  %v4003 = vpop.f32.mrb[0].mxu0
  %4004 = vmatprep.mubr.f32.mxu0 0.0
  %4005 = vmatmul.mubr.f32.gmra.mrb[0].mxu0 %v1032
  %v4006 = vpop.f32.mrb[0].mxu0
  %v4007 = vadd.f32 %v3859, %v4006
  %v4008 = vpop.f32.mrb[0].mxu0
  %4009 = vmatprep.mubr.f32.mxu0 0.0
  %4010 = vmatmul.mubr.f32.gmra.mrb[0].mxu0 %v1035
  %v4011 = vpop.f32.mrb[0].mxu0
  %v4012 = vadd.f32 %v3864, %v4011
  %v4013 = vpop.f32.mrb[0].mxu0
  %4014 = vmatprep.mubr.f32.mxu0 0.0
  %4015 = vmatmul.mubr.f32.gmra.mrb[0].mxu0 %v1038
  %v4016 = vpop.f32.mrb[0].mxu0
  %v4017 = vadd.f32 %v3869, %v4016
  %v4018 = vpop.f32.mrb[0].mxu0
  %4019 = vmatprep.mubr.f32.mxu0 0.0
  %4020 = vmatmul.mubr.f32.gmra.mrb[0].mxu0 %v1041
  %v4021 = vpop.f32.mrb[0].mxu0
  %v4022 = vadd.f32 %v3874, %v4021
  %v4023 = vpop.f32.mrb[0].mxu0
  %4024 = vmatprep.mubr.f32.mxu0 0.0
  %4025 = vmatmul.mubr.f32.gmra.mrb[0].mxu0 %v1044
  %v4026 = vpop.f32.mrb[0].mxu0
  %v4027 = vadd.f32 %v3879, %v4026
  %v4028 = vpop.f32.mrb[0].mxu0
  %4029 = vmatprep.mubr.f32.mxu0 0.0
  %4030 = vmatmul.mubr.f32.gmra.mrb[0].mxu0 %v1047
  %v4031 = vpop.f32.mrb[0].mxu0
  %v4032 = vadd.f32 %v3884, %v4031
  %v4033 = vpop.f32.mrb[0].mxu0
  %4034 = vmatprep.mubr.f32.mxu0 0.0
  %4035 = vmatmul.mubr.f32.gmra.mrb[0].mxu0 %v1050
  %v4036 = vpop.f32.mrb[0].mxu0
  %v4037 = vadd.f32 %v3889, %v4036
  %v4038 = vpop.f32.mrb[0].mxu0
  %4039 = vmatprep.mubr.f32.mxu0 0.0
  %4040 = vmatmul.mubr.f32.gmra.mrb[0].mxu0 %v1053
  %v4041 = vpop.f32.mrb[0].mxu0
  %v4042 = vadd.f32 %v3894, %v4041
  %v4043 = vpop.f32.mrb[0].mxu0
  %4044 = vmatprep.mubr.f32.mxu0 0.0
  %4045 = vmatmul.mubr.f32.gmra.mrb[0].mxu0 %v1056
  %v4046 = vpop.f32.mrb[0].mxu0
  %v4047 = vadd.f32 %v3899, %v4046
  %v4048 = vpop.f32.mrb[0].mxu0
  %4049 = vmatprep.mubr.f32.mxu0 0.0
  %4050 = vmatmul.mubr.f32.gmra.mrb[0].mxu0 %v1059
  %v4051 = vpop.f32.mrb[0].mxu0
  %v4052 = vadd.f32 %v3904, %v4051
  %v4053 = vpop.f32.mrb[0].mxu0
  %4054 = vmatprep.mubr.f32.mxu0 0.0
  %4055 = vmatmul.mubr.f32.gmra.mrb[0].mxu0 %v1062
  %v4056 = vpop.f32.mrb[0].mxu0
  %v4057 = vadd.f32 %v3909, %v4056
  %v4058 = vpop.f32.mrb[0].mxu0
  %4059 = vmatprep.mubr.f32.mxu0 0.0
  %4060 = vmatmul.mubr.f32.gmra.mrb[0].mxu0 %v1065
  %v4061 = vpop.f32.mrb[0].mxu0
  %v4062 = vadd.f32 %v3914, %v4061
  %v4063 = vpop.f32.mrb[0].mxu0
  %4064 = vmatprep.mubr.f32.mxu0 0.0
  %4065 = vmatmul.mubr.f32.gmra.mrb[0].mxu0 %v1068
  %v4066 = vpop.f32.mrb[0].mxu0
  %v4067 = vadd.f32 %v3919, %v4066
  %v4068 = vpop.f32.mrb[0].mxu0
  %4069 = vmatprep.mubr.f32.mxu0 0.0
  %4070 = vmatmul.mubr.f32.gmra.mrb[0].mxu0 %v1071
  %v4071 = vpop.f32.mrb[0].mxu0
  %v4072 = vadd.f32 %v3924, %v4071
  %v4073 = vpop.f32.mrb[0].mxu0
  %4074 = vdwg.mxu0
  %v4075 = vadd.f32 %v3997, %v813
  %v4076 = vadd.f32 %v4002, %v814
  %v4077 = vadd.f32 %v4007, %v815
  %v4078 = vadd.f32 %v4012, %v816
  %v4079 = vadd.f32 %v4017, %v817
  %v4080 = vadd.f32 %v4022, %v818
  %v4081 = vadd.f32 %v4027, %v819
  %v4082 = vadd.f32 %v4032, %v820
  %v4083 = vadd.f32 %v4037, %v821
  %v4084 = vadd.f32 %v4042, %v822
  %v4085 = vadd.f32 %v4047, %v823
  %v4086 = vadd.f32 %v4052, %v824
  %v4087 = vadd.f32 %v4057, %v825
  %v4088 = vadd.f32 %v4062, %v826
  %v4089 = vadd.f32 %v4067, %v827
  %v4090 = vadd.f32 %v4072, %v828
  %v4091 = vxor.u32 %v4075, 2147483648
  %v4092 = vxor.u32 %v4076, 2147483648
  %v4093 = vxor.u32 %v4077, 2147483648
  %v4094 = vxor.u32 %v4078, 2147483648
  %v4095 = vmul.f32 %v4091, 1.442695
  %v4096 = vpow.pop %v4095
  %v4097 = vmul.f32 %v4092, 1.442695
  %v4098 = vpow.pop %v4097
  %v4099 = vmul.f32 %v4093, 1.442695
  %v4100 = vpow.pop %v4099
  %v4101 = vmul.f32 %v4094, 1.442695
  %v4102 = vpow.pop %v4101
  %v4103 = vadd.f32 %v4096, 1.0
  %v4104 = vadd.f32 %v4098, 1.0
  %v4105 = vadd.f32 %v4100, 1.0
  %v4106 = vadd.f32 %v4102, 1.0
  %v4107 = vrcp.pop %v4103
  %v4108 = vmul.f32 1.0, %v4107
  %v4109 = vrcp.pop %v4104
  %v4110 = vmul.f32 1.0, %v4109
  %v4111 = vrcp.pop %v4105
  %v4112 = vmul.f32 1.0, %v4111
  %v4113 = vrcp.pop %v4106
  %v4114 = vmul.f32 1.0, %v4113
  %v4115 = vxor.u32 %v4079, 2147483648
  %v4116 = vxor.u32 %v4080, 2147483648
  %v4117 = vxor.u32 %v4081, 2147483648
  %v4118 = vxor.u32 %v4082, 2147483648
  %v4119 = vmul.f32 %v4115, 1.442695
  %v4120 = vpow.pop %v4119
  %v4121 = vmul.f32 %v4116, 1.442695
  %v4122 = vpow.pop %v4121
  %v4123 = vmul.f32 %v4117, 1.442695
  %v4124 = vpow.pop %v4123
  %v4125 = vmul.f32 %v4118, 1.442695
  %v4126 = vpow.pop %v4125
  %v4127 = vadd.f32 %v4120, 1.0
  %v4128 = vadd.f32 %v4122, 1.0
  %v4129 = vadd.f32 %v4124, 1.0
  %v4130 = vadd.f32 %v4126, 1.0
  %v4131 = vrcp.pop %v4127
  %v4132 = vmul.f32 1.0, %v4131
  %v4133 = vrcp.pop %v4128
  %v4134 = vmul.f32 1.0, %v4133
  %v4135 = vrcp.pop %v4129
  %v4136 = vmul.f32 1.0, %v4135
  %v4137 = vrcp.pop %v4130
  %v4138 = vmul.f32 1.0, %v4137
  %v4139 = vtanh.pop %v4083
  %v4140 = vtanh.pop %v4084
  %v4141 = vtanh.pop %v4085
  %v4142 = vtanh.pop %v4086
  %v4143 = vxor.u32 %v4087, 2147483648
  %v4144 = vxor.u32 %v4088, 2147483648
  %v4145 = vxor.u32 %v4089, 2147483648
  %v4146 = vxor.u32 %v4090, 2147483648
  %v4147 = vmul.f32 %v4143, 1.442695
  %v4148 = vpow.pop %v4147
  %v4149 = vmul.f32 %v4144, 1.442695
  %v4150 = vpow.pop %v4149
  %v4151 = vmul.f32 %v4145, 1.442695
  %v4152 = vpow.pop %v4151
  %v4153 = vmul.f32 %v4146, 1.442695
  %v4154 = vpow.pop %v4153
  %v4155 = vadd.f32 %v4148, 1.0
  %v4156 = vadd.f32 %v4150, 1.0
  %v4157 = vadd.f32 %v4152, 1.0
  %v4158 = vadd.f32 %v4154, 1.0
  %v4159 = vrcp.pop %v4155
  %v4160 = vmul.f32 1.0, %v4159
  %v4161 = vrcp.pop %v4156
  %v4162 = vmul.f32 1.0, %v4161
  %v4163 = vrcp.pop %v4157
  %v4164 = vmul.f32 1.0, %v4163
  %v4165 = vrcp.pop %v4158
  %v4166 = vmul.f32 1.0, %v4165
  %v4167 = vmul.f32 %v4132, %v3700
  %v4168 = vmul.f32 %v4134, %v3701
  %v4169 = vmul.f32 %v4136, %v3702
  %v4170 = vmul.f32 %v4138, %v3703
  %v4171 = vmul.f32 %v4108, %v4139
  %v4172 = vmul.f32 %v4110, %v4140
  %v4173 = vmul.f32 %v4112, %v4141
  %v4174 = vmul.f32 %v4114, %v4142
  %v4175 = vadd.f32 %v4167, %v4171
  %v4176 = vadd.f32 %v4168, %v4172
  %v4177 = vadd.f32 %v4169, %v4173
  %v4178 = vadd.f32 %v4170, %v4174
  %v4179 = vtanh.pop %v4175
  %v4180 = vtanh.pop %v4176
  %v4181 = vtanh.pop %v4177
  %v4182 = vtanh.pop %v4178
  %v4183 = vmul.f32 %v4160, %v4179
  %v4184 = vmul.f32 %v4162, %v4180
  %v4185 = vmul.f32 %v4164, %v4181
  %v4186 = vmul.f32 %v4166, %v4182
  %4187 = vmatprep.subr.mxu0 0.0
  %4188 = vmatpush1.msra.mxu0 %v4183
  %4189 = vmatprep.subr.mxu0 0.0
  %4190 = vmatpush1.msra.mxu0 %v4184
  %4191 = vmatprep.subr.mxu0 0.0
  %4192 = vmatpush1.msra.mxu0 %v4185
  %4193 = vmatprep.subr.mxu0 0.0
  %4194 = vmatpush1.msra.mxu0 %v4186
  %4195 = vmatprep.subr.mxu0 0.0
  %4196 = vmatpush1.msra.mxu0 0.0
  %4197 = vmatprep.subr.mxu0 0.0
  %4198 = vmatpush1.msra.mxu0 0.0
  %4199 = vmatprep.subr.mxu0 0.0
  %4200 = vmatpush1.msra.mxu0 0.0
  %4201 = vmatprep.subr.mxu0 0.0
  %4202 = vmatpush1.msra.mxu0 0.0
  %4203 = vmatprep.subr.mxu0 0.0
  %4204 = vmatpush1.msra.mxu0 0.0
  %4205 = vmatprep.subr.mxu0 0.0
  %4206 = vmatpush1.msra.mxu0 0.0
  %4207 = vmatprep.subr.mxu0 0.0
  %4208 = vmatpush1.msra.mxu0 0.0
  %4209 = vmatprep.subr.mxu0 0.0
  %4210 = vmatpush1.msra.mxu0 0.0
  %4211 = vmatprep.subr.mxu0 0.0
  %4212 = vmatpush1.msra.mxu0 0.0
  %4213 = vmatprep.subr.mxu0 0.0
  %4214 = vmatpush1.msra.mxu0 0.0
  %4215 = vmatprep.subr.mxu0 0.0
  %4216 = vmatpush1.msra.mxu0 0.0
  %4217 = vmatprep.subr.mxu0 0.0
  %4218 = vmatpush1.msra.mxu0 0.0
  %4219 = vmatprep.subr.mxu0 0.0
  %4220 = vmatpush1.msra.mxu0 0.0
  %4221 = vmatprep.subr.mxu0 0.0
  %4222 = vmatpush1.msra.mxu0 0.0
  %4223 = vmatprep.subr.mxu0 0.0
  %4224 = vmatpush1.msra.mxu0 0.0
  %4225 = vmatprep.subr.mxu0 0.0
  %4226 = vmatpush1.msra.mxu0 0.0
  %4227 = vmatprep.subr.mxu0 0.0
  %4228 = vmatpush1.msra.mxu0 0.0
  %4229 = vmatprep.subr.mxu0 0.0
  %4230 = vmatpush1.msra.mxu0 0.0
  %4231 = vmatprep.subr.mxu0 0.0
  %4232 = vmatpush1.msra.mxu0 0.0
  %4233 = vmatprep.subr.mxu0 0.0
  %4234 = vmatpush1.msra.mxu0 0.0
  %4235 = vmatprep.subr.mxu0 0.0
  %4236 = vmatpush1.msra.mxu0 0.0
  %4237 = vmatprep.subr.mxu0 0.0
  %4238 = vmatpush1.msra.mxu0 0.0
  %4239 = vmatprep.subr.mxu0 0.0
  %4240 = vmatpush1.msra.mxu0 0.0
  %4241 = vmatprep.subr.mxu0 0.0
  %4242 = vmatpush1.msra.mxu0 0.0
  %4243 = vmatprep.subr.mxu0 0.0
  %4244 = vmatpush1.msra.mxu0 0.0
  %4245 = vmatprep.subr.mxu0 0.0
  %4246 = vmatpush1.msra.mxu0 0.0
  %4247 = vmatprep.subr.mxu0 0.0
  %4248 = vmatpush1.msra.mxu0 0.0
  %4249 = vmatprep.subr.mxu0 0.0
  %4250 = vmatpush1.msra.mxu0 0.0
  %4251 = vmatprep.mubr.f32.mxu0 0.0
  %4252 = vmatmul.mubr.f32.gmra.mrb[0].mxu0 %v1335
  %v4253 = vpop.f32.mrb[0].mxu0
  %v4254 = vadd.f32 %v830, %v4253
  %v4255 = vpop.f32.mrb[0].mxu0
  %4256 = vdwg.mxu0
  %4257 = vmatprep.subr.mxu0 0.0
  %4258 = vmatpush1.msra.mxu0 %v4183
  %4259 = vmatprep.subr.mxu0 0.0
  %4260 = vmatpush1.msra.mxu0 %v4184
  %4261 = vmatprep.subr.mxu0 0.0
  %4262 = vmatpush1.msra.mxu0 %v4185
  %4263 = vmatprep.subr.mxu0 0.0
  %4264 = vmatpush1.msra.mxu0 %v4186
  %4265 = vmatprep.subr.mxu0 0.0
  %4266 = vmatpush1.msra.mxu0 0.0
  %4267 = vmatprep.subr.mxu0 0.0
  %4268 = vmatpush1.msra.mxu0 0.0
  %4269 = vmatprep.subr.mxu0 0.0
  %4270 = vmatpush1.msra.mxu0 0.0
  %4271 = vmatprep.subr.mxu0 0.0
  %4272 = vmatpush1.msra.mxu0 0.0
  %4273 = vmatprep.subr.mxu0 0.0
  %4274 = vmatpush1.msra.mxu0 0.0
  %4275 = vmatprep.subr.mxu0 0.0
  %4276 = vmatpush1.msra.mxu0 0.0
  %4277 = vmatprep.subr.mxu0 0.0
  %4278 = vmatpush1.msra.mxu0 0.0
  %4279 = vmatprep.subr.mxu0 0.0
  %4280 = vmatpush1.msra.mxu0 0.0
  %4281 = vmatprep.subr.mxu0 0.0
  %4282 = vmatpush1.msra.mxu0 0.0
  %4283 = vmatprep.subr.mxu0 0.0
  %4284 = vmatpush1.msra.mxu0 0.0
  %4285 = vmatprep.subr.mxu0 0.0
  %4286 = vmatpush1.msra.mxu0 0.0
  %4287 = vmatprep.subr.mxu0 0.0
  %4288 = vmatpush1.msra.mxu0 0.0
  %4289 = vmatprep.subr.mxu0 0.0
  %4290 = vmatpush1.msra.mxu0 0.0
  %4291 = vmatprep.subr.mxu0 0.0
  %4292 = vmatpush1.msra.mxu0 0.0
  %4293 = vmatprep.subr.mxu0 0.0
  %4294 = vmatpush1.msra.mxu0 0.0
  %4295 = vmatprep.subr.mxu0 0.0
  %4296 = vmatpush1.msra.mxu0 0.0
  %4297 = vmatprep.subr.mxu0 0.0
  %4298 = vmatpush1.msra.mxu0 0.0
  %4299 = vmatprep.subr.mxu0 0.0
  %4300 = vmatpush1.msra.mxu0 0.0
  %4301 = vmatprep.subr.mxu0 0.0
  %4302 = vmatpush1.msra.mxu0 0.0
  %4303 = vmatprep.subr.mxu0 0.0
  %4304 = vmatpush1.msra.mxu0 0.0
  %4305 = vmatprep.subr.mxu0 0.0
  %4306 = vmatpush1.msra.mxu0 0.0
  %4307 = vmatprep.subr.mxu0 0.0
  %4308 = vmatpush1.msra.mxu0 0.0
  %4309 = vmatprep.subr.mxu0 0.0
  %4310 = vmatpush1.msra.mxu0 0.0
  %4311 = vmatprep.subr.mxu0 0.0
  %4312 = vmatpush1.msra.mxu0 0.0
  %4313 = vmatprep.subr.mxu0 0.0
  %4314 = vmatpush1.msra.mxu0 0.0
  %4315 = vmatprep.subr.mxu0 0.0
  %4316 = vmatpush1.msra.mxu0 0.0
  %4317 = vmatprep.subr.mxu0 0.0
  %4318 = vmatpush1.msra.mxu0 0.0
  %4319 = vmatprep.subr.mxu0 0.0
  %4320 = vmatpush1.msra.mxu0 0.0
  %4321 = vmatprep.mubr.f32.mxu0 0.0
  %4322 = vmatmul.mubr.f32.gmra.mrb[0].mxu0 %v833
  %v4323 = vpop.f32.mrb[0].mxu0
  %v4324 = vadd.f32 0.0, %v4323
  %v4325 = vpop.f32.mrb[0].mxu0
  %4326 = vmatprep.mubr.f32.mxu0 0.0
  %4327 = vmatmul.mubr.f32.gmra.mrb[0].mxu0 %v836
  %v4328 = vpop.f32.mrb[0].mxu0
  %v4329 = vadd.f32 0.0, %v4328
  %v4330 = vpop.f32.mrb[0].mxu0
  %4331 = vmatprep.mubr.f32.mxu0 0.0
  %4332 = vmatmul.mubr.f32.gmra.mrb[0].mxu0 %v839
  %v4333 = vpop.f32.mrb[0].mxu0
  %v4334 = vadd.f32 0.0, %v4333
  %v4335 = vpop.f32.mrb[0].mxu0
  %4336 = vmatprep.mubr.f32.mxu0 0.0
  %4337 = vmatmul.mubr.f32.gmra.mrb[0].mxu0 %v842
  %v4338 = vpop.f32.mrb[0].mxu0
  %v4339 = vadd.f32 0.0, %v4338
  %v4340 = vpop.f32.mrb[0].mxu0
  %4341 = vmatprep.mubr.f32.mxu0 0.0
  %4342 = vmatmul.mubr.f32.gmra.mrb[0].mxu0 %v845
  %v4343 = vpop.f32.mrb[0].mxu0
  %v4344 = vadd.f32 0.0, %v4343
  %v4345 = vpop.f32.mrb[0].mxu0
  %4346 = vmatprep.mubr.f32.mxu0 0.0
  %4347 = vmatmul.mubr.f32.gmra.mrb[0].mxu0 %v848
  %v4348 = vpop.f32.mrb[0].mxu0
  %v4349 = vadd.f32 0.0, %v4348
  %v4350 = vpop.f32.mrb[0].mxu0
  %4351 = vmatprep.mubr.f32.mxu0 0.0
  %4352 = vmatmul.mubr.f32.gmra.mrb[0].mxu0 %v851
  %v4353 = vpop.f32.mrb[0].mxu0
  %v4354 = vadd.f32 0.0, %v4353
  %v4355 = vpop.f32.mrb[0].mxu0
  %4356 = vmatprep.mubr.f32.mxu0 0.0
  %4357 = vmatmul.mubr.f32.gmra.mrb[0].mxu0 %v854
  %v4358 = vpop.f32.mrb[0].mxu0
  %v4359 = vadd.f32 0.0, %v4358
  %v4360 = vpop.f32.mrb[0].mxu0
  %4361 = vmatprep.mubr.f32.mxu0 0.0
  %4362 = vmatmul.mubr.f32.gmra.mrb[0].mxu0 %v857
  %v4363 = vpop.f32.mrb[0].mxu0
  %v4364 = vadd.f32 0.0, %v4363
  %v4365 = vpop.f32.mrb[0].mxu0
  %4366 = vmatprep.mubr.f32.mxu0 0.0
  %4367 = vmatmul.mubr.f32.gmra.mrb[0].mxu0 %v860
  %v4368 = vpop.f32.mrb[0].mxu0
  %v4369 = vadd.f32 0.0, %v4368
  %v4370 = vpop.f32.mrb[0].mxu0
  %4371 = vmatprep.mubr.f32.mxu0 0.0
  %4372 = vmatmul.mubr.f32.gmra.mrb[0].mxu0 %v863
  %v4373 = vpop.f32.mrb[0].mxu0
  %v4374 = vadd.f32 0.0, %v4373
  %v4375 = vpop.f32.mrb[0].mxu0
  %4376 = vmatprep.mubr.f32.mxu0 0.0
  %4377 = vmatmul.mubr.f32.gmra.mrb[0].mxu0 %v866
  %v4378 = vpop.f32.mrb[0].mxu0
  %v4379 = vadd.f32 0.0, %v4378
  %v4380 = vpop.f32.mrb[0].mxu0
  %4381 = vmatprep.mubr.f32.mxu0 0.0
  %4382 = vmatmul.mubr.f32.gmra.mrb[0].mxu0 %v869
  %v4383 = vpop.f32.mrb[0].mxu0
  %v4384 = vadd.f32 0.0, %v4383
  %v4385 = vpop.f32.mrb[0].mxu0
  %4386 = vmatprep.mubr.f32.mxu0 0.0
  %4387 = vmatmul.mubr.f32.gmra.mrb[0].mxu0 %v872
  %v4388 = vpop.f32.mrb[0].mxu0
  %v4389 = vadd.f32 0.0, %v4388
  %v4390 = vpop.f32.mrb[0].mxu0
  %4391 = vmatprep.mubr.f32.mxu0 0.0
  %4392 = vmatmul.mubr.f32.gmra.mrb[0].mxu0 %v875
  %v4393 = vpop.f32.mrb[0].mxu0
  %v4394 = vadd.f32 0.0, %v4393
  %v4395 = vpop.f32.mrb[0].mxu0
  %4396 = vmatprep.mubr.f32.mxu0 0.0
  %4397 = vmatmul.mubr.f32.gmra.mrb[0].mxu0 %v878
  %v4398 = vpop.f32.mrb[0].mxu0
  %v4399 = vadd.f32 0.0, %v4398
  %v4400 = vpop.f32.mrb[0].mxu0
  %4401 = vdwg.mxu0
  %v4403 = vsel %vm1073, %v4254, 0
  %4405 = vmatprep.subr.mxu0 0.0
  %4406 = vmatpush1.msra.mxu0 %v4403
  %4407 = vmatprep.subr.mxu0 0.0
  %4408 = vmatpush1.msra.mxu0 0.0
  %4409 = vmatprep.subr.mxu0 0.0
  %4410 = vmatpush1.msra.mxu0 0.0
  %4411 = vmatprep.subr.mxu0 0.0
  %4412 = vmatpush1.msra.mxu0 0.0
  %4413 = vmatprep.subr.mxu0 0.0
  %4414 = vmatpush1.msra.mxu0 0.0
  %4415 = vmatprep.subr.mxu0 0.0
  %4416 = vmatpush1.msra.mxu0 0.0
  %4417 = vmatprep.subr.mxu0 0.0
  %4418 = vmatpush1.msra.mxu0 0.0
  %4419 = vmatprep.subr.mxu0 0.0
  %4420 = vmatpush1.msra.mxu0 0.0
  %4421 = vmatprep.subr.mxu0 0.0
  %4422 = vmatpush1.msra.mxu0 0.0
  %4423 = vmatprep.subr.mxu0 0.0
  %4424 = vmatpush1.msra.mxu0 0.0
  %4425 = vmatprep.subr.mxu0 0.0
  %4426 = vmatpush1.msra.mxu0 0.0
  %4427 = vmatprep.subr.mxu0 0.0
  %4428 = vmatpush1.msra.mxu0 0.0
  %4429 = vmatprep.subr.mxu0 0.0
  %4430 = vmatpush1.msra.mxu0 0.0
  %4431 = vmatprep.subr.mxu0 0.0
  %4432 = vmatpush1.msra.mxu0 0.0
  %4433 = vmatprep.subr.mxu0 0.0
  %4434 = vmatpush1.msra.mxu0 0.0
  %4435 = vmatprep.subr.mxu0 0.0
  %4436 = vmatpush1.msra.mxu0 0.0
  %4437 = vmatprep.subr.mxu0 0.0
  %4438 = vmatpush1.msra.mxu0 0.0
  %4439 = vmatprep.subr.mxu0 0.0
  %4440 = vmatpush1.msra.mxu0 0.0
  %4441 = vmatprep.subr.mxu0 0.0
  %4442 = vmatpush1.msra.mxu0 0.0
  %4443 = vmatprep.subr.mxu0 0.0
  %4444 = vmatpush1.msra.mxu0 0.0
  %4445 = vmatprep.subr.mxu0 0.0
  %4446 = vmatpush1.msra.mxu0 0.0
  %4447 = vmatprep.subr.mxu0 0.0
  %4448 = vmatpush1.msra.mxu0 0.0
  %4449 = vmatprep.subr.mxu0 0.0
  %4450 = vmatpush1.msra.mxu0 0.0
  %4451 = vmatprep.subr.mxu0 0.0
  %4452 = vmatpush1.msra.mxu0 0.0
  %4453 = vmatprep.subr.mxu0 0.0
  %4454 = vmatpush1.msra.mxu0 0.0
  %4455 = vmatprep.subr.mxu0 0.0
  %4456 = vmatpush1.msra.mxu0 0.0
  %4457 = vmatprep.subr.mxu0 0.0
  %4458 = vmatpush1.msra.mxu0 0.0
  %4459 = vmatprep.subr.mxu0 0.0
  %4460 = vmatpush1.msra.mxu0 0.0
  %4461 = vmatprep.subr.mxu0 0.0
  %4462 = vmatpush1.msra.mxu0 0.0
  %4463 = vmatprep.subr.mxu0 0.0
  %4464 = vmatpush1.msra.mxu0 0.0
  %4465 = vmatprep.subr.mxu0 0.0
  %4466 = vmatpush1.msra.mxu0 0.0
  %4467 = vmatprep.subr.mxu0 0.0
  %4468 = vmatpush1.msra.mxu0 0.0
  %4469 = vmatprep.mubr.f32.mxu0 0.0
  %4470 = vmatmul.mubr.f32.gmra.mrb[0].mxu0 %v1026
  %v4471 = vpop.f32.mrb[0].mxu0
  %v4472 = vadd.f32 %v4324, %v4471
  %v4473 = vpop.f32.mrb[0].mxu0
  %4474 = vmatprep.mubr.f32.mxu0 0.0
  %4475 = vmatmul.mubr.f32.gmra.mrb[0].mxu0 %v1029
  %v4476 = vpop.f32.mrb[0].mxu0
  %v4477 = vadd.f32 %v4329, %v4476
  %v4478 = vpop.f32.mrb[0].mxu0
  %4479 = vmatprep.mubr.f32.mxu0 0.0
  %4480 = vmatmul.mubr.f32.gmra.mrb[0].mxu0 %v1032
  %v4481 = vpop.f32.mrb[0].mxu0
  %v4482 = vadd.f32 %v4334, %v4481
  %v4483 = vpop.f32.mrb[0].mxu0
  %4484 = vmatprep.mubr.f32.mxu0 0.0
  %4485 = vmatmul.mubr.f32.gmra.mrb[0].mxu0 %v1035
  %v4486 = vpop.f32.mrb[0].mxu0
  %v4487 = vadd.f32 %v4339, %v4486
  %v4488 = vpop.f32.mrb[0].mxu0
  %4489 = vmatprep.mubr.f32.mxu0 0.0
  %4490 = vmatmul.mubr.f32.gmra.mrb[0].mxu0 %v1038
  %v4491 = vpop.f32.mrb[0].mxu0
  %v4492 = vadd.f32 %v4344, %v4491
  %v4493 = vpop.f32.mrb[0].mxu0
  %4494 = vmatprep.mubr.f32.mxu0 0.0
  %4495 = vmatmul.mubr.f32.gmra.mrb[0].mxu0 %v1041
  %v4496 = vpop.f32.mrb[0].mxu0
  %v4497 = vadd.f32 %v4349, %v4496
  %v4498 = vpop.f32.mrb[0].mxu0
  %4499 = vmatprep.mubr.f32.mxu0 0.0
  %4500 = vmatmul.mubr.f32.gmra.mrb[0].mxu0 %v1044
  %v4501 = vpop.f32.mrb[0].mxu0
  %v4502 = vadd.f32 %v4354, %v4501
  %v4503 = vpop.f32.mrb[0].mxu0
  %4504 = vmatprep.mubr.f32.mxu0 0.0
  %4505 = vmatmul.mubr.f32.gmra.mrb[0].mxu0 %v1047
  %v4506 = vpop.f32.mrb[0].mxu0
  %v4507 = vadd.f32 %v4359, %v4506
  %v4508 = vpop.f32.mrb[0].mxu0
  %4509 = vmatprep.mubr.f32.mxu0 0.0
  %4510 = vmatmul.mubr.f32.gmra.mrb[0].mxu0 %v1050
  %v4511 = vpop.f32.mrb[0].mxu0
  %v4512 = vadd.f32 %v4364, %v4511
  %v4513 = vpop.f32.mrb[0].mxu0
  %4514 = vmatprep.mubr.f32.mxu0 0.0
  %4515 = vmatmul.mubr.f32.gmra.mrb[0].mxu0 %v1053
  %v4516 = vpop.f32.mrb[0].mxu0
  %v4517 = vadd.f32 %v4369, %v4516
  %v4518 = vpop.f32.mrb[0].mxu0
  %4519 = vmatprep.mubr.f32.mxu0 0.0
  %4520 = vmatmul.mubr.f32.gmra.mrb[0].mxu0 %v1056
  %v4521 = vpop.f32.mrb[0].mxu0
  %v4522 = vadd.f32 %v4374, %v4521
  %v4523 = vpop.f32.mrb[0].mxu0
  %4524 = vmatprep.mubr.f32.mxu0 0.0
  %4525 = vmatmul.mubr.f32.gmra.mrb[0].mxu0 %v1059
  %v4526 = vpop.f32.mrb[0].mxu0
  %v4527 = vadd.f32 %v4379, %v4526
  %v4528 = vpop.f32.mrb[0].mxu0
  %4529 = vmatprep.mubr.f32.mxu0 0.0
  %4530 = vmatmul.mubr.f32.gmra.mrb[0].mxu0 %v1062
  %v4531 = vpop.f32.mrb[0].mxu0
  %v4532 = vadd.f32 %v4384, %v4531
  %v4533 = vpop.f32.mrb[0].mxu0
  %4534 = vmatprep.mubr.f32.mxu0 0.0
  %4535 = vmatmul.mubr.f32.gmra.mrb[0].mxu0 %v1065
  %v4536 = vpop.f32.mrb[0].mxu0
  %v4537 = vadd.f32 %v4389, %v4536
  %v4538 = vpop.f32.mrb[0].mxu0
  %4539 = vmatprep.mubr.f32.mxu0 0.0
  %4540 = vmatmul.mubr.f32.gmra.mrb[0].mxu0 %v1068
  %v4541 = vpop.f32.mrb[0].mxu0
  %v4542 = vadd.f32 %v4394, %v4541
  %v4543 = vpop.f32.mrb[0].mxu0
  %4544 = vmatprep.mubr.f32.mxu0 0.0
  %4545 = vmatmul.mubr.f32.gmra.mrb[0].mxu0 %v1071
  %v4546 = vpop.f32.mrb[0].mxu0
  %v4547 = vadd.f32 %v4399, %v4546
  %v4548 = vpop.f32.mrb[0].mxu0
  %4549 = vdwg.mxu0
  %v4550 = vadd.f32 %v4472, %v813
  %v4551 = vadd.f32 %v4477, %v814
  %v4552 = vadd.f32 %v4482, %v815
  %v4553 = vadd.f32 %v4487, %v816
  %v4554 = vadd.f32 %v4492, %v817
  %v4555 = vadd.f32 %v4497, %v818
  %v4556 = vadd.f32 %v4502, %v819
  %v4557 = vadd.f32 %v4507, %v820
  %v4558 = vadd.f32 %v4512, %v821
  %v4559 = vadd.f32 %v4517, %v822
  %v4560 = vadd.f32 %v4522, %v823
  %v4561 = vadd.f32 %v4527, %v824
  %v4562 = vadd.f32 %v4532, %v825
  %v4563 = vadd.f32 %v4537, %v826
  %v4564 = vadd.f32 %v4542, %v827
  %v4565 = vadd.f32 %v4547, %v828
  %v4566 = vxor.u32 %v4550, 2147483648
  %v4567 = vxor.u32 %v4551, 2147483648
  %v4568 = vxor.u32 %v4552, 2147483648
  %v4569 = vxor.u32 %v4553, 2147483648
  %v4570 = vmul.f32 %v4566, 1.442695
  %v4571 = vpow.pop %v4570
  %v4572 = vmul.f32 %v4567, 1.442695
  %v4573 = vpow.pop %v4572
  %v4574 = vmul.f32 %v4568, 1.442695
  %v4575 = vpow.pop %v4574
  %v4576 = vmul.f32 %v4569, 1.442695
  %v4577 = vpow.pop %v4576
  %v4578 = vadd.f32 %v4571, 1.0
  %v4579 = vadd.f32 %v4573, 1.0
  %v4580 = vadd.f32 %v4575, 1.0
  %v4581 = vadd.f32 %v4577, 1.0
  %v4582 = vrcp.pop %v4578
  %v4583 = vmul.f32 1.0, %v4582
  %v4584 = vrcp.pop %v4579
  %v4585 = vmul.f32 1.0, %v4584
  %v4586 = vrcp.pop %v4580
  %v4587 = vmul.f32 1.0, %v4586
  %v4588 = vrcp.pop %v4581
  %v4589 = vmul.f32 1.0, %v4588
  %v4590 = vxor.u32 %v4554, 2147483648
  %v4591 = vxor.u32 %v4555, 2147483648
  %v4592 = vxor.u32 %v4556, 2147483648
  %v4593 = vxor.u32 %v4557, 2147483648
  %v4594 = vmul.f32 %v4590, 1.442695
  %v4595 = vpow.pop %v4594
  %v4596 = vmul.f32 %v4591, 1.442695
  %v4597 = vpow.pop %v4596
  %v4598 = vmul.f32 %v4592, 1.442695
  %v4599 = vpow.pop %v4598
  %v4600 = vmul.f32 %v4593, 1.442695
  %v4601 = vpow.pop %v4600
  %v4602 = vadd.f32 %v4595, 1.0
  %v4603 = vadd.f32 %v4597, 1.0
  %v4604 = vadd.f32 %v4599, 1.0
  %v4605 = vadd.f32 %v4601, 1.0
  %v4606 = vrcp.pop %v4602
  %v4607 = vmul.f32 1.0, %v4606
  %v4608 = vrcp.pop %v4603
  %v4609 = vmul.f32 1.0, %v4608
  %v4610 = vrcp.pop %v4604
  %v4611 = vmul.f32 1.0, %v4610
  %v4612 = vrcp.pop %v4605
  %v4613 = vmul.f32 1.0, %v4612
  %v4614 = vtanh.pop %v4558
  %v4615 = vtanh.pop %v4559
  %v4616 = vtanh.pop %v4560
  %v4617 = vtanh.pop %v4561
  %v4618 = vxor.u32 %v4562, 2147483648
  %v4619 = vxor.u32 %v4563, 2147483648
  %v4620 = vxor.u32 %v4564, 2147483648
  %v4621 = vxor.u32 %v4565, 2147483648
  %v4622 = vmul.f32 %v4618, 1.442695
  %v4623 = vpow.pop %v4622
  %v4624 = vmul.f32 %v4619, 1.442695
  %v4625 = vpow.pop %v4624
  %v4626 = vmul.f32 %v4620, 1.442695
  %v4627 = vpow.pop %v4626
  %v4628 = vmul.f32 %v4621, 1.442695
  %v4629 = vpow.pop %v4628
  %v4630 = vadd.f32 %v4623, 1.0
  %v4631 = vadd.f32 %v4625, 1.0
  %v4632 = vadd.f32 %v4627, 1.0
  %v4633 = vadd.f32 %v4629, 1.0
  %v4634 = vrcp.pop %v4630
  %v4635 = vmul.f32 1.0, %v4634
  %v4636 = vrcp.pop %v4631
  %v4637 = vmul.f32 1.0, %v4636
  %v4638 = vrcp.pop %v4632
  %v4639 = vmul.f32 1.0, %v4638
  %v4640 = vrcp.pop %v4633
  %v4641 = vmul.f32 1.0, %v4640
  %v4642 = vmul.f32 %v4607, %v4175
  %v4643 = vmul.f32 %v4609, %v4176
  %v4644 = vmul.f32 %v4611, %v4177
  %v4645 = vmul.f32 %v4613, %v4178
  %v4646 = vmul.f32 %v4583, %v4614
  %v4647 = vmul.f32 %v4585, %v4615
  %v4648 = vmul.f32 %v4587, %v4616
  %v4649 = vmul.f32 %v4589, %v4617
  %v4650 = vadd.f32 %v4642, %v4646
  %v4651 = vadd.f32 %v4643, %v4647
  %v4652 = vadd.f32 %v4644, %v4648
  %v4653 = vadd.f32 %v4645, %v4649
  %v4654 = vtanh.pop %v4650
  %v4655 = vtanh.pop %v4651
  %v4656 = vtanh.pop %v4652
  %v4657 = vtanh.pop %v4653
  %v4658 = vmul.f32 %v4635, %v4654
  %v4659 = vmul.f32 %v4637, %v4655
  %v4660 = vmul.f32 %v4639, %v4656
  %v4661 = vmul.f32 %v4641, %v4657
  %4662 = vmatprep.subr.mxu0 0.0
  %4663 = vmatpush1.msra.mxu0 %v4658
  %4664 = vmatprep.subr.mxu0 0.0
  %4665 = vmatpush1.msra.mxu0 %v4659
  %4666 = vmatprep.subr.mxu0 0.0
  %4667 = vmatpush1.msra.mxu0 %v4660
  %4668 = vmatprep.subr.mxu0 0.0
  %4669 = vmatpush1.msra.mxu0 %v4661
  %4670 = vmatprep.subr.mxu0 0.0
  %4671 = vmatpush1.msra.mxu0 0.0
  %4672 = vmatprep.subr.mxu0 0.0
  %4673 = vmatpush1.msra.mxu0 0.0
  %4674 = vmatprep.subr.mxu0 0.0
  %4675 = vmatpush1.msra.mxu0 0.0
  %4676 = vmatprep.subr.mxu0 0.0
  %4677 = vmatpush1.msra.mxu0 0.0
  %4678 = vmatprep.subr.mxu0 0.0
  %4679 = vmatpush1.msra.mxu0 0.0
  %4680 = vmatprep.subr.mxu0 0.0
  %4681 = vmatpush1.msra.mxu0 0.0
  %4682 = vmatprep.subr.mxu0 0.0
  %4683 = vmatpush1.msra.mxu0 0.0
  %4684 = vmatprep.subr.mxu0 0.0
  %4685 = vmatpush1.msra.mxu0 0.0
  %4686 = vmatprep.subr.mxu0 0.0
  %4687 = vmatpush1.msra.mxu0 0.0
  %4688 = vmatprep.subr.mxu0 0.0
  %4689 = vmatpush1.msra.mxu0 0.0
  %4690 = vmatprep.subr.mxu0 0.0
  %4691 = vmatpush1.msra.mxu0 0.0
  %4692 = vmatprep.subr.mxu0 0.0
  %4693 = vmatpush1.msra.mxu0 0.0
  %4694 = vmatprep.subr.mxu0 0.0
  %4695 = vmatpush1.msra.mxu0 0.0
  %4696 = vmatprep.subr.mxu0 0.0
  %4697 = vmatpush1.msra.mxu0 0.0
  %4698 = vmatprep.subr.mxu0 0.0
  %4699 = vmatpush1.msra.mxu0 0.0
  %4700 = vmatprep.subr.mxu0 0.0
  %4701 = vmatpush1.msra.mxu0 0.0
  %4702 = vmatprep.subr.mxu0 0.0
  %4703 = vmatpush1.msra.mxu0 0.0
  %4704 = vmatprep.subr.mxu0 0.0
  %4705 = vmatpush1.msra.mxu0 0.0
  %4706 = vmatprep.subr.mxu0 0.0
  %4707 = vmatpush1.msra.mxu0 0.0
  %4708 = vmatprep.subr.mxu0 0.0
  %4709 = vmatpush1.msra.mxu0 0.0
  %4710 = vmatprep.subr.mxu0 0.0
  %4711 = vmatpush1.msra.mxu0 0.0
  %4712 = vmatprep.subr.mxu0 0.0
  %4713 = vmatpush1.msra.mxu0 0.0
  %4714 = vmatprep.subr.mxu0 0.0
  %4715 = vmatpush1.msra.mxu0 0.0
  %4716 = vmatprep.subr.mxu0 0.0
  %4717 = vmatpush1.msra.mxu0 0.0
  %4718 = vmatprep.subr.mxu0 0.0
  %4719 = vmatpush1.msra.mxu0 0.0
  %4720 = vmatprep.subr.mxu0 0.0
  %4721 = vmatpush1.msra.mxu0 0.0
  %4722 = vmatprep.subr.mxu0 0.0
  %4723 = vmatpush1.msra.mxu0 0.0
  %4724 = vmatprep.subr.mxu0 0.0
  %4725 = vmatpush1.msra.mxu0 0.0
  %4726 = vmatprep.mubr.f32.mxu0 0.0
  %4727 = vmatmul.mubr.f32.gmra.mrb[0].mxu0 %v1335
  %v4728 = vpop.f32.mrb[0].mxu0
  %v4729 = vadd.f32 %v830, %v4728
  %v4730 = vpop.f32.mrb[0].mxu0
  %4731 = vdwg.mxu0
  %v4732 = vrot.slane %v1404, 1
  %v4734 = vrot.slane %v2354, 7
  %v4736 = vrot.slane %v2829, 6
  %v4738 = vrot.slane %v3304, 5
  %v4740 = vrot.slane %v3779, 4
  %v4742 = vrot.slane %v4254, 3
  %v4745 = vrot.slane %v4729, 2
  %vm4747 = vcmask 1040384
  %v4748 = vsel %vm4747, %v4732, %v1879
  %v4749 = vsel %vm1073, %v4748, %v4734
  %vm4750 = vcmask 1042432
  %v4751 = vsel %vm4750, %v4749, %v4736
  %vm4752 = vcmask 1043456
  %v4753 = vsel %vm4752, %v4751, %v4738
  %vm4754 = vcmask 1044480
  %v4755 = vsel %vm4754, %v4753, %v4740
  %vm4756 = vcmask 1045504
  %v4757 = vsel %vm4756, %v4755, %v4742
  %vm4758 = vcmask 1046528
  %v4759 = vsel %vm4758, %v4757, %v4745
  %4760 = vst.msk [vmem:[%s20] sm:$0xff] %vm284, %v4759
  // Predicated region
  $region82: #{tpu_custom_call.1} parent=0 // pred_check
    _
  $region83: #{tpu_custom_call.1} parent=0 // pred_check_branch
    %4762 = sbr.rel (0) target = $region85
  $region84: #{tpu_custom_call.1} parent=0 // pred_region
    _
  $region85: #{tpu_custom_call.1} parent=0 // pred_fallthru
    _
  // Predicated region
  $region86: #{tpu_custom_call.1} parent=0 // pred_check
    _
  $region87: #{tpu_custom_call.1} parent=0 // pred_check_branch
    %4764 = sbr.rel (0) target = $region89
  $region88: #{tpu_custom_call.1} parent=0 // pred_region
    _
  $region89: #{tpu_custom_call.1} parent=0 // pred_fallthru
    _

</llo_original>
